<compile_context>
chip_gen: v7x
topology: tpu7x:2x2x1
jax: 0.10.0
libtpu: 0.0.40
codegen_flags: <defaults>
</compile_context>

<pallas_src>
import math
import jax
import jax.numpy as jnp
from jax.experimental import pallas as pl
from jax.experimental.pallas import tpu as pltpu  # noqa: F401  (TPU backend)

# ----------------------------- model dims -----------------------------------
B, S, H = 2, 8, 32          # batch, sequence length, hidden size
NUM_HEADS = 2
HEAD_DIM = H // NUM_HEADS
FFN = 64                    # intermediate (feed-forward) size
NUM_LAYERS = 2
VOCAB = 64
NUM_LABELS = 2              # SST binary sentiment
LN_EPS = 1e-12
BS = B * S                  # flattened token rows

# --------------------- packed-slab row/lane layout constants -----------------
# emb slab: (EMB_ROWS, H)
ROW_WORD = 0                # rows [0, 64)   word embedding table (VOCAB, H)
ROW_POS = VOCAB             # rows [64, 80)  position embedding, pre-tiled to (B*S, H)
ROW_ELNG = 80               # embedding LN gamma   (8-aligned row)
ROW_ELNB = 88               # embedding LN beta    (8-aligned row)
EMB_ROWS = 96

# wmat slab: (NUM_LAYERS, WMAT_ROWS, 3H)  — all layer weight matrices, sublane-stacked
ROW_WQKV = 0                # rows [0, 32),   lanes [0, 96)  : fused QKV   (H, 3H)
ROW_WO = 32                 # rows [32, 64),  lanes [0, 32)  : attn output (H, H)
ROW_W1 = 64                 # rows [64, 96),  lanes [0, 64)  : FFN in      (H, FFN)
ROW_W2 = 96                 # rows [96, 160), lanes [0, 32)  : FFN out     (FFN, H)
WMAT_ROWS, WMAT_LANES = 160, 3 * H

# vec slab: (NUM_LAYERS, 8, 3H) — all per-layer bias / LN rows (lane-prefix slices)
ROW_BQKV, ROW_BO = 0, 1
ROW_LN1G, ROW_LN1B = 2, 3
ROW_B1, ROW_B2 = 4, 5
ROW_LN2G, ROW_LN2B = 6, 7

# head slab: (HEAD_ROWS, H)
ROW_WP = 0                  # rows [0, 32)   pooler weight (H, H)
ROW_WC = 32                 # rows [32, 64)  classifier weight, lanes [0, NUM_LABELS)
ROW_BP = 64                 # pooler bias row
ROW_BC = 72                 # classifier bias row, lanes [0, NUM_LABELS)
HEAD_ROWS = 80


# ----------------------------- in-kernel helpers -----------------------------
def _layernorm(x, g, b):
    mu = jnp.mean(x, axis=-1, keepdims=True)
    var = jnp.mean((x - mu) ** 2, axis=-1, keepdims=True)
    return (x - mu) * jax.lax.rsqrt(var + LN_EPS) * g + b


def _gelu(x):
    # TODO(synk): tanh approximation (HF 'gelu' is erf-based; tiny numerical drift only).
    c = math.sqrt(2.0 / math.pi)
    return 0.5 * x * (1.0 + jnp.tanh(c * (x + 0.044715 * x * x * x)))


# ----------------------------- fused whole-model kernel ----------------------
def fused_model_kernel(ids_ref, emb_ref, wmat_ref, vec_ref, head_ref, o_ref):
    scale = 1.0 / math.sqrt(HEAD_DIM)

    # ---- in-kernel embedding gather: one_hot(ids) @ word_emb on the MXU -----
    ids = ids_ref[...]                                                 # (BS, 1) int32
    onehot = (ids == jax.lax.broadcasted_iota(jnp.int32, (BS, VOCAB), 1)
              ).astype(jnp.float32)                                    # (BS, VOCAB)
    x = (jnp.dot(onehot, emb_ref[ROW_WORD:ROW_WORD + VOCAB, :],
                 preferred_element_type=jnp.float32)
         + emb_ref[ROW_POS:ROW_POS + BS, :])                           # (BS, H)
    x = _layernorm(x, emb_ref[ROW_ELNG:ROW_ELNG + 1, :],
                   emb_ref[ROW_ELNB:ROW_ELNB + 1, :])

    for l in range(NUM_LAYERS):                                        # static unroll
        # ---- fused QKV projection: one (BS,H) x (H,3H) GEMM -----------------
        qkv = (jnp.dot(x, wmat_ref[l, ROW_WQKV:ROW_WQKV + H, 0:3 * H],
                       preferred_element_type=jnp.float32)
               + vec_ref[l, ROW_BQKV:ROW_BQKV + 1, :])                 # (BS, 3H)
        q3 = qkv[:, 0 * H:1 * H].reshape(B, S, H)
        k3 = qkv[:, 1 * H:2 * H].reshape(B, S, H)
        v3 = qkv[:, 2 * H:3 * H].reshape(B, S, H)

        # ---- attention: per-head batched einsums, accumulate output proj ----
        # (no lane-axis concat of head contexts; static weight-ref slices are free)
        attn = None
        for h in range(NUM_HEADS):
            sl = slice(h * HEAD_DIM, (h + 1) * HEAD_DIM)
            qh, kh, vh = q3[..., sl], k3[..., sl], v3[..., sl]         # (B, S, dh)
            scores = jnp.einsum('bqd,bkd->bqk', qh, kh,
                                preferred_element_type=jnp.float32) * scale
            scores = scores - jnp.max(scores, axis=-1, keepdims=True)
            p = jnp.exp(scores)
            p = p * pl.reciprocal(jnp.sum(p, axis=-1, keepdims=True), approx=True)
            ctx = jnp.einsum('bqk,bkd->bqd', p, vh,
                             preferred_element_type=jnp.float32)       # (B, S, dh)
            wo_h = wmat_ref[l, ROW_WO + h * HEAD_DIM:ROW_WO + (h + 1) * HEAD_DIM, 0:H]
            proj = jnp.dot(ctx.reshape(BS, HEAD_DIM), wo_h,
                           preferred_element_type=jnp.float32)         # (BS, H)
            attn = proj if attn is None else attn + proj
        attn = attn + vec_ref[l, ROW_BO:ROW_BO + 1, 0:H]

        # ---- residual + LN ---------------------------------------------------
        h1 = _layernorm(x + attn,
                        vec_ref[l, ROW_LN1G:ROW_LN1G + 1, 0:H],
                        vec_ref[l, ROW_LN1B:ROW_LN1B + 1, 0:H])

        # ---- feed-forward + residual + LN ------------------------------------
        ff = _gelu(jnp.dot(h1, wmat_ref[l, ROW_W1:ROW_W1 + H, 0:FFN],
                           preferred_element_type=jnp.float32)
                   + vec_ref[l, ROW_B1:ROW_B1 + 1, 0:FFN])
        ff = (jnp.dot(ff, wmat_ref[l, ROW_W2:ROW_W2 + FFN, 0:H],
                      preferred_element_type=jnp.float32)
              + vec_ref[l, ROW_B2:ROW_B2 + 1, 0:H])
        x = _layernorm(h1 + ff,
                       vec_ref[l, ROW_LN2G:ROW_LN2G + 1, 0:H],
                       vec_ref[l, ROW_LN2B:ROW_LN2B + 1, 0:H])

    # ---- pooler + classifier on [CLS] tokens ---------------------------------
    cls = x.reshape(B, S, H)[:, 0, :]                                  # (B, H)
    pooled = jnp.tanh(jnp.dot(cls, head_ref[ROW_WP:ROW_WP + H, :],
                              preferred_element_type=jnp.float32)
                      + head_ref[ROW_BP:ROW_BP + 1, :])
    logits = (jnp.dot(pooled, head_ref[ROW_WC:ROW_WC + H, :],          # lane-padded wc
                      preferred_element_type=jnp.float32)
              + head_ref[ROW_BC:ROW_BC + 1, :])                        # (B, H)
    o_ref[...] = logits[:, :NUM_LABELS]


# ----------------------------- parameter init --------------------------------
def init_params(key):
    keys = iter(jax.random.split(key, 32))
    nrm = lambda shape: 0.02 * jax.random.normal(next(keys), shape, jnp.float32)
    zeros = lambda shape: jnp.zeros(shape, jnp.float32)
    ones = lambda shape: jnp.ones(shape, jnp.float32)
    L = NUM_LAYERS
    return {
        "word_emb": nrm((VOCAB, H)),
        "pos_emb": nrm((S, H)),
        "emb_ln_g": ones((1, H)), "emb_ln_b": zeros((1, H)),
        "wqkv": nrm((L, H, 3 * H)), "bqkv": zeros((L, 1, 3 * H)),
        "wo": nrm((L, H, H)), "bo": zeros((L, 1, H)),
        "ln1g": ones((L, 1, H)), "ln1b": zeros((L, 1, H)),
        "w1": nrm((L, H, FFN)), "b1": zeros((L, 1, FFN)),
        "w2": nrm((L, FFN, H)), "b2": zeros((L, 1, H)),
        "ln2g": ones((L, 1, H)), "ln2b": zeros((L, 1, H)),
        "wp": nrm((H, H)), "bp": zeros((1, H)),
        "wc": nrm((H, NUM_LABELS)), "bc": zeros((1, NUM_LABELS)),
    }


def pack_params(p):
    """Pack the 18 weight arrays into 4 VMEM-resident slabs (few, larger DMAs)."""
    L = NUM_LAYERS

    emb = jnp.zeros((EMB_ROWS, H), jnp.float32)
    emb = emb.at[ROW_WORD:ROW_WORD + VOCAB].set(p["word_emb"])
    emb = emb.at[ROW_POS:ROW_POS + BS].set(jnp.tile(p["pos_emb"], (B, 1)))
    emb = emb.at[ROW_ELNG].set(p["emb_ln_g"][0])
    emb = emb.at[ROW_ELNB].set(p["emb_ln_b"][0])

    wmat = jnp.zeros((L, WMAT_ROWS, WMAT_LANES), jnp.float32)
    wmat = wmat.at[:, ROW_WQKV:ROW_WQKV + H, 0:3 * H].set(p["wqkv"])
    wmat = wmat.at[:, ROW_WO:ROW_WO + H, 0:H].set(p["wo"])
    wmat = wmat.at[:, ROW_W1:ROW_W1 + H, 0:FFN].set(p["w1"])
    wmat = wmat.at[:, ROW_W2:ROW_W2 + FFN, 0:H].set(p["w2"])

    vec = jnp.zeros((L, 8, 3 * H), jnp.float32)
    vec = vec.at[:, ROW_BQKV, 0:3 * H].set(p["bqkv"][:, 0])
    vec = vec.at[:, ROW_BO, 0:H].set(p["bo"][:, 0])
    vec = vec.at[:, ROW_LN1G, 0:H].set(p["ln1g"][:, 0])
    vec = vec.at[:, ROW_LN1B, 0:H].set(p["ln1b"][:, 0])
    vec = vec.at[:, ROW_B1, 0:FFN].set(p["b1"][:, 0])
    vec = vec.at[:, ROW_B2, 0:H].set(p["b2"][:, 0])
    vec = vec.at[:, ROW_LN2G, 0:H].set(p["ln2g"][:, 0])
    vec = vec.at[:, ROW_LN2B, 0:H].set(p["ln2b"][:, 0])

    head = jnp.zeros((HEAD_ROWS, H), jnp.float32)
    head = head.at[ROW_WP:ROW_WP + H].set(p["wp"])
    head = head.at[ROW_WC:ROW_WC + H, 0:NUM_LABELS].set(p["wc"])
    head = head.at[ROW_BP].set(p["bp"][0])
    head = head.at[ROW_BC, 0:NUM_LABELS].set(p["bc"][0])

    return {"emb": emb, "wmat": wmat, "vec": vec, "head": head}


# ----------------------------- forward (== WrappedModel.forward) -------------
@jax.jit
def wrapped_model_forward(packed, input_ids):
    ids = input_ids.reshape(BS, 1).astype(jnp.int32)   # token rows, gathered in-kernel
    logits = pl.pallas_call(
        fused_model_kernel,
        out_shape=jax.ShapeDtypeStruct((B, NUM_LABELS), jnp.float32),
    )(ids, packed["emb"], packed["wmat"], packed["vec"], packed["head"])
    return logits                    # equivalent to returning outputs.logits


# ----------------------------- main ------------------------------------------
if __name__ == "__main__":
    key = jax.random.PRNGKey(0)
    pkey, dkey = jax.random.split(key)
    params = init_params(pkey)
    packed = pack_params(params)

    input_ids = jax.random.randint(dkey, (B, S), 0, VOCAB, dtype=jnp.int32)

    logits = wrapped_model_forward(packed, input_ids)
    logits = jax.block_until_ready(logits)

    assert logits.shape == (B, NUM_LABELS)
    assert logits.dtype == jnp.float32
    print("KERNEL_OK")
</pallas_src>

<mosaic_0001>
module attributes {stable_mosaic.version = 11 : i64} {
  func.func @fused_model_kernel(%arg0: memref<16x1xi32, #tpu.memory_space<vmem>>, %arg1: memref<96x32xf32, #tpu.memory_space<vmem>>, %arg2: memref<2x160x96xf32, #tpu.memory_space<vmem>>, %arg3: memref<2x8x96xf32, #tpu.memory_space<vmem>>, %arg4: memref<80x32xf32, #tpu.memory_space<vmem>>, %arg5: memref<2x2xf32, #tpu.memory_space<vmem>>) attributes {dimension_semantics = [], scalar_prefetch = 0 : i64, scratch_operands = 0 : i64, tpu.core_type = #tpu.core_type<tc>} {
    %c0 = arith.constant 0 : index
    %c0_0 = arith.constant 0 : index
    %0 = vector.load %arg0[%c0, %c0_0] : memref<16x1xi32, #tpu.memory_space<vmem>>, vector<16x1xi32>
    %1 = tpu.iota {dimensions = array<i32: 1>} : vector<16x64xi32>
    %2 = vector.broadcast %0 : vector<16x1xi32> to vector<16x64xi32>
    %3 = arith.cmpi eq, %2, %1 : vector<16x64xi32>
    %4 = arith.extui %3 : vector<16x64xi1> to vector<16x64xi32>
    %5 = arith.sitofp %4 : vector<16x64xi32> to vector<16x64xf32>
    %c0_1 = arith.constant 0 : index
    %c0_2 = arith.constant 0 : index
    %6 = vector.load %arg1[%c0_1, %c0_2] : memref<96x32xf32, #tpu.memory_space<vmem>>, vector<64x32xf32>
    %cst = arith.constant dense<0.000000e+00> : vector<16x32xf32>
    %7 = tpu.matmul %5, %6, %cst {dimension_numbers = #tpu.dot_dimension_numbers<[1], [0], [0], [1], [0, 0, 1, 1], [], []>} : vector<16x64xf32>, vector<64x32xf32>, vector<16x32xf32> -> vector<16x32xf32>
    %c64 = arith.constant 64 : index
    %c0_3 = arith.constant 0 : index
    %8 = vector.load %arg1[%c64, %c0_3] : memref<96x32xf32, #tpu.memory_space<vmem>>, vector<16x32xf32>
    %9 = arith.addf %7, %8 : vector<16x32xf32>
    %c80 = arith.constant 80 : index
    %c0_4 = arith.constant 0 : index
    %10 = vector.load %arg1[%c80, %c0_4] : memref<96x32xf32, #tpu.memory_space<vmem>>, vector<1x32xf32>
    %c88 = arith.constant 88 : index
    %c0_5 = arith.constant 0 : index
    %11 = vector.load %arg1[%c88, %c0_5] : memref<96x32xf32, #tpu.memory_space<vmem>>, vector<1x32xf32>
    %cst_6 = arith.constant dense<0.000000e+00> : vector<16xf32>
    %12 = vector.multi_reduction <add>, %9, %cst_6 [1] : vector<16x32xf32> to vector<16xf32>
    %13 = vector.shape_cast %12 : vector<16xf32> to vector<16x1xf32>
    %cst_7 = arith.constant 3.200000e+01 : f32
    %14 = vector.broadcast %cst_7 : f32 to vector<16x1xf32>
    %15 = arith.divf %13, %14 : vector<16x1xf32>
    %16 = vector.broadcast %15 : vector<16x1xf32> to vector<16x32xf32>
    %17 = arith.subf %9, %16 : vector<16x32xf32>
    %18 = arith.mulf %17, %17 : vector<16x32xf32>
    %cst_8 = arith.constant dense<0.000000e+00> : vector<16xf32>
    %19 = vector.multi_reduction <add>, %18, %cst_8 [1] : vector<16x32xf32> to vector<16xf32>
    %20 = vector.shape_cast %19 : vector<16xf32> to vector<16x1xf32>
    %cst_9 = arith.constant 3.200000e+01 : f32
    %21 = vector.broadcast %cst_9 : f32 to vector<16x1xf32>
    %22 = arith.divf %20, %21 : vector<16x1xf32>
    %23 = vector.broadcast %15 : vector<16x1xf32> to vector<16x32xf32>
    %24 = arith.subf %9, %23 : vector<16x32xf32>
    %cst_10 = arith.constant 9.99999996E-13 : f32
    %25 = vector.broadcast %cst_10 : f32 to vector<16x1xf32>
    %26 = arith.addf %22, %25 : vector<16x1xf32>
    %27 = math.rsqrt %26 : vector<16x1xf32>
    %28 = vector.broadcast %27 : vector<16x1xf32> to vector<16x32xf32>
    %29 = arith.mulf %24, %28 : vector<16x32xf32>
    %30 = vector.broadcast %10 : vector<1x32xf32> to vector<16x32xf32>
    %31 = arith.mulf %29, %30 : vector<16x32xf32>
    %32 = vector.broadcast %11 : vector<1x32xf32> to vector<16x32xf32>
    %33 = arith.addf %31, %32 : vector<16x32xf32>
    %c0_11 = arith.constant 0 : index
    %c0_12 = arith.constant 0 : index
    %c0_13 = arith.constant 0 : index
    %34 = vector.load %arg2[%c0_11, %c0_12, %c0_13] : memref<2x160x96xf32, #tpu.memory_space<vmem>>, vector<1x32x96xf32>
    %35 = vector.shape_cast %34 : vector<1x32x96xf32> to vector<32x96xf32>
    %cst_14 = arith.constant dense<0.000000e+00> : vector<16x96xf32>
    %36 = tpu.matmul %33, %35, %cst_14 {dimension_numbers = #tpu.dot_dimension_numbers<[1], [0], [0], [1], [0, 0, 1, 1], [], []>} : vector<16x32xf32>, vector<32x96xf32>, vector<16x96xf32> -> vector<16x96xf32>
    %c0_15 = arith.constant 0 : index
    %c0_16 = arith.constant 0 : index
    %c0_17 = arith.constant 0 : index
    %37 = vector.load %arg3[%c0_15, %c0_16, %c0_17] : memref<2x8x96xf32, #tpu.memory_space<vmem>>, vector<1x1x96xf32>
    %38 = vector.shape_cast %37 : vector<1x1x96xf32> to vector<1x96xf32>
    %39 = vector.broadcast %38 : vector<1x96xf32> to vector<16x96xf32>
    %40 = arith.addf %36, %39 : vector<16x96xf32>
    %41 = vector.extract_strided_slice %40 {offsets = [0, 0], sizes = [16, 32], strides = [1, 1]} : vector<16x96xf32> to vector<16x32xf32>
    %42 = vector.shape_cast %41 : vector<16x32xf32> to vector<2x8x32xf32>
    %43 = vector.extract_strided_slice %40 {offsets = [0, 32], sizes = [16, 32], strides = [1, 1]} : vector<16x96xf32> to vector<16x32xf32>
    %44 = vector.shape_cast %43 : vector<16x32xf32> to vector<2x8x32xf32>
    %45 = vector.extract_strided_slice %40 {offsets = [0, 64], sizes = [16, 32], strides = [1, 1]} : vector<16x96xf32> to vector<16x32xf32>
    %46 = vector.shape_cast %45 : vector<16x32xf32> to vector<2x8x32xf32>
    %47 = vector.extract_strided_slice %42 {offsets = [0, 0, 0], sizes = [2, 8, 16], strides = [1, 1, 1]} : vector<2x8x32xf32> to vector<2x8x16xf32>
    %48 = vector.extract_strided_slice %44 {offsets = [0, 0, 0], sizes = [2, 8, 16], strides = [1, 1, 1]} : vector<2x8x32xf32> to vector<2x8x16xf32>
    %49 = vector.extract_strided_slice %46 {offsets = [0, 0, 0], sizes = [2, 8, 16], strides = [1, 1, 1]} : vector<2x8x32xf32> to vector<2x8x16xf32>
    "tpu.trace_start"() <{level = 10 : i32, message = "bqd,bkd->bqk"}> : () -> ()
    %cst_18 = arith.constant dense<0.000000e+00> : vector<2x8x8xf32>
    %50 = tpu.matmul %47, %48, %cst_18 {dimension_numbers = #tpu.dot_dimension_numbers<[2], [2], [1], [1], [0, 0, 0, 1, 1, 1], [0], [0]>} : vector<2x8x16xf32>, vector<2x8x16xf32>, vector<2x8x8xf32> -> vector<2x8x8xf32>
    "tpu.trace_stop"() : () -> ()
    %cst_19 = arith.constant 2.500000e-01 : f32
    %51 = vector.broadcast %cst_19 : f32 to vector<2x8x8xf32>
    %52 = arith.mulf %50, %51 : vector<2x8x8xf32>
    %cst_20 = arith.constant dense<0xFF800000> : vector<2x8xf32>
    %53 = vector.multi_reduction <maximumf>, %52, %cst_20 [2] : vector<2x8x8xf32> to vector<2x8xf32>
    %54 = vector.shape_cast %53 : vector<2x8xf32> to vector<2x8x1xf32>
    %55 = vector.broadcast %54 : vector<2x8x1xf32> to vector<2x8x8xf32>
    %56 = arith.subf %52, %55 : vector<2x8x8xf32>
    %57 = math.exp %56 : vector<2x8x8xf32>
    %cst_21 = arith.constant dense<0.000000e+00> : vector<2x8xf32>
    %58 = vector.multi_reduction <add>, %57, %cst_21 [2] : vector<2x8x8xf32> to vector<2x8xf32>
    %59 = vector.shape_cast %58 : vector<2x8xf32> to vector<2x8x1xf32>
    %60 = tpu.reciprocal %59 {approx = true} : vector<2x8x1xf32> -> vector<2x8x1xf32>
    %61 = vector.broadcast %60 : vector<2x8x1xf32> to vector<2x8x8xf32>
    %62 = arith.mulf %57, %61 : vector<2x8x8xf32>
    "tpu.trace_start"() <{level = 10 : i32, message = "bqk,bkd->bqd"}> : () -> ()
    %cst_22 = arith.constant dense<0.000000e+00> : vector<2x8x16xf32>
    %63 = tpu.matmul %62, %49, %cst_22 {dimension_numbers = #tpu.dot_dimension_numbers<[2], [1], [1], [2], [0, 0, 0, 1, 1, 2], [0], [0]>} : vector<2x8x8xf32>, vector<2x8x16xf32>, vector<2x8x16xf32> -> vector<2x8x16xf32>
    "tpu.trace_stop"() : () -> ()
    %c0_23 = arith.constant 0 : index
    %c32 = arith.constant 32 : index
    %c0_24 = arith.constant 0 : index
    %64 = vector.load %arg2[%c0_23, %c32, %c0_24] : memref<2x160x96xf32, #tpu.memory_space<vmem>>, vector<1x16x32xf32>
    %65 = vector.shape_cast %64 : vector<1x16x32xf32> to vector<16x32xf32>
    %66 = vector.shape_cast %63 : vector<2x8x16xf32> to vector<16x16xf32>
    %cst_25 = arith.constant dense<0.000000e+00> : vector<16x32xf32>
    %67 = tpu.matmul %66, %65, %cst_25 {dimension_numbers = #tpu.dot_dimension_numbers<[1], [0], [0], [1], [0, 0, 1, 1], [], []>} : vector<16x16xf32>, vector<16x32xf32>, vector<16x32xf32> -> vector<16x32xf32>
    %68 = vector.extract_strided_slice %42 {offsets = [0, 0, 16], sizes = [2, 8, 16], strides = [1, 1, 1]} : vector<2x8x32xf32> to vector<2x8x16xf32>
    %69 = vector.extract_strided_slice %44 {offsets = [0, 0, 16], sizes = [2, 8, 16], strides = [1, 1, 1]} : vector<2x8x32xf32> to vector<2x8x16xf32>
    %70 = vector.extract_strided_slice %46 {offsets = [0, 0, 16], sizes = [2, 8, 16], strides = [1, 1, 1]} : vector<2x8x32xf32> to vector<2x8x16xf32>
    "tpu.trace_start"() <{level = 10 : i32, message = "bqd,bkd->bqk"}> : () -> ()
    %cst_26 = arith.constant dense<0.000000e+00> : vector<2x8x8xf32>
    %71 = tpu.matmul %68, %69, %cst_26 {dimension_numbers = #tpu.dot_dimension_numbers<[2], [2], [1], [1], [0, 0, 0, 1, 1, 1], [0], [0]>} : vector<2x8x16xf32>, vector<2x8x16xf32>, vector<2x8x8xf32> -> vector<2x8x8xf32>
    "tpu.trace_stop"() : () -> ()
    %cst_27 = arith.constant 2.500000e-01 : f32
    %72 = vector.broadcast %cst_27 : f32 to vector<2x8x8xf32>
    %73 = arith.mulf %71, %72 : vector<2x8x8xf32>
    %cst_28 = arith.constant dense<0xFF800000> : vector<2x8xf32>
    %74 = vector.multi_reduction <maximumf>, %73, %cst_28 [2] : vector<2x8x8xf32> to vector<2x8xf32>
    %75 = vector.shape_cast %74 : vector<2x8xf32> to vector<2x8x1xf32>
    %76 = vector.broadcast %75 : vector<2x8x1xf32> to vector<2x8x8xf32>
    %77 = arith.subf %73, %76 : vector<2x8x8xf32>
    %78 = math.exp %77 : vector<2x8x8xf32>
    %cst_29 = arith.constant dense<0.000000e+00> : vector<2x8xf32>
    %79 = vector.multi_reduction <add>, %78, %cst_29 [2] : vector<2x8x8xf32> to vector<2x8xf32>
    %80 = vector.shape_cast %79 : vector<2x8xf32> to vector<2x8x1xf32>
    %81 = tpu.reciprocal %80 {approx = true} : vector<2x8x1xf32> -> vector<2x8x1xf32>
    %82 = vector.broadcast %81 : vector<2x8x1xf32> to vector<2x8x8xf32>
    %83 = arith.mulf %78, %82 : vector<2x8x8xf32>
    "tpu.trace_start"() <{level = 10 : i32, message = "bqk,bkd->bqd"}> : () -> ()
    %cst_30 = arith.constant dense<0.000000e+00> : vector<2x8x16xf32>
    %84 = tpu.matmul %83, %70, %cst_30 {dimension_numbers = #tpu.dot_dimension_numbers<[2], [1], [1], [2], [0, 0, 0, 1, 1, 2], [0], [0]>} : vector<2x8x8xf32>, vector<2x8x16xf32>, vector<2x8x16xf32> -> vector<2x8x16xf32>
    "tpu.trace_stop"() : () -> ()
    %c0_31 = arith.constant 0 : index
    %c48 = arith.constant 48 : index
    %c0_32 = arith.constant 0 : index
    %85 = vector.load %arg2[%c0_31, %c48, %c0_32] : memref<2x160x96xf32, #tpu.memory_space<vmem>>, vector<1x16x32xf32>
    %86 = vector.shape_cast %85 : vector<1x16x32xf32> to vector<16x32xf32>
    %87 = vector.shape_cast %84 : vector<2x8x16xf32> to vector<16x16xf32>
    %cst_33 = arith.constant dense<0.000000e+00> : vector<16x32xf32>
    %88 = tpu.matmul %87, %86, %cst_33 {dimension_numbers = #tpu.dot_dimension_numbers<[1], [0], [0], [1], [0, 0, 1, 1], [], []>} : vector<16x16xf32>, vector<16x32xf32>, vector<16x32xf32> -> vector<16x32xf32>
    %89 = arith.addf %67, %88 : vector<16x32xf32>
    %c0_34 = arith.constant 0 : index
    %c1 = arith.constant 1 : index
    %c0_35 = arith.constant 0 : index
    %90 = vector.load %arg3[%c0_34, %c1, %c0_35] : memref<2x8x96xf32, #tpu.memory_space<vmem>>, vector<1x1x32xf32>
    %91 = vector.shape_cast %90 : vector<1x1x32xf32> to vector<1x32xf32>
    %92 = vector.broadcast %91 : vector<1x32xf32> to vector<16x32xf32>
    %93 = arith.addf %89, %92 : vector<16x32xf32>
    %94 = arith.addf %33, %93 : vector<16x32xf32>
    %c0_36 = arith.constant 0 : index
    %c2 = arith.constant 2 : index
    %c0_37 = arith.constant 0 : index
    %95 = vector.load %arg3[%c0_36, %c2, %c0_37] : memref<2x8x96xf32, #tpu.memory_space<vmem>>, vector<1x1x32xf32>
    %96 = vector.shape_cast %95 : vector<1x1x32xf32> to vector<1x32xf32>
    %c0_38 = arith.constant 0 : index
    %c3 = arith.constant 3 : index
    %c0_39 = arith.constant 0 : index
    %97 = vector.load %arg3[%c0_38, %c3, %c0_39] : memref<2x8x96xf32, #tpu.memory_space<vmem>>, vector<1x1x32xf32>
    %98 = vector.shape_cast %97 : vector<1x1x32xf32> to vector<1x32xf32>
    %cst_40 = arith.constant dense<0.000000e+00> : vector<16xf32>
    %99 = vector.multi_reduction <add>, %94, %cst_40 [1] : vector<16x32xf32> to vector<16xf32>
    %100 = vector.shape_cast %99 : vector<16xf32> to vector<16x1xf32>
    %cst_41 = arith.constant 3.200000e+01 : f32
    %101 = vector.broadcast %cst_41 : f32 to vector<16x1xf32>
    %102 = arith.divf %100, %101 : vector<16x1xf32>
    %103 = vector.broadcast %102 : vector<16x1xf32> to vector<16x32xf32>
    %104 = arith.subf %94, %103 : vector<16x32xf32>
    %105 = arith.mulf %104, %104 : vector<16x32xf32>
    %cst_42 = arith.constant dense<0.000000e+00> : vector<16xf32>
    %106 = vector.multi_reduction <add>, %105, %cst_42 [1] : vector<16x32xf32> to vector<16xf32>
    %107 = vector.shape_cast %106 : vector<16xf32> to vector<16x1xf32>
    %cst_43 = arith.constant 3.200000e+01 : f32
    %108 = vector.broadcast %cst_43 : f32 to vector<16x1xf32>
    %109 = arith.divf %107, %108 : vector<16x1xf32>
    %110 = vector.broadcast %102 : vector<16x1xf32> to vector<16x32xf32>
    %111 = arith.subf %94, %110 : vector<16x32xf32>
    %cst_44 = arith.constant 9.99999996E-13 : f32
    %112 = vector.broadcast %cst_44 : f32 to vector<16x1xf32>
    %113 = arith.addf %109, %112 : vector<16x1xf32>
    %114 = math.rsqrt %113 : vector<16x1xf32>
    %115 = vector.broadcast %114 : vector<16x1xf32> to vector<16x32xf32>
    %116 = arith.mulf %111, %115 : vector<16x32xf32>
    %117 = vector.broadcast %96 : vector<1x32xf32> to vector<16x32xf32>
    %118 = arith.mulf %116, %117 : vector<16x32xf32>
    %119 = vector.broadcast %98 : vector<1x32xf32> to vector<16x32xf32>
    %120 = arith.addf %118, %119 : vector<16x32xf32>
    %c0_45 = arith.constant 0 : index
    %c64_46 = arith.constant 64 : index
    %c0_47 = arith.constant 0 : index
    %121 = vector.load %arg2[%c0_45, %c64_46, %c0_47] : memref<2x160x96xf32, #tpu.memory_space<vmem>>, vector<1x32x64xf32>
    %122 = vector.shape_cast %121 : vector<1x32x64xf32> to vector<32x64xf32>
    %cst_48 = arith.constant dense<0.000000e+00> : vector<16x64xf32>
    %123 = tpu.matmul %120, %122, %cst_48 {dimension_numbers = #tpu.dot_dimension_numbers<[1], [0], [0], [1], [0, 0, 1, 1], [], []>} : vector<16x32xf32>, vector<32x64xf32>, vector<16x64xf32> -> vector<16x64xf32>
    %c0_49 = arith.constant 0 : index
    %c4 = arith.constant 4 : index
    %c0_50 = arith.constant 0 : index
    %124 = vector.load %arg3[%c0_49, %c4, %c0_50] : memref<2x8x96xf32, #tpu.memory_space<vmem>>, vector<1x1x64xf32>
    %125 = vector.shape_cast %124 : vector<1x1x64xf32> to vector<1x64xf32>
    %126 = vector.broadcast %125 : vector<1x64xf32> to vector<16x64xf32>
    %127 = arith.addf %123, %126 : vector<16x64xf32>
    %cst_51 = arith.constant 5.000000e-01 : f32
    %128 = vector.broadcast %cst_51 : f32 to vector<16x64xf32>
    %129 = arith.mulf %128, %127 : vector<16x64xf32>
    %cst_52 = arith.constant 4.471500e-02 : f32
    %130 = vector.broadcast %cst_52 : f32 to vector<16x64xf32>
    %131 = arith.mulf %130, %127 : vector<16x64xf32>
    %132 = arith.mulf %131, %127 : vector<16x64xf32>
    %133 = arith.mulf %132, %127 : vector<16x64xf32>
    %134 = arith.addf %127, %133 : vector<16x64xf32>
    %cst_53 = arith.constant 0.797884583 : f32
    %135 = vector.broadcast %cst_53 : f32 to vector<16x64xf32>
    %136 = arith.mulf %135, %134 : vector<16x64xf32>
    %137 = math.tanh %136 : vector<16x64xf32>
    %cst_54 = arith.constant 1.000000e+00 : f32
    %138 = vector.broadcast %cst_54 : f32 to vector<16x64xf32>
    %139 = arith.addf %138, %137 : vector<16x64xf32>
    %140 = arith.mulf %129, %139 : vector<16x64xf32>
    %c0_55 = arith.constant 0 : index
    %c96 = arith.constant 96 : index
    %c0_56 = arith.constant 0 : index
    %141 = vector.load %arg2[%c0_55, %c96, %c0_56] : memref<2x160x96xf32, #tpu.memory_space<vmem>>, vector<1x64x32xf32>
    %142 = vector.shape_cast %141 : vector<1x64x32xf32> to vector<64x32xf32>
    %cst_57 = arith.constant dense<0.000000e+00> : vector<16x32xf32>
    %143 = tpu.matmul %140, %142, %cst_57 {dimension_numbers = #tpu.dot_dimension_numbers<[1], [0], [0], [1], [0, 0, 1, 1], [], []>} : vector<16x64xf32>, vector<64x32xf32>, vector<16x32xf32> -> vector<16x32xf32>
    %c0_58 = arith.constant 0 : index
    %c5 = arith.constant 5 : index
    %c0_59 = arith.constant 0 : index
    %144 = vector.load %arg3[%c0_58, %c5, %c0_59] : memref<2x8x96xf32, #tpu.memory_space<vmem>>, vector<1x1x32xf32>
    %145 = vector.shape_cast %144 : vector<1x1x32xf32> to vector<1x32xf32>
    %146 = vector.broadcast %145 : vector<1x32xf32> to vector<16x32xf32>
    %147 = arith.addf %143, %146 : vector<16x32xf32>
    %148 = arith.addf %120, %147 : vector<16x32xf32>
    %c0_60 = arith.constant 0 : index
    %c6 = arith.constant 6 : index
    %c0_61 = arith.constant 0 : index
    %149 = vector.load %arg3[%c0_60, %c6, %c0_61] : memref<2x8x96xf32, #tpu.memory_space<vmem>>, vector<1x1x32xf32>
    %150 = vector.shape_cast %149 : vector<1x1x32xf32> to vector<1x32xf32>
    %c0_62 = arith.constant 0 : index
    %c7 = arith.constant 7 : index
    %c0_63 = arith.constant 0 : index
    %151 = vector.load %arg3[%c0_62, %c7, %c0_63] : memref<2x8x96xf32, #tpu.memory_space<vmem>>, vector<1x1x32xf32>
    %152 = vector.shape_cast %151 : vector<1x1x32xf32> to vector<1x32xf32>
    %cst_64 = arith.constant dense<0.000000e+00> : vector<16xf32>
    %153 = vector.multi_reduction <add>, %148, %cst_64 [1] : vector<16x32xf32> to vector<16xf32>
    %154 = vector.shape_cast %153 : vector<16xf32> to vector<16x1xf32>
    %cst_65 = arith.constant 3.200000e+01 : f32
    %155 = vector.broadcast %cst_65 : f32 to vector<16x1xf32>
    %156 = arith.divf %154, %155 : vector<16x1xf32>
    %157 = vector.broadcast %156 : vector<16x1xf32> to vector<16x32xf32>
    %158 = arith.subf %148, %157 : vector<16x32xf32>
    %159 = arith.mulf %158, %158 : vector<16x32xf32>
    %cst_66 = arith.constant dense<0.000000e+00> : vector<16xf32>
    %160 = vector.multi_reduction <add>, %159, %cst_66 [1] : vector<16x32xf32> to vector<16xf32>
    %161 = vector.shape_cast %160 : vector<16xf32> to vector<16x1xf32>
    %cst_67 = arith.constant 3.200000e+01 : f32
    %162 = vector.broadcast %cst_67 : f32 to vector<16x1xf32>
    %163 = arith.divf %161, %162 : vector<16x1xf32>
    %164 = vector.broadcast %156 : vector<16x1xf32> to vector<16x32xf32>
    %165 = arith.subf %148, %164 : vector<16x32xf32>
    %cst_68 = arith.constant 9.99999996E-13 : f32
    %166 = vector.broadcast %cst_68 : f32 to vector<16x1xf32>
    %167 = arith.addf %163, %166 : vector<16x1xf32>
    %168 = math.rsqrt %167 : vector<16x1xf32>
    %169 = vector.broadcast %168 : vector<16x1xf32> to vector<16x32xf32>
    %170 = arith.mulf %165, %169 : vector<16x32xf32>
    %171 = vector.broadcast %150 : vector<1x32xf32> to vector<16x32xf32>
    %172 = arith.mulf %170, %171 : vector<16x32xf32>
    %173 = vector.broadcast %152 : vector<1x32xf32> to vector<16x32xf32>
    %174 = arith.addf %172, %173 : vector<16x32xf32>
    %c1_69 = arith.constant 1 : index
    %c0_70 = arith.constant 0 : index
    %c0_71 = arith.constant 0 : index
    %175 = vector.load %arg2[%c1_69, %c0_70, %c0_71] : memref<2x160x96xf32, #tpu.memory_space<vmem>>, vector<1x32x96xf32>
    %176 = vector.shape_cast %175 : vector<1x32x96xf32> to vector<32x96xf32>
    %cst_72 = arith.constant dense<0.000000e+00> : vector<16x96xf32>
    %177 = tpu.matmul %174, %176, %cst_72 {dimension_numbers = #tpu.dot_dimension_numbers<[1], [0], [0], [1], [0, 0, 1, 1], [], []>} : vector<16x32xf32>, vector<32x96xf32>, vector<16x96xf32> -> vector<16x96xf32>
    %c1_73 = arith.constant 1 : index
    %c0_74 = arith.constant 0 : index
    %c0_75 = arith.constant 0 : index
    %178 = vector.load %arg3[%c1_73, %c0_74, %c0_75] : memref<2x8x96xf32, #tpu.memory_space<vmem>>, vector<1x1x96xf32>
    %179 = vector.shape_cast %178 : vector<1x1x96xf32> to vector<1x96xf32>
    %180 = vector.broadcast %179 : vector<1x96xf32> to vector<16x96xf32>
    %181 = arith.addf %177, %180 : vector<16x96xf32>
    %182 = vector.extract_strided_slice %181 {offsets = [0, 0], sizes = [16, 32], strides = [1, 1]} : vector<16x96xf32> to vector<16x32xf32>
    %183 = vector.shape_cast %182 : vector<16x32xf32> to vector<2x8x32xf32>
    %184 = vector.extract_strided_slice %181 {offsets = [0, 32], sizes = [16, 32], strides = [1, 1]} : vector<16x96xf32> to vector<16x32xf32>
    %185 = vector.shape_cast %184 : vector<16x32xf32> to vector<2x8x32xf32>
    %186 = vector.extract_strided_slice %181 {offsets = [0, 64], sizes = [16, 32], strides = [1, 1]} : vector<16x96xf32> to vector<16x32xf32>
    %187 = vector.shape_cast %186 : vector<16x32xf32> to vector<2x8x32xf32>
    %188 = vector.extract_strided_slice %183 {offsets = [0, 0, 0], sizes = [2, 8, 16], strides = [1, 1, 1]} : vector<2x8x32xf32> to vector<2x8x16xf32>
    %189 = vector.extract_strided_slice %185 {offsets = [0, 0, 0], sizes = [2, 8, 16], strides = [1, 1, 1]} : vector<2x8x32xf32> to vector<2x8x16xf32>
    %190 = vector.extract_strided_slice %187 {offsets = [0, 0, 0], sizes = [2, 8, 16], strides = [1, 1, 1]} : vector<2x8x32xf32> to vector<2x8x16xf32>
    "tpu.trace_start"() <{level = 10 : i32, message = "bqd,bkd->bqk"}> : () -> ()
    %cst_76 = arith.constant dense<0.000000e+00> : vector<2x8x8xf32>
    %191 = tpu.matmul %188, %189, %cst_76 {dimension_numbers = #tpu.dot_dimension_numbers<[2], [2], [1], [1], [0, 0, 0, 1, 1, 1], [0], [0]>} : vector<2x8x16xf32>, vector<2x8x16xf32>, vector<2x8x8xf32> -> vector<2x8x8xf32>
    "tpu.trace_stop"() : () -> ()
    %cst_77 = arith.constant 2.500000e-01 : f32
    %192 = vector.broadcast %cst_77 : f32 to vector<2x8x8xf32>
    %193 = arith.mulf %191, %192 : vector<2x8x8xf32>
    %cst_78 = arith.constant dense<0xFF800000> : vector<2x8xf32>
    %194 = vector.multi_reduction <maximumf>, %193, %cst_78 [2] : vector<2x8x8xf32> to vector<2x8xf32>
    %195 = vector.shape_cast %194 : vector<2x8xf32> to vector<2x8x1xf32>
    %196 = vector.broadcast %195 : vector<2x8x1xf32> to vector<2x8x8xf32>
    %197 = arith.subf %193, %196 : vector<2x8x8xf32>
    %198 = math.exp %197 : vector<2x8x8xf32>
    %cst_79 = arith.constant dense<0.000000e+00> : vector<2x8xf32>
    %199 = vector.multi_reduction <add>, %198, %cst_79 [2] : vector<2x8x8xf32> to vector<2x8xf32>
    %200 = vector.shape_cast %199 : vector<2x8xf32> to vector<2x8x1xf32>
    %201 = tpu.reciprocal %200 {approx = true} : vector<2x8x1xf32> -> vector<2x8x1xf32>
    %202 = vector.broadcast %201 : vector<2x8x1xf32> to vector<2x8x8xf32>
    %203 = arith.mulf %198, %202 : vector<2x8x8xf32>
    "tpu.trace_start"() <{level = 10 : i32, message = "bqk,bkd->bqd"}> : () -> ()
    %cst_80 = arith.constant dense<0.000000e+00> : vector<2x8x16xf32>
    %204 = tpu.matmul %203, %190, %cst_80 {dimension_numbers = #tpu.dot_dimension_numbers<[2], [1], [1], [2], [0, 0, 0, 1, 1, 2], [0], [0]>} : vector<2x8x8xf32>, vector<2x8x16xf32>, vector<2x8x16xf32> -> vector<2x8x16xf32>
    "tpu.trace_stop"() : () -> ()
    %c1_81 = arith.constant 1 : index
    %c32_82 = arith.constant 32 : index
    %c0_83 = arith.constant 0 : index
    %205 = vector.load %arg2[%c1_81, %c32_82, %c0_83] : memref<2x160x96xf32, #tpu.memory_space<vmem>>, vector<1x16x32xf32>
    %206 = vector.shape_cast %205 : vector<1x16x32xf32> to vector<16x32xf32>
    %207 = vector.shape_cast %204 : vector<2x8x16xf32> to vector<16x16xf32>
    %cst_84 = arith.constant dense<0.000000e+00> : vector<16x32xf32>
    %208 = tpu.matmul %207, %206, %cst_84 {dimension_numbers = #tpu.dot_dimension_numbers<[1], [0], [0], [1], [0, 0, 1, 1], [], []>} : vector<16x16xf32>, vector<16x32xf32>, vector<16x32xf32> -> vector<16x32xf32>
    %209 = vector.extract_strided_slice %183 {offsets = [0, 0, 16], sizes = [2, 8, 16], strides = [1, 1, 1]} : vector<2x8x32xf32> to vector<2x8x16xf32>
    %210 = vector.extract_strided_slice %185 {offsets = [0, 0, 16], sizes = [2, 8, 16], strides = [1, 1, 1]} : vector<2x8x32xf32> to vector<2x8x16xf32>
    %211 = vector.extract_strided_slice %187 {offsets = [0, 0, 16], sizes = [2, 8, 16], strides = [1, 1, 1]} : vector<2x8x32xf32> to vector<2x8x16xf32>
    "tpu.trace_start"() <{level = 10 : i32, message = "bqd,bkd->bqk"}> : () -> ()
    %cst_85 = arith.constant dense<0.000000e+00> : vector<2x8x8xf32>
    %212 = tpu.matmul %209, %210, %cst_85 {dimension_numbers = #tpu.dot_dimension_numbers<[2], [2], [1], [1], [0, 0, 0, 1, 1, 1], [0], [0]>} : vector<2x8x16xf32>, vector<2x8x16xf32>, vector<2x8x8xf32> -> vector<2x8x8xf32>
    "tpu.trace_stop"() : () -> ()
    %cst_86 = arith.constant 2.500000e-01 : f32
    %213 = vector.broadcast %cst_86 : f32 to vector<2x8x8xf32>
    %214 = arith.mulf %212, %213 : vector<2x8x8xf32>
    %cst_87 = arith.constant dense<0xFF800000> : vector<2x8xf32>
    %215 = vector.multi_reduction <maximumf>, %214, %cst_87 [2] : vector<2x8x8xf32> to vector<2x8xf32>
    %216 = vector.shape_cast %215 : vector<2x8xf32> to vector<2x8x1xf32>
    %217 = vector.broadcast %216 : vector<2x8x1xf32> to vector<2x8x8xf32>
    %218 = arith.subf %214, %217 : vector<2x8x8xf32>
    %219 = math.exp %218 : vector<2x8x8xf32>
    %cst_88 = arith.constant dense<0.000000e+00> : vector<2x8xf32>
    %220 = vector.multi_reduction <add>, %219, %cst_88 [2] : vector<2x8x8xf32> to vector<2x8xf32>
    %221 = vector.shape_cast %220 : vector<2x8xf32> to vector<2x8x1xf32>
    %222 = tpu.reciprocal %221 {approx = true} : vector<2x8x1xf32> -> vector<2x8x1xf32>
    %223 = vector.broadcast %222 : vector<2x8x1xf32> to vector<2x8x8xf32>
    %224 = arith.mulf %219, %223 : vector<2x8x8xf32>
    "tpu.trace_start"() <{level = 10 : i32, message = "bqk,bkd->bqd"}> : () -> ()
    %cst_89 = arith.constant dense<0.000000e+00> : vector<2x8x16xf32>
    %225 = tpu.matmul %224, %211, %cst_89 {dimension_numbers = #tpu.dot_dimension_numbers<[2], [1], [1], [2], [0, 0, 0, 1, 1, 2], [0], [0]>} : vector<2x8x8xf32>, vector<2x8x16xf32>, vector<2x8x16xf32> -> vector<2x8x16xf32>
    "tpu.trace_stop"() : () -> ()
    %c1_90 = arith.constant 1 : index
    %c48_91 = arith.constant 48 : index
    %c0_92 = arith.constant 0 : index
    %226 = vector.load %arg2[%c1_90, %c48_91, %c0_92] : memref<2x160x96xf32, #tpu.memory_space<vmem>>, vector<1x16x32xf32>
    %227 = vector.shape_cast %226 : vector<1x16x32xf32> to vector<16x32xf32>
    %228 = vector.shape_cast %225 : vector<2x8x16xf32> to vector<16x16xf32>
    %cst_93 = arith.constant dense<0.000000e+00> : vector<16x32xf32>
    %229 = tpu.matmul %228, %227, %cst_93 {dimension_numbers = #tpu.dot_dimension_numbers<[1], [0], [0], [1], [0, 0, 1, 1], [], []>} : vector<16x16xf32>, vector<16x32xf32>, vector<16x32xf32> -> vector<16x32xf32>
    %230 = arith.addf %208, %229 : vector<16x32xf32>
    %c1_94 = arith.constant 1 : index
    %c1_95 = arith.constant 1 : index
    %c0_96 = arith.constant 0 : index
    %231 = vector.load %arg3[%c1_94, %c1_95, %c0_96] : memref<2x8x96xf32, #tpu.memory_space<vmem>>, vector<1x1x32xf32>
    %232 = vector.shape_cast %231 : vector<1x1x32xf32> to vector<1x32xf32>
    %233 = vector.broadcast %232 : vector<1x32xf32> to vector<16x32xf32>
    %234 = arith.addf %230, %233 : vector<16x32xf32>
    %235 = arith.addf %174, %234 : vector<16x32xf32>
    %c1_97 = arith.constant 1 : index
    %c2_98 = arith.constant 2 : index
    %c0_99 = arith.constant 0 : index
    %236 = vector.load %arg3[%c1_97, %c2_98, %c0_99] : memref<2x8x96xf32, #tpu.memory_space<vmem>>, vector<1x1x32xf32>
    %237 = vector.shape_cast %236 : vector<1x1x32xf32> to vector<1x32xf32>
    %c1_100 = arith.constant 1 : index
    %c3_101 = arith.constant 3 : index
    %c0_102 = arith.constant 0 : index
    %238 = vector.load %arg3[%c1_100, %c3_101, %c0_102] : memref<2x8x96xf32, #tpu.memory_space<vmem>>, vector<1x1x32xf32>
    %239 = vector.shape_cast %238 : vector<1x1x32xf32> to vector<1x32xf32>
    %cst_103 = arith.constant dense<0.000000e+00> : vector<16xf32>
    %240 = vector.multi_reduction <add>, %235, %cst_103 [1] : vector<16x32xf32> to vector<16xf32>
    %241 = vector.shape_cast %240 : vector<16xf32> to vector<16x1xf32>
    %cst_104 = arith.constant 3.200000e+01 : f32
    %242 = vector.broadcast %cst_104 : f32 to vector<16x1xf32>
    %243 = arith.divf %241, %242 : vector<16x1xf32>
    %244 = vector.broadcast %243 : vector<16x1xf32> to vector<16x32xf32>
    %245 = arith.subf %235, %244 : vector<16x32xf32>
    %246 = arith.mulf %245, %245 : vector<16x32xf32>
    %cst_105 = arith.constant dense<0.000000e+00> : vector<16xf32>
    %247 = vector.multi_reduction <add>, %246, %cst_105 [1] : vector<16x32xf32> to vector<16xf32>
    %248 = vector.shape_cast %247 : vector<16xf32> to vector<16x1xf32>
    %cst_106 = arith.constant 3.200000e+01 : f32
    %249 = vector.broadcast %cst_106 : f32 to vector<16x1xf32>
    %250 = arith.divf %248, %249 : vector<16x1xf32>
    %251 = vector.broadcast %243 : vector<16x1xf32> to vector<16x32xf32>
    %252 = arith.subf %235, %251 : vector<16x32xf32>
    %cst_107 = arith.constant 9.99999996E-13 : f32
    %253 = vector.broadcast %cst_107 : f32 to vector<16x1xf32>
    %254 = arith.addf %250, %253 : vector<16x1xf32>
    %255 = math.rsqrt %254 : vector<16x1xf32>
    %256 = vector.broadcast %255 : vector<16x1xf32> to vector<16x32xf32>
    %257 = arith.mulf %252, %256 : vector<16x32xf32>
    %258 = vector.broadcast %237 : vector<1x32xf32> to vector<16x32xf32>
    %259 = arith.mulf %257, %258 : vector<16x32xf32>
    %260 = vector.broadcast %239 : vector<1x32xf32> to vector<16x32xf32>
    %261 = arith.addf %259, %260 : vector<16x32xf32>
    %c1_108 = arith.constant 1 : index
    %c64_109 = arith.constant 64 : index
    %c0_110 = arith.constant 0 : index
    %262 = vector.load %arg2[%c1_108, %c64_109, %c0_110] : memref<2x160x96xf32, #tpu.memory_space<vmem>>, vector<1x32x64xf32>
    %263 = vector.shape_cast %262 : vector<1x32x64xf32> to vector<32x64xf32>
    %cst_111 = arith.constant dense<0.000000e+00> : vector<16x64xf32>
    %264 = tpu.matmul %261, %263, %cst_111 {dimension_numbers = #tpu.dot_dimension_numbers<[1], [0], [0], [1], [0, 0, 1, 1], [], []>} : vector<16x32xf32>, vector<32x64xf32>, vector<16x64xf32> -> vector<16x64xf32>
    %c1_112 = arith.constant 1 : index
    %c4_113 = arith.constant 4 : index
    %c0_114 = arith.constant 0 : index
    %265 = vector.load %arg3[%c1_112, %c4_113, %c0_114] : memref<2x8x96xf32, #tpu.memory_space<vmem>>, vector<1x1x64xf32>
    %266 = vector.shape_cast %265 : vector<1x1x64xf32> to vector<1x64xf32>
    %267 = vector.broadcast %266 : vector<1x64xf32> to vector<16x64xf32>
    %268 = arith.addf %264, %267 : vector<16x64xf32>
    %cst_115 = arith.constant 5.000000e-01 : f32
    %269 = vector.broadcast %cst_115 : f32 to vector<16x64xf32>
    %270 = arith.mulf %269, %268 : vector<16x64xf32>
    %cst_116 = arith.constant 4.471500e-02 : f32
    %271 = vector.broadcast %cst_116 : f32 to vector<16x64xf32>
    %272 = arith.mulf %271, %268 : vector<16x64xf32>
    %273 = arith.mulf %272, %268 : vector<16x64xf32>
    %274 = arith.mulf %273, %268 : vector<16x64xf32>
    %275 = arith.addf %268, %274 : vector<16x64xf32>
    %cst_117 = arith.constant 0.797884583 : f32
    %276 = vector.broadcast %cst_117 : f32 to vector<16x64xf32>
    %277 = arith.mulf %276, %275 : vector<16x64xf32>
    %278 = math.tanh %277 : vector<16x64xf32>
    %cst_118 = arith.constant 1.000000e+00 : f32
    %279 = vector.broadcast %cst_118 : f32 to vector<16x64xf32>
    %280 = arith.addf %279, %278 : vector<16x64xf32>
    %281 = arith.mulf %270, %280 : vector<16x64xf32>
    %c1_119 = arith.constant 1 : index
    %c96_120 = arith.constant 96 : index
    %c0_121 = arith.constant 0 : index
    %282 = vector.load %arg2[%c1_119, %c96_120, %c0_121] : memref<2x160x96xf32, #tpu.memory_space<vmem>>, vector<1x64x32xf32>
    %283 = vector.shape_cast %282 : vector<1x64x32xf32> to vector<64x32xf32>
    %cst_122 = arith.constant dense<0.000000e+00> : vector<16x32xf32>
    %284 = tpu.matmul %281, %283, %cst_122 {dimension_numbers = #tpu.dot_dimension_numbers<[1], [0], [0], [1], [0, 0, 1, 1], [], []>} : vector<16x64xf32>, vector<64x32xf32>, vector<16x32xf32> -> vector<16x32xf32>
    %c1_123 = arith.constant 1 : index
    %c5_124 = arith.constant 5 : index
    %c0_125 = arith.constant 0 : index
    %285 = vector.load %arg3[%c1_123, %c5_124, %c0_125] : memref<2x8x96xf32, #tpu.memory_space<vmem>>, vector<1x1x32xf32>
    %286 = vector.shape_cast %285 : vector<1x1x32xf32> to vector<1x32xf32>
    %287 = vector.broadcast %286 : vector<1x32xf32> to vector<16x32xf32>
    %288 = arith.addf %284, %287 : vector<16x32xf32>
    %289 = arith.addf %261, %288 : vector<16x32xf32>
    %c1_126 = arith.constant 1 : index
    %c6_127 = arith.constant 6 : index
    %c0_128 = arith.constant 0 : index
    %290 = vector.load %arg3[%c1_126, %c6_127, %c0_128] : memref<2x8x96xf32, #tpu.memory_space<vmem>>, vector<1x1x32xf32>
    %291 = vector.shape_cast %290 : vector<1x1x32xf32> to vector<1x32xf32>
    %c1_129 = arith.constant 1 : index
    %c7_130 = arith.constant 7 : index
    %c0_131 = arith.constant 0 : index
    %292 = vector.load %arg3[%c1_129, %c7_130, %c0_131] : memref<2x8x96xf32, #tpu.memory_space<vmem>>, vector<1x1x32xf32>
    %293 = vector.shape_cast %292 : vector<1x1x32xf32> to vector<1x32xf32>
    %cst_132 = arith.constant dense<0.000000e+00> : vector<16xf32>
    %294 = vector.multi_reduction <add>, %289, %cst_132 [1] : vector<16x32xf32> to vector<16xf32>
    %295 = vector.shape_cast %294 : vector<16xf32> to vector<16x1xf32>
    %cst_133 = arith.constant 3.200000e+01 : f32
    %296 = vector.broadcast %cst_133 : f32 to vector<16x1xf32>
    %297 = arith.divf %295, %296 : vector<16x1xf32>
    %298 = vector.broadcast %297 : vector<16x1xf32> to vector<16x32xf32>
    %299 = arith.subf %289, %298 : vector<16x32xf32>
    %300 = arith.mulf %299, %299 : vector<16x32xf32>
    %cst_134 = arith.constant dense<0.000000e+00> : vector<16xf32>
    %301 = vector.multi_reduction <add>, %300, %cst_134 [1] : vector<16x32xf32> to vector<16xf32>
    %302 = vector.shape_cast %301 : vector<16xf32> to vector<16x1xf32>
    %cst_135 = arith.constant 3.200000e+01 : f32
    %303 = vector.broadcast %cst_135 : f32 to vector<16x1xf32>
    %304 = arith.divf %302, %303 : vector<16x1xf32>
    %305 = vector.broadcast %297 : vector<16x1xf32> to vector<16x32xf32>
    %306 = arith.subf %289, %305 : vector<16x32xf32>
    %cst_136 = arith.constant 9.99999996E-13 : f32
    %307 = vector.broadcast %cst_136 : f32 to vector<16x1xf32>
    %308 = arith.addf %304, %307 : vector<16x1xf32>
    %309 = math.rsqrt %308 : vector<16x1xf32>
    %310 = vector.broadcast %309 : vector<16x1xf32> to vector<16x32xf32>
    %311 = arith.mulf %306, %310 : vector<16x32xf32>
    %312 = vector.broadcast %291 : vector<1x32xf32> to vector<16x32xf32>
    %313 = arith.mulf %311, %312 : vector<16x32xf32>
    %314 = vector.broadcast %293 : vector<1x32xf32> to vector<16x32xf32>
    %315 = arith.addf %313, %314 : vector<16x32xf32>
    %316 = vector.shape_cast %315 : vector<16x32xf32> to vector<2x8x32xf32>
    %317 = vector.extract_strided_slice %316 {offsets = [0, 0, 0], sizes = [2, 1, 32], strides = [1, 1, 1]} : vector<2x8x32xf32> to vector<2x1x32xf32>
    %318 = vector.shape_cast %317 : vector<2x1x32xf32> to vector<2x32xf32>
    %c0_137 = arith.constant 0 : index
    %c0_138 = arith.constant 0 : index
    %319 = vector.load %arg4[%c0_137, %c0_138] : memref<80x32xf32, #tpu.memory_space<vmem>>, vector<32x32xf32>
    %cst_139 = arith.constant dense<0.000000e+00> : vector<2x32xf32>
    %320 = tpu.matmul %318, %319, %cst_139 {dimension_numbers = #tpu.dot_dimension_numbers<[1], [0], [0], [1], [0, 0, 1, 1], [], []>} : vector<2x32xf32>, vector<32x32xf32>, vector<2x32xf32> -> vector<2x32xf32>
    %c64_140 = arith.constant 64 : index
    %c0_141 = arith.constant 0 : index
    %321 = vector.load %arg4[%c64_140, %c0_141] : memref<80x32xf32, #tpu.memory_space<vmem>>, vector<1x32xf32>
    %322 = vector.broadcast %321 : vector<1x32xf32> to vector<2x32xf32>
    %323 = arith.addf %320, %322 : vector<2x32xf32>
    %324 = math.tanh %323 : vector<2x32xf32>
    %c32_142 = arith.constant 32 : index
    %c0_143 = arith.constant 0 : index
    %325 = vector.load %arg4[%c32_142, %c0_143] : memref<80x32xf32, #tpu.memory_space<vmem>>, vector<32x32xf32>
    %cst_144 = arith.constant dense<0.000000e+00> : vector<2x32xf32>
    %326 = tpu.matmul %324, %325, %cst_144 {dimension_numbers = #tpu.dot_dimension_numbers<[1], [0], [0], [1], [0, 0, 1, 1], [], []>} : vector<2x32xf32>, vector<32x32xf32>, vector<2x32xf32> -> vector<2x32xf32>
    %c72 = arith.constant 72 : index
    %c0_145 = arith.constant 0 : index
    %327 = vector.load %arg4[%c72, %c0_145] : memref<80x32xf32, #tpu.memory_space<vmem>>, vector<1x32xf32>
    %328 = vector.broadcast %327 : vector<1x32xf32> to vector<2x32xf32>
    %329 = arith.addf %326, %328 : vector<2x32xf32>
    %330 = vector.extract_strided_slice %329 {offsets = [0, 0], sizes = [2, 2], strides = [1, 1]} : vector<2x32xf32> to vector<2x2xf32>
    %c0_146 = arith.constant 0 : index
    %c0_147 = arith.constant 0 : index
    %331 = vector.load %arg5[%c0_146, %c0_147] : memref<2x2xf32, #tpu.memory_space<vmem>>, vector<2x2xf32>
    tpu.vector_store %arg5[%c0_146, %c0_147], %330 {strides = array<i32>} : memref<2x2xf32, #tpu.memory_space<vmem>>, vector<2x2xf32>,
    return
  }
}

</mosaic_0001>

<llo_original>
// kernel: wrapped_model_forward.1
$region0: #{wrapped_model_forward.1}
  #allocation0 [shape = 'u32[]', space=smem, size = 0x4, offset = 0x4, fixed_abs, tag = 'smem constant byte address 0x4 - core index']
  #allocation1 [shape = 'u32[144,128]{1,0:T(1,128)}', space=vmem, size = 0x12000, scoped, tag = 'internal scratch']
  %s0 = inlined_call_operand.vmem [shape: s32[16,1], index: 0, kind: input, shape index: {}]
  %s1 = inlined_call_operand.vmem [shape: f32[96,32], index: 1, kind: input, shape index: {}]
  %s2 = inlined_call_operand.hbm [shape: f32[2,160,96], index: 2, kind: input, shape index: {}]
  %s3 = inlined_call_operand.vmem [shape: f32[2,8,96], index: 3, kind: input, shape index: {}]
  %s4 = inlined_call_operand.vmem [shape: f32[80,32], index: 4, kind: input, shape index: {}]
  %s5 = inlined_call_operand.hbm [shape: f32[2,2], index: 5, kind: output, shape index: {}]
  %s6 = sld [smem:[#allocation0]]
  $region34: #{wrapped_model_forward.1} parent=0
    _
  %s8 = ssub.s32 1, %s6
  %s9 = scalar_select 0, %s8, %s6
  $region1: #{wrapped_model_forward.1} parent=0
    #allocation2 [shape = 'u8[163840]{0}', space=vmem, size = 0x28000, scoped, tag = 'input window, operand 2, single buffered']
    #allocation3 [shape = 's32[1]{0}', space=sflag, size = 0x4, scoped, tag = 'scoped memory for wrapped_model_forward.1']
    #allocation4 [shape = 's32[1]{0}', space=sflag, size = 0x4, scoped, tag = 'scoped memory for wrapped_model_forward.1']
    #allocation5 [shape = 'u8[1024]{0}', space=vmem, size = 0x400, scoped, tag = 'output window, operand 0, single buffered']
    %10 = vsyncpa [#allocation3], 0
    %11 = vsyncpa [#allocation4], 0
    // Predicated region
    $region2: #{wrapped_model_forward.1} parent=1 // pred_check
      _
    $region3: #{wrapped_model_forward.1} parent=1 // pred_check_branch
      %13 = sbr.rel (0) target = $region5
    $region4: #{wrapped_model_forward.1} parent=1 // pred_region
      _
    $region5: #{wrapped_model_forward.1} parent=1 // pred_fallthru
      _
    // Predicated region
    $region6: #{wrapped_model_forward.1} parent=1 // pred_check
      _
    $region7: #{wrapped_model_forward.1} parent=1 // pred_check_branch
      %15 = sbr.rel (0) target = $region9
    $region8: #{wrapped_model_forward.1} parent=1 // pred_region
      _
    $region9: #{wrapped_model_forward.1} parent=1 // pred_fallthru
      _
    // Predicated region
    $region10: #{wrapped_model_forward.1} parent=1 // pred_check
      _
    $region11: #{wrapped_model_forward.1} parent=1 // pred_check_branch
      %17 = sbr.rel (0) target = $region13
    $region12: #{wrapped_model_forward.1} parent=1 // pred_region
      %s19 = ssub.s32 5120, 5120
      %20 = vsyncadd [#allocation3], %s19
      %s21 = sshll.u32 [#allocation2], 4
      %s22 = int_to_ptr.vmem [resolvable:$true] %s21
      %27 = dma.hbm_to_vmem [thread:$0]  %s2, 5120, %s22, [#allocation3], 128, 128, 8
    $region13: #{wrapped_model_forward.1} parent=1 // pred_fallthru
      _
    // Predicated region
    $region14: #{wrapped_model_forward.1} parent=1 // pred_check
      _
    $region15: #{wrapped_model_forward.1} parent=1 // pred_check_branch
      %29 = sbr.rel (0) target = $region17
    $region16: #{wrapped_model_forward.1} parent=1 // pred_region
      _
    $region17: #{wrapped_model_forward.1} parent=1 // pred_fallthru
      _
    // Predicated region
    $region18: #{wrapped_model_forward.1} parent=1 // pred_check
      _
    $region19: #{wrapped_model_forward.1} parent=1 // pred_check_branch
      %31 = sbr.rel (0) target = $region21
    $region20: #{wrapped_model_forward.1} parent=1 // pred_region
      _
    $region21: #{wrapped_model_forward.1} parent=1 // pred_fallthru
      _
    // Predicated region
    $region22: #{wrapped_model_forward.1} parent=1 // pred_check
      _
    $region23: #{wrapped_model_forward.1} parent=1 // pred_check_branch
      %33 = sbr.rel (0) target = $region25
    $region24: #{wrapped_model_forward.1} parent=1 // pred_region
      %34 = dma.done [#allocation3], 5120
    $region25: #{wrapped_model_forward.1} parent=1 // pred_fallthru
      _
    %v35 = vld [vmem:[%s0] sm:$0xff]
    %v36 = vld [vmem:[%s0 + $0x8] sm:$0xff]
    %v37 = vlaneseq
    %v38 = vand.u32 %v37, 127
    %39 = vset.pattern.permute.xlu0 0
    %40 = vperm.xlu0 %39, %v35
    %v41 = vpop.permute.xlu0 %40
    %42 = vset.pattern.permute.xlu0 0
    %43 = vperm.xlu0 %42, %v36
    %v44 = vpop.permute.xlu0 %43
    %vm45 = vcmp.eq.s32.totalorder %v41, %v38
    %vm46 = vcmp.eq.s32.totalorder %v44, %v38
    %v47 = vsel %vm45, 1, 0
    %v48 = vsel %vm46, 1, 0
    %v49 = vcvt.s32.f32 %v47
    %v50 = vcvt.s32.f32 %v48
    %v51 = vld [vmem:[%s1] sm:$0xff]
    %v52 = vld [vmem:[%s1 + $0x8] sm:$0xff]
    %v53 = vld [vmem:[%s1 + $0x10] sm:$0xff]
    %v54 = vld [vmem:[%s1 + $0x18] sm:$0xff]
    %v55 = vld [vmem:[%s1 + $0x20] sm:$0xff]
    %v56 = vld [vmem:[%s1 + $0x28] sm:$0xff]
    %v57 = vld [vmem:[%s1 + $0x30] sm:$0xff]
    %v58 = vld [vmem:[%s1 + $0x38] sm:$0xff]
    %v59 = vld [vmem:[%s1 + $0x40] sm:$0xff]
    %v60 = vld [vmem:[%s1 + $0x48] sm:$0xff]
    %vm61 = vcmask 523264
    %v63 = vsel %vm61, %v49, 0
    %v66 = vsel %vm61, %v50, 0
    %68 = vmatprep.subr.mxu0 0.0
    %69 = vmatpush1.msra.mxu0 %v51
    %70 = vmatprep.subr.mxu0 0.0
    %71 = vmatpush1.msra.mxu0 %v52
    %72 = vmatprep.subr.mxu0 0.0
    %73 = vmatpush1.msra.mxu0 %v53
    %74 = vmatprep.subr.mxu0 0.0
    %75 = vmatpush1.msra.mxu0 %v54
    %76 = vmatprep.subr.mxu0 0.0
    %77 = vmatpush1.msra.mxu0 %v55
    %78 = vmatprep.subr.mxu0 0.0
    %79 = vmatpush1.msra.mxu0 %v56
    %80 = vmatprep.subr.mxu0 0.0
    %81 = vmatpush1.msra.mxu0 %v57
    %82 = vmatprep.subr.mxu0 0.0
    %83 = vmatpush1.msra.mxu0 %v58
    %84 = vmatprep.subr.mxu0 0.0
    %85 = vmatpush1.msra.mxu0 0.0
    %86 = vmatprep.subr.mxu0 0.0
    %87 = vmatpush1.msra.mxu0 0.0
    %88 = vmatprep.subr.mxu0 0.0
    %89 = vmatpush1.msra.mxu0 0.0
    %90 = vmatprep.subr.mxu0 0.0
    %91 = vmatpush1.msra.mxu0 0.0
    %92 = vmatprep.subr.mxu0 0.0
    %93 = vmatpush1.msra.mxu0 0.0
    %94 = vmatprep.subr.mxu0 0.0
    %95 = vmatpush1.msra.mxu0 0.0
    %96 = vmatprep.subr.mxu0 0.0
    %97 = vmatpush1.msra.mxu0 0.0
    %98 = vmatprep.subr.mxu0 0.0
    %99 = vmatpush1.msra.mxu0 0.0
    %100 = vmatprep.subr.mxu0 0.0
    %101 = vmatpush1.msra.mxu0 0.0
    %102 = vmatprep.subr.mxu0 0.0
    %103 = vmatpush1.msra.mxu0 0.0
    %104 = vmatprep.subr.mxu0 0.0
    %105 = vmatpush1.msra.mxu0 0.0
    %106 = vmatprep.subr.mxu0 0.0
    %107 = vmatpush1.msra.mxu0 0.0
    %108 = vmatprep.subr.mxu0 0.0
    %109 = vmatpush1.msra.mxu0 0.0
    %110 = vmatprep.subr.mxu0 0.0
    %111 = vmatpush1.msra.mxu0 0.0
    %112 = vmatprep.subr.mxu0 0.0
    %113 = vmatpush1.msra.mxu0 0.0
    %114 = vmatprep.subr.mxu0 0.0
    %115 = vmatpush1.msra.mxu0 0.0
    %116 = vmatprep.subr.mxu0 0.0
    %117 = vmatpush1.msra.mxu0 0.0
    %118 = vmatprep.subr.mxu0 0.0
    %119 = vmatpush1.msra.mxu0 0.0
    %120 = vmatprep.subr.mxu0 0.0
    %121 = vmatpush1.msra.mxu0 0.0
    %122 = vmatprep.subr.mxu0 0.0
    %123 = vmatpush1.msra.mxu0 0.0
    %124 = vmatprep.subr.mxu0 0.0
    %125 = vmatpush1.msra.mxu0 0.0
    %126 = vmatprep.subr.mxu0 0.0
    %127 = vmatpush1.msra.mxu0 0.0
    %128 = vmatprep.subr.mxu0 0.0
    %129 = vmatpush1.msra.mxu0 0.0
    %130 = vmatprep.subr.mxu0 0.0
    %131 = vmatpush1.msra.mxu0 0.0
    %132 = vmatprep.mubr.f32.mxu0 0.0
    %133 = vmatmul.mubr.f32.gmra.mrb[0].mxu0 %v63
    %v134 = vpop.f32.mrb[0].mxu0
    %v135 = vadd.f32 %v59, %v134
    %v136 = vpop.f32.mrb[0].mxu0
    %137 = vmatprep.mubr.f32.mxu0 0.0
    %138 = vmatmul.mubr.f32.gmra.mrb[0].mxu0 %v66
    %v139 = vpop.f32.mrb[0].mxu0
    %v140 = vadd.f32 %v60, %v139
    %v141 = vpop.f32.mrb[0].mxu0
    %142 = vdwg.mxu0
    %v143 = vld [vmem:[%s1 + $0x50] sm:$0x1]
    %v144 = vld [vmem:[%s1 + $0x58] sm:$0x1]
    %vm145 = vcmask 261120
    %v146 = vsel %vm145, %v135, 0.0
    %147 = vadd.xlane.f32.xlu0 %v146
    %v148 = vpop.xlane.xlu0 %147
    %v149 = vsel %vm145, %v140, 0.0
    %150 = vadd.xlane.f32.xlu0 %v149
    %v151 = vpop.xlane.xlu0 %150
    %v152 = vrcp.pop 32.0
    %v153 = vmul.f32 %v148, %v152
    %v154 = vmul.f32 %v151, %v152
    %v155 = vsub.f32 %v135, %v153
    %v156 = vsub.f32 %v140, %v154
    %v157 = vmul.f32 %v155, %v155
    %v158 = vmul.f32 %v156, %v156
    %v159 = vsel %vm145, %v157, 0.0
    %160 = vadd.xlane.f32.xlu0 %v159
    %v161 = vpop.xlane.xlu0 %160
    %v162 = vsel %vm145, %v158, 0.0
    %163 = vadd.xlane.f32.xlu0 %v162
    %v164 = vpop.xlane.xlu0 %163
    %v165 = vmul.f32 %v161, %v152
    %v166 = vmul.f32 %v164, %v152
    %v167 = vadd.f32 %v165, 1e-12
    %v168 = vadd.f32 %v166, 1e-12
    %v169 = vrsqrt.pop %v167
    %v170 = vrsqrt.pop %v168
    %v171 = vmul.f32 %v155, %v169
    %v172 = vmul.f32 %v156, %v170
    %v173 = vlaneseq
    %v174 = vshrl.u32 %v173, 7
    %v175 = vsub.s32 0, %v174
    %v176 = vrot.slane %v143, %v175
    %v177 = vmul.f32 %v171, %v176
    %v178 = vmul.f32 %v172, %v176
    %v179 = vlaneseq
    %v180 = vshrl.u32 %v179, 7
    %v181 = vsub.s32 0, %v180
    %v182 = vrot.slane %v144, %v181
    %v183 = vadd.f32 %v177, %v182
    %v184 = vadd.f32 %v178, %v182
    %v185 = vld [vmem:[#allocation2] sm:$0xff]
    %v186 = vld [vmem:[#allocation2 + $0x8] sm:$0xff]
    %v187 = vld [vmem:[#allocation2 + $0x10] sm:$0xff]
    %v188 = vld [vmem:[#allocation2 + $0x18] sm:$0xff]
    %v189 = vld [vmem:[%s3] sm:$0x1]
    %v190 = vlaneseq
    %v191 = vshrl.u32 %v190, 7
    %v192 = vsub.s32 0, %v191
    %v193 = vrot.slane %v189, %v192
    %v195 = vsel %vm145, %v183, 0
    %v198 = vsel %vm145, %v184, 0
    %200 = vmatprep.subr.mxu0 0.0
    %201 = vmatpush1.msra.mxu0 %v185
    %202 = vmatprep.subr.mxu0 0.0
    %203 = vmatpush1.msra.mxu0 %v186
    %204 = vmatprep.subr.mxu0 0.0
    %205 = vmatpush1.msra.mxu0 %v187
    %206 = vmatprep.subr.mxu0 0.0
    %207 = vmatpush1.msra.mxu0 %v188
    %208 = vmatprep.subr.mxu0 0.0
    %209 = vmatpush1.msra.mxu0 0.0
    %210 = vmatprep.subr.mxu0 0.0
    %211 = vmatpush1.msra.mxu0 0.0
    %212 = vmatprep.subr.mxu0 0.0
    %213 = vmatpush1.msra.mxu0 0.0
    %214 = vmatprep.subr.mxu0 0.0
    %215 = vmatpush1.msra.mxu0 0.0
    %216 = vmatprep.subr.mxu0 0.0
    %217 = vmatpush1.msra.mxu0 0.0
    %218 = vmatprep.subr.mxu0 0.0
    %219 = vmatpush1.msra.mxu0 0.0
    %220 = vmatprep.subr.mxu0 0.0
    %221 = vmatpush1.msra.mxu0 0.0
    %222 = vmatprep.subr.mxu0 0.0
    %223 = vmatpush1.msra.mxu0 0.0
    %224 = vmatprep.subr.mxu0 0.0
    %225 = vmatpush1.msra.mxu0 0.0
    %226 = vmatprep.subr.mxu0 0.0
    %227 = vmatpush1.msra.mxu0 0.0
    %228 = vmatprep.subr.mxu0 0.0
    %229 = vmatpush1.msra.mxu0 0.0
    %230 = vmatprep.subr.mxu0 0.0
    %231 = vmatpush1.msra.mxu0 0.0
    %232 = vmatprep.subr.mxu0 0.0
    %233 = vmatpush1.msra.mxu0 0.0
    %234 = vmatprep.subr.mxu0 0.0
    %235 = vmatpush1.msra.mxu0 0.0
    %236 = vmatprep.subr.mxu0 0.0
    %237 = vmatpush1.msra.mxu0 0.0
    %238 = vmatprep.subr.mxu0 0.0
    %239 = vmatpush1.msra.mxu0 0.0
    %240 = vmatprep.subr.mxu0 0.0
    %241 = vmatpush1.msra.mxu0 0.0
    %242 = vmatprep.subr.mxu0 0.0
    %243 = vmatpush1.msra.mxu0 0.0
    %244 = vmatprep.subr.mxu0 0.0
    %245 = vmatpush1.msra.mxu0 0.0
    %246 = vmatprep.subr.mxu0 0.0
    %247 = vmatpush1.msra.mxu0 0.0
    %248 = vmatprep.subr.mxu0 0.0
    %249 = vmatpush1.msra.mxu0 0.0
    %250 = vmatprep.subr.mxu0 0.0
    %251 = vmatpush1.msra.mxu0 0.0
    %252 = vmatprep.subr.mxu0 0.0
    %253 = vmatpush1.msra.mxu0 0.0
    %254 = vmatprep.subr.mxu0 0.0
    %255 = vmatpush1.msra.mxu0 0.0
    %256 = vmatprep.subr.mxu0 0.0
    %257 = vmatpush1.msra.mxu0 0.0
    %258 = vmatprep.subr.mxu0 0.0
    %259 = vmatpush1.msra.mxu0 0.0
    %260 = vmatprep.subr.mxu0 0.0
    %261 = vmatpush1.msra.mxu0 0.0
    %262 = vmatprep.subr.mxu0 0.0
    %263 = vmatpush1.msra.mxu0 0.0
    %264 = vmatprep.mubr.f32.mxu0 0.0
    %265 = vmatmul.mubr.f32.gmra.mrb[0].mxu0 %v195
    %v266 = vpop.f32.mrb[0].mxu0
    %v267 = vadd.f32 %v193, %v266
    %v268 = vpop.f32.mrb[0].mxu0
    %269 = vmatprep.mubr.f32.mxu0 0.0
    %270 = vmatmul.mubr.f32.gmra.mrb[0].mxu0 %v198
    %v271 = vpop.f32.mrb[0].mxu0
    %v272 = vadd.f32 %v193, %v271
    %v273 = vpop.f32.mrb[0].mxu0
    %274 = vdwg.mxu0
    %276 = vrot.lane.b32.xlu0 %v267, 96
    %v277 = vpop.permute.xlu0 %276
    %vm278 = vcmask 130048
    %v279 = vsel %vm278, %v267, 0
    %v281 = vsel %vm278, %v277, 0
    %283 = vmatprep.subr.mxu0 0.0
    %284 = vmatpush1.xpose.msra.mxu0 %v281
    %285 = vmatprep.subr.mxu0 0.0
    %286 = vmatpush1.xpose.msra.mxu0 0.0
    %287 = vmatprep.subr.mxu0 0.0
    %288 = vmatpush1.xpose.msra.mxu0 0.0
    %289 = vmatprep.subr.mxu0 0.0
    %290 = vmatpush1.xpose.msra.mxu0 0.0
    %291 = vmatprep.subr.mxu0 0.0
    %292 = vmatpush1.xpose.msra.mxu0 0.0
    %293 = vmatprep.subr.mxu0 0.0
    %294 = vmatpush1.xpose.msra.mxu0 0.0
    %295 = vmatprep.subr.mxu0 0.0
    %296 = vmatpush1.xpose.msra.mxu0 0.0
    %297 = vmatprep.subr.mxu0 0.0
    %298 = vmatpush1.xpose.msra.mxu0 0.0
    %299 = vmatprep.subr.mxu0 0.0
    %300 = vmatpush1.xpose.msra.mxu0 0.0
    %301 = vmatprep.subr.mxu0 0.0
    %302 = vmatpush1.xpose.msra.mxu0 0.0
    %303 = vmatprep.subr.mxu0 0.0
    %304 = vmatpush1.xpose.msra.mxu0 0.0
    %305 = vmatprep.subr.mxu0 0.0
    %306 = vmatpush1.xpose.msra.mxu0 0.0
    %307 = vmatprep.subr.mxu0 0.0
    %308 = vmatpush1.xpose.msra.mxu0 0.0
    %309 = vmatprep.subr.mxu0 0.0
    %310 = vmatpush1.xpose.msra.mxu0 0.0
    %311 = vmatprep.subr.mxu0 0.0
    %312 = vmatpush1.xpose.msra.mxu0 0.0
    %313 = vmatprep.subr.mxu0 0.0
    %314 = vmatpush1.xpose.msra.mxu0 0.0
    %315 = vmatprep.subr.mxu0 0.0
    %316 = vmatpush1.xpose.msra.mxu0 0.0
    %317 = vmatprep.subr.mxu0 0.0
    %318 = vmatpush1.xpose.msra.mxu0 0.0
    %319 = vmatprep.subr.mxu0 0.0
    %320 = vmatpush1.xpose.msra.mxu0 0.0
    %321 = vmatprep.subr.mxu0 0.0
    %322 = vmatpush1.xpose.msra.mxu0 0.0
    %323 = vmatprep.subr.mxu0 0.0
    %324 = vmatpush1.xpose.msra.mxu0 0.0
    %325 = vmatprep.subr.mxu0 0.0
    %326 = vmatpush1.xpose.msra.mxu0 0.0
    %327 = vmatprep.subr.mxu0 0.0
    %328 = vmatpush1.xpose.msra.mxu0 0.0
    %329 = vmatprep.subr.mxu0 0.0
    %330 = vmatpush1.xpose.msra.mxu0 0.0
    %331 = vmatprep.subr.mxu0 0.0
    %332 = vmatpush1.xpose.msra.mxu0 0.0
    %333 = vmatprep.subr.mxu0 0.0
    %334 = vmatpush1.xpose.msra.mxu0 0.0
    %335 = vmatprep.subr.mxu0 0.0
    %336 = vmatpush1.xpose.msra.mxu0 0.0
    %337 = vmatprep.subr.mxu0 0.0
    %338 = vmatpush1.xpose.msra.mxu0 0.0
    %339 = vmatprep.subr.mxu0 0.0
    %340 = vmatpush1.xpose.msra.mxu0 0.0
    %341 = vmatprep.subr.mxu0 0.0
    %342 = vmatpush1.xpose.msra.mxu0 0.0
    %343 = vmatprep.subr.mxu0 0.0
    %344 = vmatpush1.xpose.msra.mxu0 0.0
    %345 = vmatprep.subr.mxu0 0.0
    %346 = vmatpush1.xpose.msra.mxu0 0.0
    %347 = vmatprep.mubr.f32.mxu0 0.0
    %348 = vmatmul.mubr.f32.gmra.mrb[0].mxu0 %v279
    %v349 = vpop.f32.mrb[0].mxu0
    %v350 = vadd.f32 0.0, %v349
    %v351 = vpop.f32.mrb[0].mxu0
    %352 = vdwg.mxu0
    %354 = vrot.lane.b32.xlu0 %v272, 96
    %v355 = vpop.permute.xlu0 %354
    %v356 = vsel %vm278, %v272, 0
    %v358 = vsel %vm278, %v355, 0
    %360 = vmatprep.subr.mxu0 0.0
    %361 = vmatpush1.xpose.msra.mxu0 %v358
    %362 = vmatprep.subr.mxu0 0.0
    %363 = vmatpush1.xpose.msra.mxu0 0.0
    %364 = vmatprep.subr.mxu0 0.0
    %365 = vmatpush1.xpose.msra.mxu0 0.0
    %366 = vmatprep.subr.mxu0 0.0
    %367 = vmatpush1.xpose.msra.mxu0 0.0
    %368 = vmatprep.subr.mxu0 0.0
    %369 = vmatpush1.xpose.msra.mxu0 0.0
    %370 = vmatprep.subr.mxu0 0.0
    %371 = vmatpush1.xpose.msra.mxu0 0.0
    %372 = vmatprep.subr.mxu0 0.0
    %373 = vmatpush1.xpose.msra.mxu0 0.0
    %374 = vmatprep.subr.mxu0 0.0
    %375 = vmatpush1.xpose.msra.mxu0 0.0
    %376 = vmatprep.subr.mxu0 0.0
    %377 = vmatpush1.xpose.msra.mxu0 0.0
    %378 = vmatprep.subr.mxu0 0.0
    %379 = vmatpush1.xpose.msra.mxu0 0.0
    %380 = vmatprep.subr.mxu0 0.0
    %381 = vmatpush1.xpose.msra.mxu0 0.0
    %382 = vmatprep.subr.mxu0 0.0
    %383 = vmatpush1.xpose.msra.mxu0 0.0
    %384 = vmatprep.subr.mxu0 0.0
    %385 = vmatpush1.xpose.msra.mxu0 0.0
    %386 = vmatprep.subr.mxu0 0.0
    %387 = vmatpush1.xpose.msra.mxu0 0.0
    %388 = vmatprep.subr.mxu0 0.0
    %389 = vmatpush1.xpose.msra.mxu0 0.0
    %390 = vmatprep.subr.mxu0 0.0
    %391 = vmatpush1.xpose.msra.mxu0 0.0
    %392 = vmatprep.subr.mxu0 0.0
    %393 = vmatpush1.xpose.msra.mxu0 0.0
    %394 = vmatprep.subr.mxu0 0.0
    %395 = vmatpush1.xpose.msra.mxu0 0.0
    %396 = vmatprep.subr.mxu0 0.0
    %397 = vmatpush1.xpose.msra.mxu0 0.0
    %398 = vmatprep.subr.mxu0 0.0
    %399 = vmatpush1.xpose.msra.mxu0 0.0
    %400 = vmatprep.subr.mxu0 0.0
    %401 = vmatpush1.xpose.msra.mxu0 0.0
    %402 = vmatprep.subr.mxu0 0.0
    %403 = vmatpush1.xpose.msra.mxu0 0.0
    %404 = vmatprep.subr.mxu0 0.0
    %405 = vmatpush1.xpose.msra.mxu0 0.0
    %406 = vmatprep.subr.mxu0 0.0
    %407 = vmatpush1.xpose.msra.mxu0 0.0
    %408 = vmatprep.subr.mxu0 0.0
    %409 = vmatpush1.xpose.msra.mxu0 0.0
    %410 = vmatprep.subr.mxu0 0.0
    %411 = vmatpush1.xpose.msra.mxu0 0.0
    %412 = vmatprep.subr.mxu0 0.0
    %413 = vmatpush1.xpose.msra.mxu0 0.0
    %414 = vmatprep.subr.mxu0 0.0
    %415 = vmatpush1.xpose.msra.mxu0 0.0
    %416 = vmatprep.subr.mxu0 0.0
    %417 = vmatpush1.xpose.msra.mxu0 0.0
    %418 = vmatprep.subr.mxu0 0.0
    %419 = vmatpush1.xpose.msra.mxu0 0.0
    %420 = vmatprep.subr.mxu0 0.0
    %421 = vmatpush1.xpose.msra.mxu0 0.0
    %422 = vmatprep.subr.mxu0 0.0
    %423 = vmatpush1.xpose.msra.mxu0 0.0
    %424 = vmatprep.mubr.f32.mxu0 0.0
    %425 = vmatmul.mubr.f32.gmra.mrb[0].mxu0 %v356
    %v426 = vpop.f32.mrb[0].mxu0
    %v427 = vadd.f32 0.0, %v426
    %v428 = vpop.f32.mrb[0].mxu0
    %429 = vdwg.mxu0
    %v430 = vmul.f32 %v350, 0.25
    %v431 = vmul.f32 %v427, 0.25
    %vm432 = vcmask 64512
    %v433 = vsel %vm432, %v430, -inf
    %434 = vmax.xlane.f32.xlu0 %v433
    %v435 = vpop.xlane.xlu0 %434
    %v436 = vsel %vm432, %v431, -inf
    %437 = vmax.xlane.f32.xlu0 %v436
    %v438 = vpop.xlane.xlu0 %437
    %v439 = vsub.f32 %v430, %v435
    %v440 = vsub.f32 %v431, %v438
    %v441 = vmul.f32 %v439, 1.442695
    %v442 = vpow.pop %v441
    %v443 = vmul.f32 %v440, 1.442695
    %v444 = vpow.pop %v443
    %v445 = vsel %vm432, %v442, 0.0
    %446 = vadd.xlane.f32.xlu0 %v445
    %v447 = vpop.xlane.xlu0 %446
    %v448 = vsel %vm432, %v444, 0.0
    %449 = vadd.xlane.f32.xlu0 %v448
    %v450 = vpop.xlane.xlu0 %449
    %v451 = vrcp.pop %v447
    %v452 = vrcp.pop %v450
    %v453 = vmul.f32 %v442, %v451
    %v454 = vmul.f32 %v444, %v452
    %455 = vrot.lane.b32.xlu0 %v267, 64
    %v456 = vpop.permute.xlu0 %455
    %v459 = vsel %vm432, %v453, 0
    %461 = vmatprep.subr.mxu0 0.0
    %462 = vmatpush1.msra.mxu0 %v456
    %463 = vmatprep.subr.mxu0 0.0
    %464 = vmatpush1.msra.mxu0 0.0
    %465 = vmatprep.subr.mxu0 0.0
    %466 = vmatpush1.msra.mxu0 0.0
    %467 = vmatprep.subr.mxu0 0.0
    %468 = vmatpush1.msra.mxu0 0.0
    %469 = vmatprep.subr.mxu0 0.0
    %470 = vmatpush1.msra.mxu0 0.0
    %471 = vmatprep.subr.mxu0 0.0
    %472 = vmatpush1.msra.mxu0 0.0
    %473 = vmatprep.subr.mxu0 0.0
    %474 = vmatpush1.msra.mxu0 0.0
    %475 = vmatprep.subr.mxu0 0.0
    %476 = vmatpush1.msra.mxu0 0.0
    %477 = vmatprep.subr.mxu0 0.0
    %478 = vmatpush1.msra.mxu0 0.0
    %479 = vmatprep.subr.mxu0 0.0
    %480 = vmatpush1.msra.mxu0 0.0
    %481 = vmatprep.subr.mxu0 0.0
    %482 = vmatpush1.msra.mxu0 0.0
    %483 = vmatprep.subr.mxu0 0.0
    %484 = vmatpush1.msra.mxu0 0.0
    %485 = vmatprep.subr.mxu0 0.0
    %486 = vmatpush1.msra.mxu0 0.0
    %487 = vmatprep.subr.mxu0 0.0
    %488 = vmatpush1.msra.mxu0 0.0
    %489 = vmatprep.subr.mxu0 0.0
    %490 = vmatpush1.msra.mxu0 0.0
    %491 = vmatprep.subr.mxu0 0.0
    %492 = vmatpush1.msra.mxu0 0.0
    %493 = vmatprep.subr.mxu0 0.0
    %494 = vmatpush1.msra.mxu0 0.0
    %495 = vmatprep.subr.mxu0 0.0
    %496 = vmatpush1.msra.mxu0 0.0
    %497 = vmatprep.subr.mxu0 0.0
    %498 = vmatpush1.msra.mxu0 0.0
    %499 = vmatprep.subr.mxu0 0.0
    %500 = vmatpush1.msra.mxu0 0.0
    %501 = vmatprep.subr.mxu0 0.0
    %502 = vmatpush1.msra.mxu0 0.0
    %503 = vmatprep.subr.mxu0 0.0
    %504 = vmatpush1.msra.mxu0 0.0
    %505 = vmatprep.subr.mxu0 0.0
    %506 = vmatpush1.msra.mxu0 0.0
    %507 = vmatprep.subr.mxu0 0.0
    %508 = vmatpush1.msra.mxu0 0.0
    %509 = vmatprep.subr.mxu0 0.0
    %510 = vmatpush1.msra.mxu0 0.0
    %511 = vmatprep.subr.mxu0 0.0
    %512 = vmatpush1.msra.mxu0 0.0
    %513 = vmatprep.subr.mxu0 0.0
    %514 = vmatpush1.msra.mxu0 0.0
    %515 = vmatprep.subr.mxu0 0.0
    %516 = vmatpush1.msra.mxu0 0.0
    %517 = vmatprep.subr.mxu0 0.0
    %518 = vmatpush1.msra.mxu0 0.0
    %519 = vmatprep.subr.mxu0 0.0
    %520 = vmatpush1.msra.mxu0 0.0
    %521 = vmatprep.subr.mxu0 0.0
    %522 = vmatpush1.msra.mxu0 0.0
    %523 = vmatprep.subr.mxu0 0.0
    %524 = vmatpush1.msra.mxu0 0.0
    %525 = vmatprep.mubr.f32.mxu0 0.0
    %526 = vmatmul.mubr.f32.gmra.mrb[0].mxu0 %v459
    %v527 = vpop.f32.mrb[0].mxu0
    %v528 = vadd.f32 0.0, %v527
    %v529 = vpop.f32.mrb[0].mxu0
    %530 = vdwg.mxu0
    %531 = vrot.lane.b32.xlu0 %v272, 64
    %v532 = vpop.permute.xlu0 %531
    %v535 = vsel %vm432, %v454, 0
    %537 = vmatprep.subr.mxu0 0.0
    %538 = vmatpush1.msra.mxu0 %v532
    %539 = vmatprep.subr.mxu0 0.0
    %540 = vmatpush1.msra.mxu0 0.0
    %541 = vmatprep.subr.mxu0 0.0
    %542 = vmatpush1.msra.mxu0 0.0
    %543 = vmatprep.subr.mxu0 0.0
    %544 = vmatpush1.msra.mxu0 0.0
    %545 = vmatprep.subr.mxu0 0.0
    %546 = vmatpush1.msra.mxu0 0.0
    %547 = vmatprep.subr.mxu0 0.0
    %548 = vmatpush1.msra.mxu0 0.0
    %549 = vmatprep.subr.mxu0 0.0
    %550 = vmatpush1.msra.mxu0 0.0
    %551 = vmatprep.subr.mxu0 0.0
    %552 = vmatpush1.msra.mxu0 0.0
    %553 = vmatprep.subr.mxu0 0.0
    %554 = vmatpush1.msra.mxu0 0.0
    %555 = vmatprep.subr.mxu0 0.0
    %556 = vmatpush1.msra.mxu0 0.0
    %557 = vmatprep.subr.mxu0 0.0
    %558 = vmatpush1.msra.mxu0 0.0
    %559 = vmatprep.subr.mxu0 0.0
    %560 = vmatpush1.msra.mxu0 0.0
    %561 = vmatprep.subr.mxu0 0.0
    %562 = vmatpush1.msra.mxu0 0.0
    %563 = vmatprep.subr.mxu0 0.0
    %564 = vmatpush1.msra.mxu0 0.0
    %565 = vmatprep.subr.mxu0 0.0
    %566 = vmatpush1.msra.mxu0 0.0
    %567 = vmatprep.subr.mxu0 0.0
    %568 = vmatpush1.msra.mxu0 0.0
    %569 = vmatprep.subr.mxu0 0.0
    %570 = vmatpush1.msra.mxu0 0.0
    %571 = vmatprep.subr.mxu0 0.0
    %572 = vmatpush1.msra.mxu0 0.0
    %573 = vmatprep.subr.mxu0 0.0
    %574 = vmatpush1.msra.mxu0 0.0
    %575 = vmatprep.subr.mxu0 0.0
    %576 = vmatpush1.msra.mxu0 0.0
    %577 = vmatprep.subr.mxu0 0.0
    %578 = vmatpush1.msra.mxu0 0.0
    %579 = vmatprep.subr.mxu0 0.0
    %580 = vmatpush1.msra.mxu0 0.0
    %581 = vmatprep.subr.mxu0 0.0
    %582 = vmatpush1.msra.mxu0 0.0
    %583 = vmatprep.subr.mxu0 0.0
    %584 = vmatpush1.msra.mxu0 0.0
    %585 = vmatprep.subr.mxu0 0.0
    %586 = vmatpush1.msra.mxu0 0.0
    %587 = vmatprep.subr.mxu0 0.0
    %588 = vmatpush1.msra.mxu0 0.0
    %589 = vmatprep.subr.mxu0 0.0
    %590 = vmatpush1.msra.mxu0 0.0
    %591 = vmatprep.subr.mxu0 0.0
    %592 = vmatpush1.msra.mxu0 0.0
    %593 = vmatprep.subr.mxu0 0.0
    %594 = vmatpush1.msra.mxu0 0.0
    %595 = vmatprep.subr.mxu0 0.0
    %596 = vmatpush1.msra.mxu0 0.0
    %597 = vmatprep.subr.mxu0 0.0
    %598 = vmatpush1.msra.mxu0 0.0
    %599 = vmatprep.subr.mxu0 0.0
    %600 = vmatpush1.msra.mxu0 0.0
    %601 = vmatprep.mubr.f32.mxu0 0.0
    %602 = vmatmul.mubr.f32.gmra.mrb[0].mxu0 %v535
    %v603 = vpop.f32.mrb[0].mxu0
    %v604 = vadd.f32 0.0, %v603
    %v605 = vpop.f32.mrb[0].mxu0
    %606 = vdwg.mxu0
    %v607 = vld [vmem:[#allocation2 + $0x20] sm:$0xff]
    %v608 = vld [vmem:[#allocation2 + $0x28] sm:$0xff]
    %609 = vrot.lane.b32.xlu0 %v267, 112
    %v610 = vpop.permute.xlu0 %609
    %611 = vrot.lane.b32.xlu0 %v267, 80
    %v612 = vpop.permute.xlu0 %611
    %v613 = vsel %vm278, %v610, 0
    %v615 = vsel %vm278, %v612, 0
    %617 = vmatprep.subr.mxu0 0.0
    %618 = vmatpush1.xpose.msra.mxu0 %v615
    %619 = vmatprep.subr.mxu0 0.0
    %620 = vmatpush1.xpose.msra.mxu0 0.0
    %621 = vmatprep.subr.mxu0 0.0
    %622 = vmatpush1.xpose.msra.mxu0 0.0
    %623 = vmatprep.subr.mxu0 0.0
    %624 = vmatpush1.xpose.msra.mxu0 0.0
    %625 = vmatprep.subr.mxu0 0.0
    %626 = vmatpush1.xpose.msra.mxu0 0.0
    %627 = vmatprep.subr.mxu0 0.0
    %628 = vmatpush1.xpose.msra.mxu0 0.0
    %629 = vmatprep.subr.mxu0 0.0
    %630 = vmatpush1.xpose.msra.mxu0 0.0
    %631 = vmatprep.subr.mxu0 0.0
    %632 = vmatpush1.xpose.msra.mxu0 0.0
    %633 = vmatprep.subr.mxu0 0.0
    %634 = vmatpush1.xpose.msra.mxu0 0.0
    %635 = vmatprep.subr.mxu0 0.0
    %636 = vmatpush1.xpose.msra.mxu0 0.0
    %637 = vmatprep.subr.mxu0 0.0
    %638 = vmatpush1.xpose.msra.mxu0 0.0
    %639 = vmatprep.subr.mxu0 0.0
    %640 = vmatpush1.xpose.msra.mxu0 0.0
    %641 = vmatprep.subr.mxu0 0.0
    %642 = vmatpush1.xpose.msra.mxu0 0.0
    %643 = vmatprep.subr.mxu0 0.0
    %644 = vmatpush1.xpose.msra.mxu0 0.0
    %645 = vmatprep.subr.mxu0 0.0
    %646 = vmatpush1.xpose.msra.mxu0 0.0
    %647 = vmatprep.subr.mxu0 0.0
    %648 = vmatpush1.xpose.msra.mxu0 0.0
    %649 = vmatprep.subr.mxu0 0.0
    %650 = vmatpush1.xpose.msra.mxu0 0.0
    %651 = vmatprep.subr.mxu0 0.0
    %652 = vmatpush1.xpose.msra.mxu0 0.0
    %653 = vmatprep.subr.mxu0 0.0
    %654 = vmatpush1.xpose.msra.mxu0 0.0
    %655 = vmatprep.subr.mxu0 0.0
    %656 = vmatpush1.xpose.msra.mxu0 0.0
    %657 = vmatprep.subr.mxu0 0.0
    %658 = vmatpush1.xpose.msra.mxu0 0.0
    %659 = vmatprep.subr.mxu0 0.0
    %660 = vmatpush1.xpose.msra.mxu0 0.0
    %661 = vmatprep.subr.mxu0 0.0
    %662 = vmatpush1.xpose.msra.mxu0 0.0
    %663 = vmatprep.subr.mxu0 0.0
    %664 = vmatpush1.xpose.msra.mxu0 0.0
    %665 = vmatprep.subr.mxu0 0.0
    %666 = vmatpush1.xpose.msra.mxu0 0.0
    %667 = vmatprep.subr.mxu0 0.0
    %668 = vmatpush1.xpose.msra.mxu0 0.0
    %669 = vmatprep.subr.mxu0 0.0
    %670 = vmatpush1.xpose.msra.mxu0 0.0
    %671 = vmatprep.subr.mxu0 0.0
    %672 = vmatpush1.xpose.msra.mxu0 0.0
    %673 = vmatprep.subr.mxu0 0.0
    %674 = vmatpush1.xpose.msra.mxu0 0.0
    %675 = vmatprep.subr.mxu0 0.0
    %676 = vmatpush1.xpose.msra.mxu0 0.0
    %677 = vmatprep.subr.mxu0 0.0
    %678 = vmatpush1.xpose.msra.mxu0 0.0
    %679 = vmatprep.subr.mxu0 0.0
    %680 = vmatpush1.xpose.msra.mxu0 0.0
    %681 = vmatprep.mubr.f32.mxu0 0.0
    %682 = vmatmul.mubr.f32.gmra.mrb[0].mxu0 %v613
    %v683 = vpop.f32.mrb[0].mxu0
    %v684 = vadd.f32 0.0, %v683
    %v685 = vpop.f32.mrb[0].mxu0
    %686 = vdwg.mxu0
    %687 = vrot.lane.b32.xlu0 %v272, 112
    %v688 = vpop.permute.xlu0 %687
    %689 = vrot.lane.b32.xlu0 %v272, 80
    %v690 = vpop.permute.xlu0 %689
    %v691 = vsel %vm278, %v688, 0
    %v693 = vsel %vm278, %v690, 0
    %695 = vmatprep.subr.mxu0 0.0
    %696 = vmatpush1.xpose.msra.mxu0 %v693
    %697 = vmatprep.subr.mxu0 0.0
    %698 = vmatpush1.xpose.msra.mxu0 0.0
    %699 = vmatprep.subr.mxu0 0.0
    %700 = vmatpush1.xpose.msra.mxu0 0.0
    %701 = vmatprep.subr.mxu0 0.0
    %702 = vmatpush1.xpose.msra.mxu0 0.0
    %703 = vmatprep.subr.mxu0 0.0
    %704 = vmatpush1.xpose.msra.mxu0 0.0
    %705 = vmatprep.subr.mxu0 0.0
    %706 = vmatpush1.xpose.msra.mxu0 0.0
    %707 = vmatprep.subr.mxu0 0.0
    %708 = vmatpush1.xpose.msra.mxu0 0.0
    %709 = vmatprep.subr.mxu0 0.0
    %710 = vmatpush1.xpose.msra.mxu0 0.0
    %711 = vmatprep.subr.mxu0 0.0
    %712 = vmatpush1.xpose.msra.mxu0 0.0
    %713 = vmatprep.subr.mxu0 0.0
    %714 = vmatpush1.xpose.msra.mxu0 0.0
    %715 = vmatprep.subr.mxu0 0.0
    %716 = vmatpush1.xpose.msra.mxu0 0.0
    %717 = vmatprep.subr.mxu0 0.0
    %718 = vmatpush1.xpose.msra.mxu0 0.0
    %719 = vmatprep.subr.mxu0 0.0
    %720 = vmatpush1.xpose.msra.mxu0 0.0
    %721 = vmatprep.subr.mxu0 0.0
    %722 = vmatpush1.xpose.msra.mxu0 0.0
    %723 = vmatprep.subr.mxu0 0.0
    %724 = vmatpush1.xpose.msra.mxu0 0.0
    %725 = vmatprep.subr.mxu0 0.0
    %726 = vmatpush1.xpose.msra.mxu0 0.0
    %727 = vmatprep.subr.mxu0 0.0
    %728 = vmatpush1.xpose.msra.mxu0 0.0
    %729 = vmatprep.subr.mxu0 0.0
    %730 = vmatpush1.xpose.msra.mxu0 0.0
    %731 = vmatprep.subr.mxu0 0.0
    %732 = vmatpush1.xpose.msra.mxu0 0.0
    %733 = vmatprep.subr.mxu0 0.0
    %734 = vmatpush1.xpose.msra.mxu0 0.0
    %735 = vmatprep.subr.mxu0 0.0
    %736 = vmatpush1.xpose.msra.mxu0 0.0
    %737 = vmatprep.subr.mxu0 0.0
    %738 = vmatpush1.xpose.msra.mxu0 0.0
    %739 = vmatprep.subr.mxu0 0.0
    %740 = vmatpush1.xpose.msra.mxu0 0.0
    %741 = vmatprep.subr.mxu0 0.0
    %742 = vmatpush1.xpose.msra.mxu0 0.0
    %743 = vmatprep.subr.mxu0 0.0
    %744 = vmatpush1.xpose.msra.mxu0 0.0
    %745 = vmatprep.subr.mxu0 0.0
    %746 = vmatpush1.xpose.msra.mxu0 0.0
    %747 = vmatprep.subr.mxu0 0.0
    %748 = vmatpush1.xpose.msra.mxu0 0.0
    %749 = vmatprep.subr.mxu0 0.0
    %750 = vmatpush1.xpose.msra.mxu0 0.0
    %751 = vmatprep.subr.mxu0 0.0
    %752 = vmatpush1.xpose.msra.mxu0 0.0
    %753 = vmatprep.subr.mxu0 0.0
    %754 = vmatpush1.xpose.msra.mxu0 0.0
    %755 = vmatprep.subr.mxu0 0.0
    %756 = vmatpush1.xpose.msra.mxu0 0.0
    %757 = vmatprep.subr.mxu0 0.0
    %758 = vmatpush1.xpose.msra.mxu0 0.0
    %759 = vmatprep.mubr.f32.mxu0 0.0
    %760 = vmatmul.mubr.f32.gmra.mrb[0].mxu0 %v691
    %v761 = vpop.f32.mrb[0].mxu0
    %v762 = vadd.f32 0.0, %v761
    %v763 = vpop.f32.mrb[0].mxu0
    %764 = vdwg.mxu0
    %v765 = vmul.f32 %v684, 0.25
    %v766 = vmul.f32 %v762, 0.25
    %v767 = vsel %vm432, %v765, -inf
    %768 = vmax.xlane.f32.xlu0 %v767
    %v769 = vpop.xlane.xlu0 %768
    %v770 = vsel %vm432, %v766, -inf
    %771 = vmax.xlane.f32.xlu0 %v770
    %v772 = vpop.xlane.xlu0 %771
    %v773 = vsub.f32 %v765, %v769
    %v774 = vsub.f32 %v766, %v772
    %v775 = vmul.f32 %v773, 1.442695
    %v776 = vpow.pop %v775
    %v777 = vmul.f32 %v774, 1.442695
    %v778 = vpow.pop %v777
    %v779 = vsel %vm432, %v776, 0.0
    %780 = vadd.xlane.f32.xlu0 %v779
    %v781 = vpop.xlane.xlu0 %780
    %v782 = vsel %vm432, %v778, 0.0
    %783 = vadd.xlane.f32.xlu0 %v782
    %v784 = vpop.xlane.xlu0 %783
    %v785 = vrcp.pop %v781
    %v786 = vrcp.pop %v784
    %v787 = vmul.f32 %v776, %v785
    %v788 = vmul.f32 %v778, %v786
    %789 = vrot.lane.b32.xlu0 %v267, 48
    %v790 = vpop.permute.xlu0 %789
    %v793 = vsel %vm432, %v787, 0
    %795 = vmatprep.subr.mxu0 0.0
    %796 = vmatpush1.msra.mxu0 %v790
    %797 = vmatprep.subr.mxu0 0.0
    %798 = vmatpush1.msra.mxu0 0.0
    %799 = vmatprep.subr.mxu0 0.0
    %800 = vmatpush1.msra.mxu0 0.0
    %801 = vmatprep.subr.mxu0 0.0
    %802 = vmatpush1.msra.mxu0 0.0
    %803 = vmatprep.subr.mxu0 0.0
    %804 = vmatpush1.msra.mxu0 0.0
    %805 = vmatprep.subr.mxu0 0.0
    %806 = vmatpush1.msra.mxu0 0.0
    %807 = vmatprep.subr.mxu0 0.0
    %808 = vmatpush1.msra.mxu0 0.0
    %809 = vmatprep.subr.mxu0 0.0
    %810 = vmatpush1.msra.mxu0 0.0
    %811 = vmatprep.subr.mxu0 0.0
    %812 = vmatpush1.msra.mxu0 0.0
    %813 = vmatprep.subr.mxu0 0.0
    %814 = vmatpush1.msra.mxu0 0.0
    %815 = vmatprep.subr.mxu0 0.0
    %816 = vmatpush1.msra.mxu0 0.0
    %817 = vmatprep.subr.mxu0 0.0
    %818 = vmatpush1.msra.mxu0 0.0
    %819 = vmatprep.subr.mxu0 0.0
    %820 = vmatpush1.msra.mxu0 0.0
    %821 = vmatprep.subr.mxu0 0.0
    %822 = vmatpush1.msra.mxu0 0.0
    %823 = vmatprep.subr.mxu0 0.0
    %824 = vmatpush1.msra.mxu0 0.0
    %825 = vmatprep.subr.mxu0 0.0
    %826 = vmatpush1.msra.mxu0 0.0
    %827 = vmatprep.subr.mxu0 0.0
    %828 = vmatpush1.msra.mxu0 0.0
    %829 = vmatprep.subr.mxu0 0.0
    %830 = vmatpush1.msra.mxu0 0.0
    %831 = vmatprep.subr.mxu0 0.0
    %832 = vmatpush1.msra.mxu0 0.0
    %833 = vmatprep.subr.mxu0 0.0
    %834 = vmatpush1.msra.mxu0 0.0
    %835 = vmatprep.subr.mxu0 0.0
    %836 = vmatpush1.msra.mxu0 0.0
    %837 = vmatprep.subr.mxu0 0.0
    %838 = vmatpush1.msra.mxu0 0.0
    %839 = vmatprep.subr.mxu0 0.0
    %840 = vmatpush1.msra.mxu0 0.0
    %841 = vmatprep.subr.mxu0 0.0
    %842 = vmatpush1.msra.mxu0 0.0
    %843 = vmatprep.subr.mxu0 0.0
    %844 = vmatpush1.msra.mxu0 0.0
    %845 = vmatprep.subr.mxu0 0.0
    %846 = vmatpush1.msra.mxu0 0.0
    %847 = vmatprep.subr.mxu0 0.0
    %848 = vmatpush1.msra.mxu0 0.0
    %849 = vmatprep.subr.mxu0 0.0
    %850 = vmatpush1.msra.mxu0 0.0
    %851 = vmatprep.subr.mxu0 0.0
    %852 = vmatpush1.msra.mxu0 0.0
    %853 = vmatprep.subr.mxu0 0.0
    %854 = vmatpush1.msra.mxu0 0.0
    %855 = vmatprep.subr.mxu0 0.0
    %856 = vmatpush1.msra.mxu0 0.0
    %857 = vmatprep.subr.mxu0 0.0
    %858 = vmatpush1.msra.mxu0 0.0
    %859 = vmatprep.mubr.f32.mxu0 0.0
    %860 = vmatmul.mubr.f32.gmra.mrb[0].mxu0 %v793
    %v861 = vpop.f32.mrb[0].mxu0
    %v862 = vadd.f32 0.0, %v861
    %v863 = vpop.f32.mrb[0].mxu0
    %864 = vdwg.mxu0
    %865 = vrot.lane.b32.xlu0 %v272, 48
    %v866 = vpop.permute.xlu0 %865
    %v869 = vsel %vm432, %v788, 0
    %871 = vmatprep.subr.mxu0 0.0
    %872 = vmatpush1.msra.mxu0 %v866
    %873 = vmatprep.subr.mxu0 0.0
    %874 = vmatpush1.msra.mxu0 0.0
    %875 = vmatprep.subr.mxu0 0.0
    %876 = vmatpush1.msra.mxu0 0.0
    %877 = vmatprep.subr.mxu0 0.0
    %878 = vmatpush1.msra.mxu0 0.0
    %879 = vmatprep.subr.mxu0 0.0
    %880 = vmatpush1.msra.mxu0 0.0
    %881 = vmatprep.subr.mxu0 0.0
    %882 = vmatpush1.msra.mxu0 0.0
    %883 = vmatprep.subr.mxu0 0.0
    %884 = vmatpush1.msra.mxu0 0.0
    %885 = vmatprep.subr.mxu0 0.0
    %886 = vmatpush1.msra.mxu0 0.0
    %887 = vmatprep.subr.mxu0 0.0
    %888 = vmatpush1.msra.mxu0 0.0
    %889 = vmatprep.subr.mxu0 0.0
    %890 = vmatpush1.msra.mxu0 0.0
    %891 = vmatprep.subr.mxu0 0.0
    %892 = vmatpush1.msra.mxu0 0.0
    %893 = vmatprep.subr.mxu0 0.0
    %894 = vmatpush1.msra.mxu0 0.0
    %895 = vmatprep.subr.mxu0 0.0
    %896 = vmatpush1.msra.mxu0 0.0
    %897 = vmatprep.subr.mxu0 0.0
    %898 = vmatpush1.msra.mxu0 0.0
    %899 = vmatprep.subr.mxu0 0.0
    %900 = vmatpush1.msra.mxu0 0.0
    %901 = vmatprep.subr.mxu0 0.0
    %902 = vmatpush1.msra.mxu0 0.0
    %903 = vmatprep.subr.mxu0 0.0
    %904 = vmatpush1.msra.mxu0 0.0
    %905 = vmatprep.subr.mxu0 0.0
    %906 = vmatpush1.msra.mxu0 0.0
    %907 = vmatprep.subr.mxu0 0.0
    %908 = vmatpush1.msra.mxu0 0.0
    %909 = vmatprep.subr.mxu0 0.0
    %910 = vmatpush1.msra.mxu0 0.0
    %911 = vmatprep.subr.mxu0 0.0
    %912 = vmatpush1.msra.mxu0 0.0
    %913 = vmatprep.subr.mxu0 0.0
    %914 = vmatpush1.msra.mxu0 0.0
    %915 = vmatprep.subr.mxu0 0.0
    %916 = vmatpush1.msra.mxu0 0.0
    %917 = vmatprep.subr.mxu0 0.0
    %918 = vmatpush1.msra.mxu0 0.0
    %919 = vmatprep.subr.mxu0 0.0
    %920 = vmatpush1.msra.mxu0 0.0
    %921 = vmatprep.subr.mxu0 0.0
    %922 = vmatpush1.msra.mxu0 0.0
    %923 = vmatprep.subr.mxu0 0.0
    %924 = vmatpush1.msra.mxu0 0.0
    %925 = vmatprep.subr.mxu0 0.0
    %926 = vmatpush1.msra.mxu0 0.0
    %927 = vmatprep.subr.mxu0 0.0
    %928 = vmatpush1.msra.mxu0 0.0
    %929 = vmatprep.subr.mxu0 0.0
    %930 = vmatpush1.msra.mxu0 0.0
    %931 = vmatprep.subr.mxu0 0.0
    %932 = vmatpush1.msra.mxu0 0.0
    %933 = vmatprep.subr.mxu0 0.0
    %934 = vmatpush1.msra.mxu0 0.0
    %935 = vmatprep.mubr.f32.mxu0 0.0
    %936 = vmatmul.mubr.f32.gmra.mrb[0].mxu0 %v869
    %v937 = vpop.f32.mrb[0].mxu0
    %v938 = vadd.f32 0.0, %v937
    %v939 = vpop.f32.mrb[0].mxu0
    %940 = vdwg.mxu0
    %v941 = vld [vmem:[#allocation2 + $0x30] sm:$0xff]
    %v942 = vld [vmem:[#allocation2 + $0x38] sm:$0xff]
    %v944 = vsel %vm278, %v862, 0
    %v947 = vsel %vm278, %v938, 0
    %949 = vmatprep.subr.mxu0 0.0
    %950 = vmatpush1.msra.mxu0 %v941
    %951 = vmatprep.subr.mxu0 0.0
    %952 = vmatpush1.msra.mxu0 %v942
    %953 = vmatprep.subr.mxu0 0.0
    %954 = vmatpush1.msra.mxu0 0.0
    %955 = vmatprep.subr.mxu0 0.0
    %956 = vmatpush1.msra.mxu0 0.0
    %957 = vmatprep.subr.mxu0 0.0
    %958 = vmatpush1.msra.mxu0 0.0
    %959 = vmatprep.subr.mxu0 0.0
    %960 = vmatpush1.msra.mxu0 0.0
    %961 = vmatprep.subr.mxu0 0.0
    %962 = vmatpush1.msra.mxu0 0.0
    %963 = vmatprep.subr.mxu0 0.0
    %964 = vmatpush1.msra.mxu0 0.0
    %965 = vmatprep.subr.mxu0 0.0
    %966 = vmatpush1.msra.mxu0 0.0
    %967 = vmatprep.subr.mxu0 0.0
    %968 = vmatpush1.msra.mxu0 0.0
    %969 = vmatprep.subr.mxu0 0.0
    %970 = vmatpush1.msra.mxu0 0.0
    %971 = vmatprep.subr.mxu0 0.0
    %972 = vmatpush1.msra.mxu0 0.0
    %973 = vmatprep.subr.mxu0 0.0
    %974 = vmatpush1.msra.mxu0 0.0
    %975 = vmatprep.subr.mxu0 0.0
    %976 = vmatpush1.msra.mxu0 0.0
    %977 = vmatprep.subr.mxu0 0.0
    %978 = vmatpush1.msra.mxu0 0.0
    %979 = vmatprep.subr.mxu0 0.0
    %980 = vmatpush1.msra.mxu0 0.0
    %981 = vmatprep.subr.mxu0 0.0
    %982 = vmatpush1.msra.mxu0 0.0
    %983 = vmatprep.subr.mxu0 0.0
    %984 = vmatpush1.msra.mxu0 0.0
    %985 = vmatprep.subr.mxu0 0.0
    %986 = vmatpush1.msra.mxu0 0.0
    %987 = vmatprep.subr.mxu0 0.0
    %988 = vmatpush1.msra.mxu0 0.0
    %989 = vmatprep.subr.mxu0 0.0
    %990 = vmatpush1.msra.mxu0 0.0
    %991 = vmatprep.subr.mxu0 0.0
    %992 = vmatpush1.msra.mxu0 0.0
    %993 = vmatprep.subr.mxu0 0.0
    %994 = vmatpush1.msra.mxu0 0.0
    %995 = vmatprep.subr.mxu0 0.0
    %996 = vmatpush1.msra.mxu0 0.0
    %997 = vmatprep.subr.mxu0 0.0
    %998 = vmatpush1.msra.mxu0 0.0
    %999 = vmatprep.subr.mxu0 0.0
    %1000 = vmatpush1.msra.mxu0 0.0
    %1001 = vmatprep.subr.mxu0 0.0
    %1002 = vmatpush1.msra.mxu0 0.0
    %1003 = vmatprep.subr.mxu0 0.0
    %1004 = vmatpush1.msra.mxu0 0.0
    %1005 = vmatprep.subr.mxu0 0.0
    %1006 = vmatpush1.msra.mxu0 0.0
    %1007 = vmatprep.subr.mxu0 0.0
    %1008 = vmatpush1.msra.mxu0 0.0
    %1009 = vmatprep.subr.mxu0 0.0
    %1010 = vmatpush1.msra.mxu0 0.0
    %1011 = vmatprep.subr.mxu0 0.0
    %1012 = vmatpush1.msra.mxu0 0.0
    %1013 = vmatprep.mubr.f32.mxu0 0.0
    %1014 = vmatmul.mubr.f32.gmra.mrb[0].mxu0 %v944
    %v1015 = vpop.f32.mrb[0].mxu0
    %v1016 = vadd.f32 0.0, %v1015
    %v1017 = vpop.f32.mrb[0].mxu0
    %1018 = vmatprep.mubr.f32.mxu0 0.0
    %1019 = vmatmul.mubr.f32.gmra.mrb[0].mxu0 %v947
    %v1020 = vpop.f32.mrb[0].mxu0
    %v1021 = vadd.f32 0.0, %v1020
    %v1022 = vpop.f32.mrb[0].mxu0
    %1023 = vdwg.mxu0
    %v1025 = vsel %vm278, %v528, 0
    %v1028 = vsel %vm278, %v604, 0
    %1030 = vmatprep.subr.mxu0 0.0
    %1031 = vmatpush1.msra.mxu0 %v607
    %1032 = vmatprep.subr.mxu0 0.0
    %1033 = vmatpush1.msra.mxu0 %v608
    %1034 = vmatprep.subr.mxu0 0.0
    %1035 = vmatpush1.msra.mxu0 0.0
    %1036 = vmatprep.subr.mxu0 0.0
    %1037 = vmatpush1.msra.mxu0 0.0
    %1038 = vmatprep.subr.mxu0 0.0
    %1039 = vmatpush1.msra.mxu0 0.0
    %1040 = vmatprep.subr.mxu0 0.0
    %1041 = vmatpush1.msra.mxu0 0.0
    %1042 = vmatprep.subr.mxu0 0.0
    %1043 = vmatpush1.msra.mxu0 0.0
    %1044 = vmatprep.subr.mxu0 0.0
    %1045 = vmatpush1.msra.mxu0 0.0
    %1046 = vmatprep.subr.mxu0 0.0
    %1047 = vmatpush1.msra.mxu0 0.0
    %1048 = vmatprep.subr.mxu0 0.0
    %1049 = vmatpush1.msra.mxu0 0.0
    %1050 = vmatprep.subr.mxu0 0.0
    %1051 = vmatpush1.msra.mxu0 0.0
    %1052 = vmatprep.subr.mxu0 0.0
    %1053 = vmatpush1.msra.mxu0 0.0
    %1054 = vmatprep.subr.mxu0 0.0
    %1055 = vmatpush1.msra.mxu0 0.0
    %1056 = vmatprep.subr.mxu0 0.0
    %1057 = vmatpush1.msra.mxu0 0.0
    %1058 = vmatprep.subr.mxu0 0.0
    %1059 = vmatpush1.msra.mxu0 0.0
    %1060 = vmatprep.subr.mxu0 0.0
    %1061 = vmatpush1.msra.mxu0 0.0
    %1062 = vmatprep.subr.mxu0 0.0
    %1063 = vmatpush1.msra.mxu0 0.0
    %1064 = vmatprep.subr.mxu0 0.0
    %1065 = vmatpush1.msra.mxu0 0.0
    %1066 = vmatprep.subr.mxu0 0.0
    %1067 = vmatpush1.msra.mxu0 0.0
    %1068 = vmatprep.subr.mxu0 0.0
    %1069 = vmatpush1.msra.mxu0 0.0
    %1070 = vmatprep.subr.mxu0 0.0
    %1071 = vmatpush1.msra.mxu0 0.0
    %1072 = vmatprep.subr.mxu0 0.0
    %1073 = vmatpush1.msra.mxu0 0.0
    %1074 = vmatprep.subr.mxu0 0.0
    %1075 = vmatpush1.msra.mxu0 0.0
    %1076 = vmatprep.subr.mxu0 0.0
    %1077 = vmatpush1.msra.mxu0 0.0
    %1078 = vmatprep.subr.mxu0 0.0
    %1079 = vmatpush1.msra.mxu0 0.0
    %1080 = vmatprep.subr.mxu0 0.0
    %1081 = vmatpush1.msra.mxu0 0.0
    %1082 = vmatprep.subr.mxu0 0.0
    %1083 = vmatpush1.msra.mxu0 0.0
    %1084 = vmatprep.subr.mxu0 0.0
    %1085 = vmatpush1.msra.mxu0 0.0
    %1086 = vmatprep.subr.mxu0 0.0
    %1087 = vmatpush1.msra.mxu0 0.0
    %1088 = vmatprep.subr.mxu0 0.0
    %1089 = vmatpush1.msra.mxu0 0.0
    %1090 = vmatprep.subr.mxu0 0.0
    %1091 = vmatpush1.msra.mxu0 0.0
    %1092 = vmatprep.subr.mxu0 0.0
    %1093 = vmatpush1.msra.mxu0 0.0
    %1094 = vmatprep.mubr.f32.mxu0 0.0
    %1095 = vmatmul.mubr.f32.gmra.mrb[0].mxu0 %v1025
    %v1096 = vpop.f32.mrb[0].mxu0
    %v1097 = vadd.f32 %v1016, %v1096
    %v1098 = vpop.f32.mrb[0].mxu0
    %1099 = vmatprep.mubr.f32.mxu0 0.0
    %1100 = vmatmul.mubr.f32.gmra.mrb[0].mxu0 %v1028
    %v1101 = vpop.f32.mrb[0].mxu0
    %v1102 = vadd.f32 %v1021, %v1101
    %v1103 = vpop.f32.mrb[0].mxu0
    %1104 = vdwg.mxu0
    %v1105 = vld [vmem:[%s3 + $0x1] sm:$0x1]
    %v1106 = vlaneseq
    %v1107 = vshrl.u32 %v1106, 7
    %v1108 = vsub.s32 0, %v1107
    %v1109 = vrot.slane %v1105, %v1108
    %v1110 = vadd.f32 %v1097, %v1109
    %v1111 = vadd.f32 %v1102, %v1109
    %v1112 = vadd.f32 %v183, %v1110
    %v1113 = vadd.f32 %v184, %v1111
    %v1114 = vld [vmem:[%s3 + $0x2] sm:$0x1]
    %v1115 = vld [vmem:[%s3 + $0x3] sm:$0x1]
    %v1116 = vsel %vm145, %v1112, 0.0
    %1117 = vadd.xlane.f32.xlu0 %v1116
    %v1118 = vpop.xlane.xlu0 %1117
    %v1119 = vsel %vm145, %v1113, 0.0
    %1120 = vadd.xlane.f32.xlu0 %v1119
    %v1121 = vpop.xlane.xlu0 %1120
    %v1122 = vmul.f32 %v1118, %v152
    %v1123 = vmul.f32 %v1121, %v152
    %v1124 = vsub.f32 %v1112, %v1122
    %v1125 = vsub.f32 %v1113, %v1123
    %v1126 = vmul.f32 %v1124, %v1124
    %v1127 = vmul.f32 %v1125, %v1125
    %v1128 = vsel %vm145, %v1126, 0.0
    %1129 = vadd.xlane.f32.xlu0 %v1128
    %v1130 = vpop.xlane.xlu0 %1129
    %v1131 = vsel %vm145, %v1127, 0.0
    %1132 = vadd.xlane.f32.xlu0 %v1131
    %v1133 = vpop.xlane.xlu0 %1132
    %v1134 = vmul.f32 %v1130, %v152
    %v1135 = vmul.f32 %v1133, %v152
    %v1136 = vadd.f32 %v1134, 1e-12
    %v1137 = vadd.f32 %v1135, 1e-12
    %v1138 = vrsqrt.pop %v1136
    %v1139 = vrsqrt.pop %v1137
    %v1140 = vmul.f32 %v1124, %v1138
    %v1141 = vmul.f32 %v1125, %v1139
    %v1142 = vlaneseq
    %v1143 = vshrl.u32 %v1142, 7
    %v1144 = vsub.s32 0, %v1143
    %v1145 = vrot.slane %v1114, %v1144
    %v1146 = vmul.f32 %v1140, %v1145
    %v1147 = vmul.f32 %v1141, %v1145
    %v1148 = vlaneseq
    %v1149 = vshrl.u32 %v1148, 7
    %v1150 = vsub.s32 0, %v1149
    %v1151 = vrot.slane %v1115, %v1150
    %v1152 = vadd.f32 %v1146, %v1151
    %v1153 = vadd.f32 %v1147, %v1151
    %v1154 = vld [vmem:[#allocation2 + $0x40] sm:$0xff]
    %v1155 = vld [vmem:[#allocation2 + $0x48] sm:$0xff]
    %v1156 = vld [vmem:[#allocation2 + $0x50] sm:$0xff]
    %v1157 = vld [vmem:[#allocation2 + $0x58] sm:$0xff]
    %v1158 = vld [vmem:[%s3 + $0x4] sm:$0x1]
    %v1159 = vlaneseq
    %v1160 = vshrl.u32 %v1159, 7
    %v1161 = vsub.s32 0, %v1160
    %v1162 = vrot.slane %v1158, %v1161
    %v1164 = vsel %vm145, %v1152, 0
    %v1167 = vsel %vm145, %v1153, 0
    %1169 = vmatprep.subr.mxu0 0.0
    %1170 = vmatpush1.msra.mxu0 %v1154
    %1171 = vmatprep.subr.mxu0 0.0
    %1172 = vmatpush1.msra.mxu0 %v1155
    %1173 = vmatprep.subr.mxu0 0.0
    %1174 = vmatpush1.msra.mxu0 %v1156
    %1175 = vmatprep.subr.mxu0 0.0
    %1176 = vmatpush1.msra.mxu0 %v1157
    %1177 = vmatprep.subr.mxu0 0.0
    %1178 = vmatpush1.msra.mxu0 0.0
    %1179 = vmatprep.subr.mxu0 0.0
    %1180 = vmatpush1.msra.mxu0 0.0
    %1181 = vmatprep.subr.mxu0 0.0
    %1182 = vmatpush1.msra.mxu0 0.0
    %1183 = vmatprep.subr.mxu0 0.0
    %1184 = vmatpush1.msra.mxu0 0.0
    %1185 = vmatprep.subr.mxu0 0.0
    %1186 = vmatpush1.msra.mxu0 0.0
    %1187 = vmatprep.subr.mxu0 0.0
    %1188 = vmatpush1.msra.mxu0 0.0
    %1189 = vmatprep.subr.mxu0 0.0
    %1190 = vmatpush1.msra.mxu0 0.0
    %1191 = vmatprep.subr.mxu0 0.0
    %1192 = vmatpush1.msra.mxu0 0.0
    %1193 = vmatprep.subr.mxu0 0.0
    %1194 = vmatpush1.msra.mxu0 0.0
    %1195 = vmatprep.subr.mxu0 0.0
    %1196 = vmatpush1.msra.mxu0 0.0
    %1197 = vmatprep.subr.mxu0 0.0
    %1198 = vmatpush1.msra.mxu0 0.0
    %1199 = vmatprep.subr.mxu0 0.0
    %1200 = vmatpush1.msra.mxu0 0.0
    %1201 = vmatprep.subr.mxu0 0.0
    %1202 = vmatpush1.msra.mxu0 0.0
    %1203 = vmatprep.subr.mxu0 0.0
    %1204 = vmatpush1.msra.mxu0 0.0
    %1205 = vmatprep.subr.mxu0 0.0
    %1206 = vmatpush1.msra.mxu0 0.0
    %1207 = vmatprep.subr.mxu0 0.0
    %1208 = vmatpush1.msra.mxu0 0.0
    %1209 = vmatprep.subr.mxu0 0.0
    %1210 = vmatpush1.msra.mxu0 0.0
    %1211 = vmatprep.subr.mxu0 0.0
    %1212 = vmatpush1.msra.mxu0 0.0
    %1213 = vmatprep.subr.mxu0 0.0
    %1214 = vmatpush1.msra.mxu0 0.0
    %1215 = vmatprep.subr.mxu0 0.0
    %1216 = vmatpush1.msra.mxu0 0.0
    %1217 = vmatprep.subr.mxu0 0.0
    %1218 = vmatpush1.msra.mxu0 0.0
    %1219 = vmatprep.subr.mxu0 0.0
    %1220 = vmatpush1.msra.mxu0 0.0
    %1221 = vmatprep.subr.mxu0 0.0
    %1222 = vmatpush1.msra.mxu0 0.0
    %1223 = vmatprep.subr.mxu0 0.0
    %1224 = vmatpush1.msra.mxu0 0.0
    %1225 = vmatprep.subr.mxu0 0.0
    %1226 = vmatpush1.msra.mxu0 0.0
    %1227 = vmatprep.subr.mxu0 0.0
    %1228 = vmatpush1.msra.mxu0 0.0
    %1229 = vmatprep.subr.mxu0 0.0
    %1230 = vmatpush1.msra.mxu0 0.0
    %1231 = vmatprep.subr.mxu0 0.0
    %1232 = vmatpush1.msra.mxu0 0.0
    %1233 = vmatprep.mubr.f32.mxu0 0.0
    %1234 = vmatmul.mubr.f32.gmra.mrb[0].mxu0 %v1164
    %v1235 = vpop.f32.mrb[0].mxu0
    %v1236 = vadd.f32 %v1162, %v1235
    %v1237 = vpop.f32.mrb[0].mxu0
    %1238 = vmatprep.mubr.f32.mxu0 0.0
    %1239 = vmatmul.mubr.f32.gmra.mrb[0].mxu0 %v1167
    %v1240 = vpop.f32.mrb[0].mxu0
    %v1241 = vadd.f32 %v1162, %v1240
    %v1242 = vpop.f32.mrb[0].mxu0
    %1243 = vdwg.mxu0
    %v1244 = vmul.f32 %v1236, 0.5
    %v1245 = vmul.f32 %v1241, 0.5
    %v1246 = vmul.f32 %v1236, 0.044715
    %v1247 = vmul.f32 %v1241, 0.044715
    %v1248 = vmul.f32 %v1246, %v1236
    %v1249 = vmul.f32 %v1247, %v1241
    %v1250 = vmul.f32 %v1248, %v1236
    %v1251 = vmul.f32 %v1249, %v1241
    %v1252 = vadd.f32 %v1236, %v1250
    %v1253 = vadd.f32 %v1241, %v1251
    %v1254 = vmul.f32 %v1252, 0.7978846
    %v1255 = vmul.f32 %v1253, 0.7978846
    %v1256 = vtanh.pop %v1254
    %v1257 = vtanh.pop %v1255
    %v1258 = vadd.f32 %v1256, 1.0
    %v1259 = vadd.f32 %v1257, 1.0
    %v1260 = vmul.f32 %v1244, %v1258
    %v1261 = vmul.f32 %v1245, %v1259
    %v1262 = vld [vmem:[#allocation2 + $0x60] sm:$0xff]
    %v1263 = vld [vmem:[#allocation2 + $0x68] sm:$0xff]
    %v1264 = vld [vmem:[#allocation2 + $0x70] sm:$0xff]
    %v1265 = vld [vmem:[#allocation2 + $0x78] sm:$0xff]
    %v1266 = vld [vmem:[#allocation2 + $0x80] sm:$0xff]
    %v1267 = vld [vmem:[#allocation2 + $0x88] sm:$0xff]
    %v1268 = vld [vmem:[#allocation2 + $0x90] sm:$0xff]
    %v1269 = vld [vmem:[#allocation2 + $0x98] sm:$0xff]
    %v1270 = vld [vmem:[%s3 + $0x5] sm:$0x1]
    %v1271 = vlaneseq
    %v1272 = vshrl.u32 %v1271, 7
    %v1273 = vsub.s32 0, %v1272
    %v1274 = vrot.slane %v1270, %v1273
    %v1276 = vsel %vm61, %v1260, 0
    %v1279 = vsel %vm61, %v1261, 0
    %1281 = vmatprep.subr.mxu0 0.0
    %1282 = vmatpush1.msra.mxu0 %v1262
    %1283 = vmatprep.subr.mxu0 0.0
    %1284 = vmatpush1.msra.mxu0 %v1263
    %1285 = vmatprep.subr.mxu0 0.0
    %1286 = vmatpush1.msra.mxu0 %v1264
    %1287 = vmatprep.subr.mxu0 0.0
    %1288 = vmatpush1.msra.mxu0 %v1265
    %1289 = vmatprep.subr.mxu0 0.0
    %1290 = vmatpush1.msra.mxu0 %v1266
    %1291 = vmatprep.subr.mxu0 0.0
    %1292 = vmatpush1.msra.mxu0 %v1267
    %1293 = vmatprep.subr.mxu0 0.0
    %1294 = vmatpush1.msra.mxu0 %v1268
    %1295 = vmatprep.subr.mxu0 0.0
    %1296 = vmatpush1.msra.mxu0 %v1269
    %1297 = vmatprep.subr.mxu0 0.0
    %1298 = vmatpush1.msra.mxu0 0.0
    %1299 = vmatprep.subr.mxu0 0.0
    %1300 = vmatpush1.msra.mxu0 0.0
    %1301 = vmatprep.subr.mxu0 0.0
    %1302 = vmatpush1.msra.mxu0 0.0
    %1303 = vmatprep.subr.mxu0 0.0
    %1304 = vmatpush1.msra.mxu0 0.0
    %1305 = vmatprep.subr.mxu0 0.0
    %1306 = vmatpush1.msra.mxu0 0.0
    %1307 = vmatprep.subr.mxu0 0.0
    %1308 = vmatpush1.msra.mxu0 0.0
    %1309 = vmatprep.subr.mxu0 0.0
    %1310 = vmatpush1.msra.mxu0 0.0
    %1311 = vmatprep.subr.mxu0 0.0
    %1312 = vmatpush1.msra.mxu0 0.0
    %1313 = vmatprep.subr.mxu0 0.0
    %1314 = vmatpush1.msra.mxu0 0.0
    %1315 = vmatprep.subr.mxu0 0.0
    %1316 = vmatpush1.msra.mxu0 0.0
    %1317 = vmatprep.subr.mxu0 0.0
    %1318 = vmatpush1.msra.mxu0 0.0
    %1319 = vmatprep.subr.mxu0 0.0
    %1320 = vmatpush1.msra.mxu0 0.0
    %1321 = vmatprep.subr.mxu0 0.0
    %1322 = vmatpush1.msra.mxu0 0.0
    %1323 = vmatprep.subr.mxu0 0.0
    %1324 = vmatpush1.msra.mxu0 0.0
    %1325 = vmatprep.subr.mxu0 0.0
    %1326 = vmatpush1.msra.mxu0 0.0
    %1327 = vmatprep.subr.mxu0 0.0
    %1328 = vmatpush1.msra.mxu0 0.0
    %1329 = vmatprep.subr.mxu0 0.0
    %1330 = vmatpush1.msra.mxu0 0.0
    %1331 = vmatprep.subr.mxu0 0.0
    %1332 = vmatpush1.msra.mxu0 0.0
    %1333 = vmatprep.subr.mxu0 0.0
    %1334 = vmatpush1.msra.mxu0 0.0
    %1335 = vmatprep.subr.mxu0 0.0
    %1336 = vmatpush1.msra.mxu0 0.0
    %1337 = vmatprep.subr.mxu0 0.0
    %1338 = vmatpush1.msra.mxu0 0.0
    %1339 = vmatprep.subr.mxu0 0.0
    %1340 = vmatpush1.msra.mxu0 0.0
    %1341 = vmatprep.subr.mxu0 0.0
    %1342 = vmatpush1.msra.mxu0 0.0
    %1343 = vmatprep.subr.mxu0 0.0
    %1344 = vmatpush1.msra.mxu0 0.0
    %1345 = vmatprep.mubr.f32.mxu0 0.0
    %1346 = vmatmul.mubr.f32.gmra.mrb[0].mxu0 %v1276
    %v1347 = vpop.f32.mrb[0].mxu0
    %v1348 = vadd.f32 %v1274, %v1347
    %v1349 = vpop.f32.mrb[0].mxu0
    %1350 = vmatprep.mubr.f32.mxu0 0.0
    %1351 = vmatmul.mubr.f32.gmra.mrb[0].mxu0 %v1279
    %v1352 = vpop.f32.mrb[0].mxu0
    %v1353 = vadd.f32 %v1274, %v1352
    %v1354 = vpop.f32.mrb[0].mxu0
    %1355 = vdwg.mxu0
    %v1356 = vadd.f32 %v1152, %v1348
    %v1357 = vadd.f32 %v1153, %v1353
    %v1358 = vld [vmem:[%s3 + $0x6] sm:$0x1]
    %v1359 = vld [vmem:[%s3 + $0x7] sm:$0x1]
    %v1360 = vsel %vm145, %v1356, 0.0
    %1361 = vadd.xlane.f32.xlu0 %v1360
    %v1362 = vpop.xlane.xlu0 %1361
    %v1363 = vsel %vm145, %v1357, 0.0
    %1364 = vadd.xlane.f32.xlu0 %v1363
    %v1365 = vpop.xlane.xlu0 %1364
    %v1366 = vmul.f32 %v1362, %v152
    %v1367 = vmul.f32 %v1365, %v152
    %v1368 = vsub.f32 %v1356, %v1366
    %v1369 = vsub.f32 %v1357, %v1367
    %v1370 = vmul.f32 %v1368, %v1368
    %v1371 = vmul.f32 %v1369, %v1369
    %v1372 = vsel %vm145, %v1370, 0.0
    %1373 = vadd.xlane.f32.xlu0 %v1372
    %v1374 = vpop.xlane.xlu0 %1373
    %v1375 = vsel %vm145, %v1371, 0.0
    %1376 = vadd.xlane.f32.xlu0 %v1375
    %v1377 = vpop.xlane.xlu0 %1376
    %v1378 = vmul.f32 %v1374, %v152
    %v1379 = vmul.f32 %v1377, %v152
    %v1380 = vadd.f32 %v1378, 1e-12
    %v1381 = vadd.f32 %v1379, 1e-12
    %v1382 = vrsqrt.pop %v1380
    %v1383 = vrsqrt.pop %v1381
    %v1384 = vmul.f32 %v1368, %v1382
    %v1385 = vmul.f32 %v1369, %v1383
    %v1386 = vlaneseq
    %v1387 = vshrl.u32 %v1386, 7
    %v1388 = vsub.s32 0, %v1387
    %v1389 = vrot.slane %v1358, %v1388
    %v1390 = vmul.f32 %v1384, %v1389
    %v1391 = vmul.f32 %v1385, %v1389
    %v1392 = vlaneseq
    %v1393 = vshrl.u32 %v1392, 7
    %v1394 = vsub.s32 0, %v1393
    %v1395 = vrot.slane %v1359, %v1394
    %v1396 = vadd.f32 %v1390, %v1395
    %v1397 = vadd.f32 %v1391, %v1395
    %s1398 = scalar_lea.vmem [#allocation2], 160
    %v1399 = vld [vmem:[%s1398] sm:$0xff]
    %v1400 = vld [vmem:[%s1398 + $0x8] sm:$0xff]
    %v1401 = vld [vmem:[%s1398 + $0x10] sm:$0xff]
    %v1402 = vld [vmem:[%s1398 + $0x18] sm:$0xff]
    %s1403 = scalar_lea.vmem %s3, 8
    %v1404 = vld [vmem:[%s1403] sm:$0x1]
    %v1405 = vlaneseq
    %v1406 = vshrl.u32 %v1405, 7
    %v1407 = vsub.s32 0, %v1406
    %v1408 = vrot.slane %v1404, %v1407
    %v1410 = vsel %vm145, %v1396, 0
    %v1413 = vsel %vm145, %v1397, 0
    %1415 = vmatprep.subr.mxu0 0.0
    %1416 = vmatpush1.msra.mxu0 %v1399
    %1417 = vmatprep.subr.mxu0 0.0
    %1418 = vmatpush1.msra.mxu0 %v1400
    %1419 = vmatprep.subr.mxu0 0.0
    %1420 = vmatpush1.msra.mxu0 %v1401
    %1421 = vmatprep.subr.mxu0 0.0
    %1422 = vmatpush1.msra.mxu0 %v1402
    %1423 = vmatprep.subr.mxu0 0.0
    %1424 = vmatpush1.msra.mxu0 0.0
    %1425 = vmatprep.subr.mxu0 0.0
    %1426 = vmatpush1.msra.mxu0 0.0
    %1427 = vmatprep.subr.mxu0 0.0
    %1428 = vmatpush1.msra.mxu0 0.0
    %1429 = vmatprep.subr.mxu0 0.0
    %1430 = vmatpush1.msra.mxu0 0.0
    %1431 = vmatprep.subr.mxu0 0.0
    %1432 = vmatpush1.msra.mxu0 0.0
    %1433 = vmatprep.subr.mxu0 0.0
    %1434 = vmatpush1.msra.mxu0 0.0
    %1435 = vmatprep.subr.mxu0 0.0
    %1436 = vmatpush1.msra.mxu0 0.0
    %1437 = vmatprep.subr.mxu0 0.0
    %1438 = vmatpush1.msra.mxu0 0.0
    %1439 = vmatprep.subr.mxu0 0.0
    %1440 = vmatpush1.msra.mxu0 0.0
    %1441 = vmatprep.subr.mxu0 0.0
    %1442 = vmatpush1.msra.mxu0 0.0
    %1443 = vmatprep.subr.mxu0 0.0
    %1444 = vmatpush1.msra.mxu0 0.0
    %1445 = vmatprep.subr.mxu0 0.0
    %1446 = vmatpush1.msra.mxu0 0.0
    %1447 = vmatprep.subr.mxu0 0.0
    %1448 = vmatpush1.msra.mxu0 0.0
    %1449 = vmatprep.subr.mxu0 0.0
    %1450 = vmatpush1.msra.mxu0 0.0
    %1451 = vmatprep.subr.mxu0 0.0
    %1452 = vmatpush1.msra.mxu0 0.0
    %1453 = vmatprep.subr.mxu0 0.0
    %1454 = vmatpush1.msra.mxu0 0.0
    %1455 = vmatprep.subr.mxu0 0.0
    %1456 = vmatpush1.msra.mxu0 0.0
    %1457 = vmatprep.subr.mxu0 0.0
    %1458 = vmatpush1.msra.mxu0 0.0
    %1459 = vmatprep.subr.mxu0 0.0
    %1460 = vmatpush1.msra.mxu0 0.0
    %1461 = vmatprep.subr.mxu0 0.0
    %1462 = vmatpush1.msra.mxu0 0.0
    %1463 = vmatprep.subr.mxu0 0.0
    %1464 = vmatpush1.msra.mxu0 0.0
    %1465 = vmatprep.subr.mxu0 0.0
    %1466 = vmatpush1.msra.mxu0 0.0
    %1467 = vmatprep.subr.mxu0 0.0
    %1468 = vmatpush1.msra.mxu0 0.0
    %1469 = vmatprep.subr.mxu0 0.0
    %1470 = vmatpush1.msra.mxu0 0.0
    %1471 = vmatprep.subr.mxu0 0.0
    %1472 = vmatpush1.msra.mxu0 0.0
    %1473 = vmatprep.subr.mxu0 0.0
    %1474 = vmatpush1.msra.mxu0 0.0
    %1475 = vmatprep.subr.mxu0 0.0
    %1476 = vmatpush1.msra.mxu0 0.0
    %1477 = vmatprep.subr.mxu0 0.0
    %1478 = vmatpush1.msra.mxu0 0.0
    %1479 = vmatprep.mubr.f32.mxu0 0.0
    %1480 = vmatmul.mubr.f32.gmra.mrb[0].mxu0 %v1410
    %v1481 = vpop.f32.mrb[0].mxu0
    %v1482 = vadd.f32 %v1408, %v1481
    %v1483 = vpop.f32.mrb[0].mxu0
    %1484 = vmatprep.mubr.f32.mxu0 0.0
    %1485 = vmatmul.mubr.f32.gmra.mrb[0].mxu0 %v1413
    %v1486 = vpop.f32.mrb[0].mxu0
    %v1487 = vadd.f32 %v1408, %v1486
    %v1488 = vpop.f32.mrb[0].mxu0
    %1489 = vdwg.mxu0
    %1491 = vrot.lane.b32.xlu0 %v1482, 96
    %v1492 = vpop.permute.xlu0 %1491
    %v1493 = vsel %vm278, %v1482, 0
    %v1495 = vsel %vm278, %v1492, 0
    %1497 = vmatprep.subr.mxu0 0.0
    %1498 = vmatpush1.xpose.msra.mxu0 %v1495
    %1499 = vmatprep.subr.mxu0 0.0
    %1500 = vmatpush1.xpose.msra.mxu0 0.0
    %1501 = vmatprep.subr.mxu0 0.0
    %1502 = vmatpush1.xpose.msra.mxu0 0.0
    %1503 = vmatprep.subr.mxu0 0.0
    %1504 = vmatpush1.xpose.msra.mxu0 0.0
    %1505 = vmatprep.subr.mxu0 0.0
    %1506 = vmatpush1.xpose.msra.mxu0 0.0
    %1507 = vmatprep.subr.mxu0 0.0
    %1508 = vmatpush1.xpose.msra.mxu0 0.0
    %1509 = vmatprep.subr.mxu0 0.0
    %1510 = vmatpush1.xpose.msra.mxu0 0.0
    %1511 = vmatprep.subr.mxu0 0.0
    %1512 = vmatpush1.xpose.msra.mxu0 0.0
    %1513 = vmatprep.subr.mxu0 0.0
    %1514 = vmatpush1.xpose.msra.mxu0 0.0
    %1515 = vmatprep.subr.mxu0 0.0
    %1516 = vmatpush1.xpose.msra.mxu0 0.0
    %1517 = vmatprep.subr.mxu0 0.0
    %1518 = vmatpush1.xpose.msra.mxu0 0.0
    %1519 = vmatprep.subr.mxu0 0.0
    %1520 = vmatpush1.xpose.msra.mxu0 0.0
    %1521 = vmatprep.subr.mxu0 0.0
    %1522 = vmatpush1.xpose.msra.mxu0 0.0
    %1523 = vmatprep.subr.mxu0 0.0
    %1524 = vmatpush1.xpose.msra.mxu0 0.0
    %1525 = vmatprep.subr.mxu0 0.0
    %1526 = vmatpush1.xpose.msra.mxu0 0.0
    %1527 = vmatprep.subr.mxu0 0.0
    %1528 = vmatpush1.xpose.msra.mxu0 0.0
    %1529 = vmatprep.subr.mxu0 0.0
    %1530 = vmatpush1.xpose.msra.mxu0 0.0
    %1531 = vmatprep.subr.mxu0 0.0
    %1532 = vmatpush1.xpose.msra.mxu0 0.0
    %1533 = vmatprep.subr.mxu0 0.0
    %1534 = vmatpush1.xpose.msra.mxu0 0.0
    %1535 = vmatprep.subr.mxu0 0.0
    %1536 = vmatpush1.xpose.msra.mxu0 0.0
    %1537 = vmatprep.subr.mxu0 0.0
    %1538 = vmatpush1.xpose.msra.mxu0 0.0
    %1539 = vmatprep.subr.mxu0 0.0
    %1540 = vmatpush1.xpose.msra.mxu0 0.0
    %1541 = vmatprep.subr.mxu0 0.0
    %1542 = vmatpush1.xpose.msra.mxu0 0.0
    %1543 = vmatprep.subr.mxu0 0.0
    %1544 = vmatpush1.xpose.msra.mxu0 0.0
    %1545 = vmatprep.subr.mxu0 0.0
    %1546 = vmatpush1.xpose.msra.mxu0 0.0
    %1547 = vmatprep.subr.mxu0 0.0
    %1548 = vmatpush1.xpose.msra.mxu0 0.0
    %1549 = vmatprep.subr.mxu0 0.0
    %1550 = vmatpush1.xpose.msra.mxu0 0.0
    %1551 = vmatprep.subr.mxu0 0.0
    %1552 = vmatpush1.xpose.msra.mxu0 0.0
    %1553 = vmatprep.subr.mxu0 0.0
    %1554 = vmatpush1.xpose.msra.mxu0 0.0
    %1555 = vmatprep.subr.mxu0 0.0
    %1556 = vmatpush1.xpose.msra.mxu0 0.0
    %1557 = vmatprep.subr.mxu0 0.0
    %1558 = vmatpush1.xpose.msra.mxu0 0.0
    %1559 = vmatprep.subr.mxu0 0.0
    %1560 = vmatpush1.xpose.msra.mxu0 0.0
    %1561 = vmatprep.mubr.f32.mxu0 0.0
    %1562 = vmatmul.mubr.f32.gmra.mrb[0].mxu0 %v1493
    %v1563 = vpop.f32.mrb[0].mxu0
    %v1564 = vadd.f32 0.0, %v1563
    %v1565 = vpop.f32.mrb[0].mxu0
    %1566 = vdwg.mxu0
    %1568 = vrot.lane.b32.xlu0 %v1487, 96
    %v1569 = vpop.permute.xlu0 %1568
    %v1570 = vsel %vm278, %v1487, 0
    %v1572 = vsel %vm278, %v1569, 0
    %1574 = vmatprep.subr.mxu0 0.0
    %1575 = vmatpush1.xpose.msra.mxu0 %v1572
    %1576 = vmatprep.subr.mxu0 0.0
    %1577 = vmatpush1.xpose.msra.mxu0 0.0
    %1578 = vmatprep.subr.mxu0 0.0
    %1579 = vmatpush1.xpose.msra.mxu0 0.0
    %1580 = vmatprep.subr.mxu0 0.0
    %1581 = vmatpush1.xpose.msra.mxu0 0.0
    %1582 = vmatprep.subr.mxu0 0.0
    %1583 = vmatpush1.xpose.msra.mxu0 0.0
    %1584 = vmatprep.subr.mxu0 0.0
    %1585 = vmatpush1.xpose.msra.mxu0 0.0
    %1586 = vmatprep.subr.mxu0 0.0
    %1587 = vmatpush1.xpose.msra.mxu0 0.0
    %1588 = vmatprep.subr.mxu0 0.0
    %1589 = vmatpush1.xpose.msra.mxu0 0.0
    %1590 = vmatprep.subr.mxu0 0.0
    %1591 = vmatpush1.xpose.msra.mxu0 0.0
    %1592 = vmatprep.subr.mxu0 0.0
    %1593 = vmatpush1.xpose.msra.mxu0 0.0
    %1594 = vmatprep.subr.mxu0 0.0
    %1595 = vmatpush1.xpose.msra.mxu0 0.0
    %1596 = vmatprep.subr.mxu0 0.0
    %1597 = vmatpush1.xpose.msra.mxu0 0.0
    %1598 = vmatprep.subr.mxu0 0.0
    %1599 = vmatpush1.xpose.msra.mxu0 0.0
    %1600 = vmatprep.subr.mxu0 0.0
    %1601 = vmatpush1.xpose.msra.mxu0 0.0
    %1602 = vmatprep.subr.mxu0 0.0
    %1603 = vmatpush1.xpose.msra.mxu0 0.0
    %1604 = vmatprep.subr.mxu0 0.0
    %1605 = vmatpush1.xpose.msra.mxu0 0.0
    %1606 = vmatprep.subr.mxu0 0.0
    %1607 = vmatpush1.xpose.msra.mxu0 0.0
    %1608 = vmatprep.subr.mxu0 0.0
    %1609 = vmatpush1.xpose.msra.mxu0 0.0
    %1610 = vmatprep.subr.mxu0 0.0
    %1611 = vmatpush1.xpose.msra.mxu0 0.0
    %1612 = vmatprep.subr.mxu0 0.0
    %1613 = vmatpush1.xpose.msra.mxu0 0.0
    %1614 = vmatprep.subr.mxu0 0.0
    %1615 = vmatpush1.xpose.msra.mxu0 0.0
    %1616 = vmatprep.subr.mxu0 0.0
    %1617 = vmatpush1.xpose.msra.mxu0 0.0
    %1618 = vmatprep.subr.mxu0 0.0
    %1619 = vmatpush1.xpose.msra.mxu0 0.0
    %1620 = vmatprep.subr.mxu0 0.0
    %1621 = vmatpush1.xpose.msra.mxu0 0.0
    %1622 = vmatprep.subr.mxu0 0.0
    %1623 = vmatpush1.xpose.msra.mxu0 0.0
    %1624 = vmatprep.subr.mxu0 0.0
    %1625 = vmatpush1.xpose.msra.mxu0 0.0
    %1626 = vmatprep.subr.mxu0 0.0
    %1627 = vmatpush1.xpose.msra.mxu0 0.0
    %1628 = vmatprep.subr.mxu0 0.0
    %1629 = vmatpush1.xpose.msra.mxu0 0.0
    %1630 = vmatprep.subr.mxu0 0.0
    %1631 = vmatpush1.xpose.msra.mxu0 0.0
    %1632 = vmatprep.subr.mxu0 0.0
    %1633 = vmatpush1.xpose.msra.mxu0 0.0
    %1634 = vmatprep.subr.mxu0 0.0
    %1635 = vmatpush1.xpose.msra.mxu0 0.0
    %1636 = vmatprep.subr.mxu0 0.0
    %1637 = vmatpush1.xpose.msra.mxu0 0.0
    %1638 = vmatprep.mubr.f32.mxu0 0.0
    %1639 = vmatmul.mubr.f32.gmra.mrb[0].mxu0 %v1570
    %v1640 = vpop.f32.mrb[0].mxu0
    %v1641 = vadd.f32 0.0, %v1640
    %v1642 = vpop.f32.mrb[0].mxu0
    %1643 = vdwg.mxu0
    %v1644 = vmul.f32 %v1564, 0.25
    %v1645 = vmul.f32 %v1641, 0.25
    %v1646 = vsel %vm432, %v1644, -inf
    %1647 = vmax.xlane.f32.xlu0 %v1646
    %v1648 = vpop.xlane.xlu0 %1647
    %v1649 = vsel %vm432, %v1645, -inf
    %1650 = vmax.xlane.f32.xlu0 %v1649
    %v1651 = vpop.xlane.xlu0 %1650
    %v1652 = vsub.f32 %v1644, %v1648
    %v1653 = vsub.f32 %v1645, %v1651
    %v1654 = vmul.f32 %v1652, 1.442695
    %v1655 = vpow.pop %v1654
    %v1656 = vmul.f32 %v1653, 1.442695
    %v1657 = vpow.pop %v1656
    %v1658 = vsel %vm432, %v1655, 0.0
    %1659 = vadd.xlane.f32.xlu0 %v1658
    %v1660 = vpop.xlane.xlu0 %1659
    %v1661 = vsel %vm432, %v1657, 0.0
    %1662 = vadd.xlane.f32.xlu0 %v1661
    %v1663 = vpop.xlane.xlu0 %1662
    %v1664 = vrcp.pop %v1660
    %v1665 = vrcp.pop %v1663
    %v1666 = vmul.f32 %v1655, %v1664
    %v1667 = vmul.f32 %v1657, %v1665
    %1668 = vrot.lane.b32.xlu0 %v1482, 64
    %v1669 = vpop.permute.xlu0 %1668
    %v1672 = vsel %vm432, %v1666, 0
    %1674 = vmatprep.subr.mxu0 0.0
    %1675 = vmatpush1.msra.mxu0 %v1669
    %1676 = vmatprep.subr.mxu0 0.0
    %1677 = vmatpush1.msra.mxu0 0.0
    %1678 = vmatprep.subr.mxu0 0.0
    %1679 = vmatpush1.msra.mxu0 0.0
    %1680 = vmatprep.subr.mxu0 0.0
    %1681 = vmatpush1.msra.mxu0 0.0
    %1682 = vmatprep.subr.mxu0 0.0
    %1683 = vmatpush1.msra.mxu0 0.0
    %1684 = vmatprep.subr.mxu0 0.0
    %1685 = vmatpush1.msra.mxu0 0.0
    %1686 = vmatprep.subr.mxu0 0.0
    %1687 = vmatpush1.msra.mxu0 0.0
    %1688 = vmatprep.subr.mxu0 0.0
    %1689 = vmatpush1.msra.mxu0 0.0
    %1690 = vmatprep.subr.mxu0 0.0
    %1691 = vmatpush1.msra.mxu0 0.0
    %1692 = vmatprep.subr.mxu0 0.0
    %1693 = vmatpush1.msra.mxu0 0.0
    %1694 = vmatprep.subr.mxu0 0.0
    %1695 = vmatpush1.msra.mxu0 0.0
    %1696 = vmatprep.subr.mxu0 0.0
    %1697 = vmatpush1.msra.mxu0 0.0
    %1698 = vmatprep.subr.mxu0 0.0
    %1699 = vmatpush1.msra.mxu0 0.0
    %1700 = vmatprep.subr.mxu0 0.0
    %1701 = vmatpush1.msra.mxu0 0.0
    %1702 = vmatprep.subr.mxu0 0.0
    %1703 = vmatpush1.msra.mxu0 0.0
    %1704 = vmatprep.subr.mxu0 0.0
    %1705 = vmatpush1.msra.mxu0 0.0
    %1706 = vmatprep.subr.mxu0 0.0
    %1707 = vmatpush1.msra.mxu0 0.0
    %1708 = vmatprep.subr.mxu0 0.0
    %1709 = vmatpush1.msra.mxu0 0.0
    %1710 = vmatprep.subr.mxu0 0.0
    %1711 = vmatpush1.msra.mxu0 0.0
    %1712 = vmatprep.subr.mxu0 0.0
    %1713 = vmatpush1.msra.mxu0 0.0
    %1714 = vmatprep.subr.mxu0 0.0
    %1715 = vmatpush1.msra.mxu0 0.0
    %1716 = vmatprep.subr.mxu0 0.0
    %1717 = vmatpush1.msra.mxu0 0.0
    %1718 = vmatprep.subr.mxu0 0.0
    %1719 = vmatpush1.msra.mxu0 0.0
    %1720 = vmatprep.subr.mxu0 0.0
    %1721 = vmatpush1.msra.mxu0 0.0
    %1722 = vmatprep.subr.mxu0 0.0
    %1723 = vmatpush1.msra.mxu0 0.0
    %1724 = vmatprep.subr.mxu0 0.0
    %1725 = vmatpush1.msra.mxu0 0.0
    %1726 = vmatprep.subr.mxu0 0.0
    %1727 = vmatpush1.msra.mxu0 0.0
    %1728 = vmatprep.subr.mxu0 0.0
    %1729 = vmatpush1.msra.mxu0 0.0
    %1730 = vmatprep.subr.mxu0 0.0
    %1731 = vmatpush1.msra.mxu0 0.0
    %1732 = vmatprep.subr.mxu0 0.0
    %1733 = vmatpush1.msra.mxu0 0.0
    %1734 = vmatprep.subr.mxu0 0.0
    %1735 = vmatpush1.msra.mxu0 0.0
    %1736 = vmatprep.subr.mxu0 0.0
    %1737 = vmatpush1.msra.mxu0 0.0
    %1738 = vmatprep.mubr.f32.mxu0 0.0
    %1739 = vmatmul.mubr.f32.gmra.mrb[0].mxu0 %v1672
    %v1740 = vpop.f32.mrb[0].mxu0
    %v1741 = vadd.f32 0.0, %v1740
    %v1742 = vpop.f32.mrb[0].mxu0
    %1743 = vdwg.mxu0
    %1744 = vrot.lane.b32.xlu0 %v1487, 64
    %v1745 = vpop.permute.xlu0 %1744
    %v1748 = vsel %vm432, %v1667, 0
    %1750 = vmatprep.subr.mxu0 0.0
    %1751 = vmatpush1.msra.mxu0 %v1745
    %1752 = vmatprep.subr.mxu0 0.0
    %1753 = vmatpush1.msra.mxu0 0.0
    %1754 = vmatprep.subr.mxu0 0.0
    %1755 = vmatpush1.msra.mxu0 0.0
    %1756 = vmatprep.subr.mxu0 0.0
    %1757 = vmatpush1.msra.mxu0 0.0
    %1758 = vmatprep.subr.mxu0 0.0
    %1759 = vmatpush1.msra.mxu0 0.0
    %1760 = vmatprep.subr.mxu0 0.0
    %1761 = vmatpush1.msra.mxu0 0.0
    %1762 = vmatprep.subr.mxu0 0.0
    %1763 = vmatpush1.msra.mxu0 0.0
    %1764 = vmatprep.subr.mxu0 0.0
    %1765 = vmatpush1.msra.mxu0 0.0
    %1766 = vmatprep.subr.mxu0 0.0
    %1767 = vmatpush1.msra.mxu0 0.0
    %1768 = vmatprep.subr.mxu0 0.0
    %1769 = vmatpush1.msra.mxu0 0.0
    %1770 = vmatprep.subr.mxu0 0.0
    %1771 = vmatpush1.msra.mxu0 0.0
    %1772 = vmatprep.subr.mxu0 0.0
    %1773 = vmatpush1.msra.mxu0 0.0
    %1774 = vmatprep.subr.mxu0 0.0
    %1775 = vmatpush1.msra.mxu0 0.0
    %1776 = vmatprep.subr.mxu0 0.0
    %1777 = vmatpush1.msra.mxu0 0.0
    %1778 = vmatprep.subr.mxu0 0.0
    %1779 = vmatpush1.msra.mxu0 0.0
    %1780 = vmatprep.subr.mxu0 0.0
    %1781 = vmatpush1.msra.mxu0 0.0
    %1782 = vmatprep.subr.mxu0 0.0
    %1783 = vmatpush1.msra.mxu0 0.0
    %1784 = vmatprep.subr.mxu0 0.0
    %1785 = vmatpush1.msra.mxu0 0.0
    %1786 = vmatprep.subr.mxu0 0.0
    %1787 = vmatpush1.msra.mxu0 0.0
    %1788 = vmatprep.subr.mxu0 0.0
    %1789 = vmatpush1.msra.mxu0 0.0
    %1790 = vmatprep.subr.mxu0 0.0
    %1791 = vmatpush1.msra.mxu0 0.0
    %1792 = vmatprep.subr.mxu0 0.0
    %1793 = vmatpush1.msra.mxu0 0.0
    %1794 = vmatprep.subr.mxu0 0.0
    %1795 = vmatpush1.msra.mxu0 0.0
    %1796 = vmatprep.subr.mxu0 0.0
    %1797 = vmatpush1.msra.mxu0 0.0
    %1798 = vmatprep.subr.mxu0 0.0
    %1799 = vmatpush1.msra.mxu0 0.0
    %1800 = vmatprep.subr.mxu0 0.0
    %1801 = vmatpush1.msra.mxu0 0.0
    %1802 = vmatprep.subr.mxu0 0.0
    %1803 = vmatpush1.msra.mxu0 0.0
    %1804 = vmatprep.subr.mxu0 0.0
    %1805 = vmatpush1.msra.mxu0 0.0
    %1806 = vmatprep.subr.mxu0 0.0
    %1807 = vmatpush1.msra.mxu0 0.0
    %1808 = vmatprep.subr.mxu0 0.0
    %1809 = vmatpush1.msra.mxu0 0.0
    %1810 = vmatprep.subr.mxu0 0.0
    %1811 = vmatpush1.msra.mxu0 0.0
    %1812 = vmatprep.subr.mxu0 0.0
    %1813 = vmatpush1.msra.mxu0 0.0
    %1814 = vmatprep.mubr.f32.mxu0 0.0
    %1815 = vmatmul.mubr.f32.gmra.mrb[0].mxu0 %v1748
    %v1816 = vpop.f32.mrb[0].mxu0
    %v1817 = vadd.f32 0.0, %v1816
    %v1818 = vpop.f32.mrb[0].mxu0
    %1819 = vdwg.mxu0
    %v1820 = vld [vmem:[%s1398 + $0x20] sm:$0xff]
    %v1821 = vld [vmem:[%s1398 + $0x28] sm:$0xff]
    %1822 = vrot.lane.b32.xlu0 %v1482, 112
    %v1823 = vpop.permute.xlu0 %1822
    %1824 = vrot.lane.b32.xlu0 %v1482, 80
    %v1825 = vpop.permute.xlu0 %1824
    %v1826 = vsel %vm278, %v1823, 0
    %v1828 = vsel %vm278, %v1825, 0
    %1830 = vmatprep.subr.mxu0 0.0
    %1831 = vmatpush1.xpose.msra.mxu0 %v1828
    %1832 = vmatprep.subr.mxu0 0.0
    %1833 = vmatpush1.xpose.msra.mxu0 0.0
    %1834 = vmatprep.subr.mxu0 0.0
    %1835 = vmatpush1.xpose.msra.mxu0 0.0
    %1836 = vmatprep.subr.mxu0 0.0
    %1837 = vmatpush1.xpose.msra.mxu0 0.0
    %1838 = vmatprep.subr.mxu0 0.0
    %1839 = vmatpush1.xpose.msra.mxu0 0.0
    %1840 = vmatprep.subr.mxu0 0.0
    %1841 = vmatpush1.xpose.msra.mxu0 0.0
    %1842 = vmatprep.subr.mxu0 0.0
    %1843 = vmatpush1.xpose.msra.mxu0 0.0
    %1844 = vmatprep.subr.mxu0 0.0
    %1845 = vmatpush1.xpose.msra.mxu0 0.0
    %1846 = vmatprep.subr.mxu0 0.0
    %1847 = vmatpush1.xpose.msra.mxu0 0.0
    %1848 = vmatprep.subr.mxu0 0.0
    %1849 = vmatpush1.xpose.msra.mxu0 0.0
    %1850 = vmatprep.subr.mxu0 0.0
    %1851 = vmatpush1.xpose.msra.mxu0 0.0
    %1852 = vmatprep.subr.mxu0 0.0
    %1853 = vmatpush1.xpose.msra.mxu0 0.0
    %1854 = vmatprep.subr.mxu0 0.0
    %1855 = vmatpush1.xpose.msra.mxu0 0.0
    %1856 = vmatprep.subr.mxu0 0.0
    %1857 = vmatpush1.xpose.msra.mxu0 0.0
    %1858 = vmatprep.subr.mxu0 0.0
    %1859 = vmatpush1.xpose.msra.mxu0 0.0
    %1860 = vmatprep.subr.mxu0 0.0
    %1861 = vmatpush1.xpose.msra.mxu0 0.0
    %1862 = vmatprep.subr.mxu0 0.0
    %1863 = vmatpush1.xpose.msra.mxu0 0.0
    %1864 = vmatprep.subr.mxu0 0.0
    %1865 = vmatpush1.xpose.msra.mxu0 0.0
    %1866 = vmatprep.subr.mxu0 0.0
    %1867 = vmatpush1.xpose.msra.mxu0 0.0
    %1868 = vmatprep.subr.mxu0 0.0
    %1869 = vmatpush1.xpose.msra.mxu0 0.0
    %1870 = vmatprep.subr.mxu0 0.0
    %1871 = vmatpush1.xpose.msra.mxu0 0.0
    %1872 = vmatprep.subr.mxu0 0.0
    %1873 = vmatpush1.xpose.msra.mxu0 0.0
    %1874 = vmatprep.subr.mxu0 0.0
    %1875 = vmatpush1.xpose.msra.mxu0 0.0
    %1876 = vmatprep.subr.mxu0 0.0
    %1877 = vmatpush1.xpose.msra.mxu0 0.0
    %1878 = vmatprep.subr.mxu0 0.0
    %1879 = vmatpush1.xpose.msra.mxu0 0.0
    %1880 = vmatprep.subr.mxu0 0.0
    %1881 = vmatpush1.xpose.msra.mxu0 0.0
    %1882 = vmatprep.subr.mxu0 0.0
    %1883 = vmatpush1.xpose.msra.mxu0 0.0
    %1884 = vmatprep.subr.mxu0 0.0
    %1885 = vmatpush1.xpose.msra.mxu0 0.0
    %1886 = vmatprep.subr.mxu0 0.0
    %1887 = vmatpush1.xpose.msra.mxu0 0.0
    %1888 = vmatprep.subr.mxu0 0.0
    %1889 = vmatpush1.xpose.msra.mxu0 0.0
    %1890 = vmatprep.subr.mxu0 0.0
    %1891 = vmatpush1.xpose.msra.mxu0 0.0
    %1892 = vmatprep.subr.mxu0 0.0
    %1893 = vmatpush1.xpose.msra.mxu0 0.0
    %1894 = vmatprep.mubr.f32.mxu0 0.0
    %1895 = vmatmul.mubr.f32.gmra.mrb[0].mxu0 %v1826
    %v1896 = vpop.f32.mrb[0].mxu0
    %v1897 = vadd.f32 0.0, %v1896
    %v1898 = vpop.f32.mrb[0].mxu0
    %1899 = vdwg.mxu0
    %1900 = vrot.lane.b32.xlu0 %v1487, 112
    %v1901 = vpop.permute.xlu0 %1900
    %1902 = vrot.lane.b32.xlu0 %v1487, 80
    %v1903 = vpop.permute.xlu0 %1902
    %v1904 = vsel %vm278, %v1901, 0
    %v1906 = vsel %vm278, %v1903, 0
    %1908 = vmatprep.subr.mxu0 0.0
    %1909 = vmatpush1.xpose.msra.mxu0 %v1906
    %1910 = vmatprep.subr.mxu0 0.0
    %1911 = vmatpush1.xpose.msra.mxu0 0.0
    %1912 = vmatprep.subr.mxu0 0.0
    %1913 = vmatpush1.xpose.msra.mxu0 0.0
    %1914 = vmatprep.subr.mxu0 0.0
    %1915 = vmatpush1.xpose.msra.mxu0 0.0
    %1916 = vmatprep.subr.mxu0 0.0
    %1917 = vmatpush1.xpose.msra.mxu0 0.0
    %1918 = vmatprep.subr.mxu0 0.0
    %1919 = vmatpush1.xpose.msra.mxu0 0.0
    %1920 = vmatprep.subr.mxu0 0.0
    %1921 = vmatpush1.xpose.msra.mxu0 0.0
    %1922 = vmatprep.subr.mxu0 0.0
    %1923 = vmatpush1.xpose.msra.mxu0 0.0
    %1924 = vmatprep.subr.mxu0 0.0
    %1925 = vmatpush1.xpose.msra.mxu0 0.0
    %1926 = vmatprep.subr.mxu0 0.0
    %1927 = vmatpush1.xpose.msra.mxu0 0.0
    %1928 = vmatprep.subr.mxu0 0.0
    %1929 = vmatpush1.xpose.msra.mxu0 0.0
    %1930 = vmatprep.subr.mxu0 0.0
    %1931 = vmatpush1.xpose.msra.mxu0 0.0
    %1932 = vmatprep.subr.mxu0 0.0
    %1933 = vmatpush1.xpose.msra.mxu0 0.0
    %1934 = vmatprep.subr.mxu0 0.0
    %1935 = vmatpush1.xpose.msra.mxu0 0.0
    %1936 = vmatprep.subr.mxu0 0.0
    %1937 = vmatpush1.xpose.msra.mxu0 0.0
    %1938 = vmatprep.subr.mxu0 0.0
    %1939 = vmatpush1.xpose.msra.mxu0 0.0
    %1940 = vmatprep.subr.mxu0 0.0
    %1941 = vmatpush1.xpose.msra.mxu0 0.0
    %1942 = vmatprep.subr.mxu0 0.0
    %1943 = vmatpush1.xpose.msra.mxu0 0.0
    %1944 = vmatprep.subr.mxu0 0.0
    %1945 = vmatpush1.xpose.msra.mxu0 0.0
    %1946 = vmatprep.subr.mxu0 0.0
    %1947 = vmatpush1.xpose.msra.mxu0 0.0
    %1948 = vmatprep.subr.mxu0 0.0
    %1949 = vmatpush1.xpose.msra.mxu0 0.0
    %1950 = vmatprep.subr.mxu0 0.0
    %1951 = vmatpush1.xpose.msra.mxu0 0.0
    %1952 = vmatprep.subr.mxu0 0.0
    %1953 = vmatpush1.xpose.msra.mxu0 0.0
    %1954 = vmatprep.subr.mxu0 0.0
    %1955 = vmatpush1.xpose.msra.mxu0 0.0
    %1956 = vmatprep.subr.mxu0 0.0
    %1957 = vmatpush1.xpose.msra.mxu0 0.0
    %1958 = vmatprep.subr.mxu0 0.0
    %1959 = vmatpush1.xpose.msra.mxu0 0.0
    %1960 = vmatprep.subr.mxu0 0.0
    %1961 = vmatpush1.xpose.msra.mxu0 0.0
    %1962 = vmatprep.subr.mxu0 0.0
    %1963 = vmatpush1.xpose.msra.mxu0 0.0
    %1964 = vmatprep.subr.mxu0 0.0
    %1965 = vmatpush1.xpose.msra.mxu0 0.0
    %1966 = vmatprep.subr.mxu0 0.0
    %1967 = vmatpush1.xpose.msra.mxu0 0.0
    %1968 = vmatprep.subr.mxu0 0.0
    %1969 = vmatpush1.xpose.msra.mxu0 0.0
    %1970 = vmatprep.subr.mxu0 0.0
    %1971 = vmatpush1.xpose.msra.mxu0 0.0
    %1972 = vmatprep.mubr.f32.mxu0 0.0
    %1973 = vmatmul.mubr.f32.gmra.mrb[0].mxu0 %v1904
    %v1974 = vpop.f32.mrb[0].mxu0
    %v1975 = vadd.f32 0.0, %v1974
    %v1976 = vpop.f32.mrb[0].mxu0
    %1977 = vdwg.mxu0
    %v1978 = vmul.f32 %v1897, 0.25
    %v1979 = vmul.f32 %v1975, 0.25
    %v1980 = vsel %vm432, %v1978, -inf
    %1981 = vmax.xlane.f32.xlu0 %v1980
    %v1982 = vpop.xlane.xlu0 %1981
    %v1983 = vsel %vm432, %v1979, -inf
    %1984 = vmax.xlane.f32.xlu0 %v1983
    %v1985 = vpop.xlane.xlu0 %1984
    %v1986 = vsub.f32 %v1978, %v1982
    %v1987 = vsub.f32 %v1979, %v1985
    %v1988 = vmul.f32 %v1986, 1.442695
    %v1989 = vpow.pop %v1988
    %v1990 = vmul.f32 %v1987, 1.442695
    %v1991 = vpow.pop %v1990
    %v1992 = vsel %vm432, %v1989, 0.0
    %1993 = vadd.xlane.f32.xlu0 %v1992
    %v1994 = vpop.xlane.xlu0 %1993
    %v1995 = vsel %vm432, %v1991, 0.0
    %1996 = vadd.xlane.f32.xlu0 %v1995
    %v1997 = vpop.xlane.xlu0 %1996
    %v1998 = vrcp.pop %v1994
    %v1999 = vrcp.pop %v1997
    %v2000 = vmul.f32 %v1989, %v1998
    %v2001 = vmul.f32 %v1991, %v1999
    %2002 = vrot.lane.b32.xlu0 %v1482, 48
    %v2003 = vpop.permute.xlu0 %2002
    %v2006 = vsel %vm432, %v2000, 0
    %2008 = vmatprep.subr.mxu0 0.0
    %2009 = vmatpush1.msra.mxu0 %v2003
    %2010 = vmatprep.subr.mxu0 0.0
    %2011 = vmatpush1.msra.mxu0 0.0
    %2012 = vmatprep.subr.mxu0 0.0
    %2013 = vmatpush1.msra.mxu0 0.0
    %2014 = vmatprep.subr.mxu0 0.0
    %2015 = vmatpush1.msra.mxu0 0.0
    %2016 = vmatprep.subr.mxu0 0.0
    %2017 = vmatpush1.msra.mxu0 0.0
    %2018 = vmatprep.subr.mxu0 0.0
    %2019 = vmatpush1.msra.mxu0 0.0
    %2020 = vmatprep.subr.mxu0 0.0
    %2021 = vmatpush1.msra.mxu0 0.0
    %2022 = vmatprep.subr.mxu0 0.0
    %2023 = vmatpush1.msra.mxu0 0.0
    %2024 = vmatprep.subr.mxu0 0.0
    %2025 = vmatpush1.msra.mxu0 0.0
    %2026 = vmatprep.subr.mxu0 0.0
    %2027 = vmatpush1.msra.mxu0 0.0
    %2028 = vmatprep.subr.mxu0 0.0
    %2029 = vmatpush1.msra.mxu0 0.0
    %2030 = vmatprep.subr.mxu0 0.0
    %2031 = vmatpush1.msra.mxu0 0.0
    %2032 = vmatprep.subr.mxu0 0.0
    %2033 = vmatpush1.msra.mxu0 0.0
    %2034 = vmatprep.subr.mxu0 0.0
    %2035 = vmatpush1.msra.mxu0 0.0
    %2036 = vmatprep.subr.mxu0 0.0
    %2037 = vmatpush1.msra.mxu0 0.0
    %2038 = vmatprep.subr.mxu0 0.0
    %2039 = vmatpush1.msra.mxu0 0.0
    %2040 = vmatprep.subr.mxu0 0.0
    %2041 = vmatpush1.msra.mxu0 0.0
    %2042 = vmatprep.subr.mxu0 0.0
    %2043 = vmatpush1.msra.mxu0 0.0
    %2044 = vmatprep.subr.mxu0 0.0
    %2045 = vmatpush1.msra.mxu0 0.0
    %2046 = vmatprep.subr.mxu0 0.0
    %2047 = vmatpush1.msra.mxu0 0.0
    %2048 = vmatprep.subr.mxu0 0.0
    %2049 = vmatpush1.msra.mxu0 0.0
    %2050 = vmatprep.subr.mxu0 0.0
    %2051 = vmatpush1.msra.mxu0 0.0
    %2052 = vmatprep.subr.mxu0 0.0
    %2053 = vmatpush1.msra.mxu0 0.0
    %2054 = vmatprep.subr.mxu0 0.0
    %2055 = vmatpush1.msra.mxu0 0.0
    %2056 = vmatprep.subr.mxu0 0.0
    %2057 = vmatpush1.msra.mxu0 0.0
    %2058 = vmatprep.subr.mxu0 0.0
    %2059 = vmatpush1.msra.mxu0 0.0
    %2060 = vmatprep.subr.mxu0 0.0
    %2061 = vmatpush1.msra.mxu0 0.0
    %2062 = vmatprep.subr.mxu0 0.0
    %2063 = vmatpush1.msra.mxu0 0.0
    %2064 = vmatprep.subr.mxu0 0.0
    %2065 = vmatpush1.msra.mxu0 0.0
    %2066 = vmatprep.subr.mxu0 0.0
    %2067 = vmatpush1.msra.mxu0 0.0
    %2068 = vmatprep.subr.mxu0 0.0
    %2069 = vmatpush1.msra.mxu0 0.0
    %2070 = vmatprep.subr.mxu0 0.0
    %2071 = vmatpush1.msra.mxu0 0.0
    %2072 = vmatprep.mubr.f32.mxu0 0.0
    %2073 = vmatmul.mubr.f32.gmra.mrb[0].mxu0 %v2006
    %v2074 = vpop.f32.mrb[0].mxu0
    %v2075 = vadd.f32 0.0, %v2074
    %v2076 = vpop.f32.mrb[0].mxu0
    %2077 = vdwg.mxu0
    %2078 = vrot.lane.b32.xlu0 %v1487, 48
    %v2079 = vpop.permute.xlu0 %2078
    %v2082 = vsel %vm432, %v2001, 0
    %2084 = vmatprep.subr.mxu0 0.0
    %2085 = vmatpush1.msra.mxu0 %v2079
    %2086 = vmatprep.subr.mxu0 0.0
    %2087 = vmatpush1.msra.mxu0 0.0
    %2088 = vmatprep.subr.mxu0 0.0
    %2089 = vmatpush1.msra.mxu0 0.0
    %2090 = vmatprep.subr.mxu0 0.0
    %2091 = vmatpush1.msra.mxu0 0.0
    %2092 = vmatprep.subr.mxu0 0.0
    %2093 = vmatpush1.msra.mxu0 0.0
    %2094 = vmatprep.subr.mxu0 0.0
    %2095 = vmatpush1.msra.mxu0 0.0
    %2096 = vmatprep.subr.mxu0 0.0
    %2097 = vmatpush1.msra.mxu0 0.0
    %2098 = vmatprep.subr.mxu0 0.0
    %2099 = vmatpush1.msra.mxu0 0.0
    %2100 = vmatprep.subr.mxu0 0.0
    %2101 = vmatpush1.msra.mxu0 0.0
    %2102 = vmatprep.subr.mxu0 0.0
    %2103 = vmatpush1.msra.mxu0 0.0
    %2104 = vmatprep.subr.mxu0 0.0
    %2105 = vmatpush1.msra.mxu0 0.0
    %2106 = vmatprep.subr.mxu0 0.0
    %2107 = vmatpush1.msra.mxu0 0.0
    %2108 = vmatprep.subr.mxu0 0.0
    %2109 = vmatpush1.msra.mxu0 0.0
    %2110 = vmatprep.subr.mxu0 0.0
    %2111 = vmatpush1.msra.mxu0 0.0
    %2112 = vmatprep.subr.mxu0 0.0
    %2113 = vmatpush1.msra.mxu0 0.0
    %2114 = vmatprep.subr.mxu0 0.0
    %2115 = vmatpush1.msra.mxu0 0.0
    %2116 = vmatprep.subr.mxu0 0.0
    %2117 = vmatpush1.msra.mxu0 0.0
    %2118 = vmatprep.subr.mxu0 0.0
    %2119 = vmatpush1.msra.mxu0 0.0
    %2120 = vmatprep.subr.mxu0 0.0
    %2121 = vmatpush1.msra.mxu0 0.0
    %2122 = vmatprep.subr.mxu0 0.0
    %2123 = vmatpush1.msra.mxu0 0.0
    %2124 = vmatprep.subr.mxu0 0.0
    %2125 = vmatpush1.msra.mxu0 0.0
    %2126 = vmatprep.subr.mxu0 0.0
    %2127 = vmatpush1.msra.mxu0 0.0
    %2128 = vmatprep.subr.mxu0 0.0
    %2129 = vmatpush1.msra.mxu0 0.0
    %2130 = vmatprep.subr.mxu0 0.0
    %2131 = vmatpush1.msra.mxu0 0.0
    %2132 = vmatprep.subr.mxu0 0.0
    %2133 = vmatpush1.msra.mxu0 0.0
    %2134 = vmatprep.subr.mxu0 0.0
    %2135 = vmatpush1.msra.mxu0 0.0
    %2136 = vmatprep.subr.mxu0 0.0
    %2137 = vmatpush1.msra.mxu0 0.0
    %2138 = vmatprep.subr.mxu0 0.0
    %2139 = vmatpush1.msra.mxu0 0.0
    %2140 = vmatprep.subr.mxu0 0.0
    %2141 = vmatpush1.msra.mxu0 0.0
    %2142 = vmatprep.subr.mxu0 0.0
    %2143 = vmatpush1.msra.mxu0 0.0
    %2144 = vmatprep.subr.mxu0 0.0
    %2145 = vmatpush1.msra.mxu0 0.0
    %2146 = vmatprep.subr.mxu0 0.0
    %2147 = vmatpush1.msra.mxu0 0.0
    %2148 = vmatprep.mubr.f32.mxu0 0.0
    %2149 = vmatmul.mubr.f32.gmra.mrb[0].mxu0 %v2082
    %v2150 = vpop.f32.mrb[0].mxu0
    %v2151 = vadd.f32 0.0, %v2150
    %v2152 = vpop.f32.mrb[0].mxu0
    %2153 = vdwg.mxu0
    %v2154 = vld [vmem:[%s1398 + $0x30] sm:$0xff]
    %v2155 = vld [vmem:[%s1398 + $0x38] sm:$0xff]
    %v2157 = vsel %vm278, %v2075, 0
    %v2160 = vsel %vm278, %v2151, 0
    %2162 = vmatprep.subr.mxu0 0.0
    %2163 = vmatpush1.msra.mxu0 %v2154
    %2164 = vmatprep.subr.mxu0 0.0
    %2165 = vmatpush1.msra.mxu0 %v2155
    %2166 = vmatprep.subr.mxu0 0.0
    %2167 = vmatpush1.msra.mxu0 0.0
    %2168 = vmatprep.subr.mxu0 0.0
    %2169 = vmatpush1.msra.mxu0 0.0
    %2170 = vmatprep.subr.mxu0 0.0
    %2171 = vmatpush1.msra.mxu0 0.0
    %2172 = vmatprep.subr.mxu0 0.0
    %2173 = vmatpush1.msra.mxu0 0.0
    %2174 = vmatprep.subr.mxu0 0.0
    %2175 = vmatpush1.msra.mxu0 0.0
    %2176 = vmatprep.subr.mxu0 0.0
    %2177 = vmatpush1.msra.mxu0 0.0
    %2178 = vmatprep.subr.mxu0 0.0
    %2179 = vmatpush1.msra.mxu0 0.0
    %2180 = vmatprep.subr.mxu0 0.0
    %2181 = vmatpush1.msra.mxu0 0.0
    %2182 = vmatprep.subr.mxu0 0.0
    %2183 = vmatpush1.msra.mxu0 0.0
    %2184 = vmatprep.subr.mxu0 0.0
    %2185 = vmatpush1.msra.mxu0 0.0
    %2186 = vmatprep.subr.mxu0 0.0
    %2187 = vmatpush1.msra.mxu0 0.0
    %2188 = vmatprep.subr.mxu0 0.0
    %2189 = vmatpush1.msra.mxu0 0.0
    %2190 = vmatprep.subr.mxu0 0.0
    %2191 = vmatpush1.msra.mxu0 0.0
    %2192 = vmatprep.subr.mxu0 0.0
    %2193 = vmatpush1.msra.mxu0 0.0
    %2194 = vmatprep.subr.mxu0 0.0
    %2195 = vmatpush1.msra.mxu0 0.0
    %2196 = vmatprep.subr.mxu0 0.0
    %2197 = vmatpush1.msra.mxu0 0.0
    %2198 = vmatprep.subr.mxu0 0.0
    %2199 = vmatpush1.msra.mxu0 0.0
    %2200 = vmatprep.subr.mxu0 0.0
    %2201 = vmatpush1.msra.mxu0 0.0
    %2202 = vmatprep.subr.mxu0 0.0
    %2203 = vmatpush1.msra.mxu0 0.0
    %2204 = vmatprep.subr.mxu0 0.0
    %2205 = vmatpush1.msra.mxu0 0.0
    %2206 = vmatprep.subr.mxu0 0.0
    %2207 = vmatpush1.msra.mxu0 0.0
    %2208 = vmatprep.subr.mxu0 0.0
    %2209 = vmatpush1.msra.mxu0 0.0
    %2210 = vmatprep.subr.mxu0 0.0
    %2211 = vmatpush1.msra.mxu0 0.0
    %2212 = vmatprep.subr.mxu0 0.0
    %2213 = vmatpush1.msra.mxu0 0.0
    %2214 = vmatprep.subr.mxu0 0.0
    %2215 = vmatpush1.msra.mxu0 0.0
    %2216 = vmatprep.subr.mxu0 0.0
    %2217 = vmatpush1.msra.mxu0 0.0
    %2218 = vmatprep.subr.mxu0 0.0
    %2219 = vmatpush1.msra.mxu0 0.0
    %2220 = vmatprep.subr.mxu0 0.0
    %2221 = vmatpush1.msra.mxu0 0.0
    %2222 = vmatprep.subr.mxu0 0.0
    %2223 = vmatpush1.msra.mxu0 0.0
    %2224 = vmatprep.subr.mxu0 0.0
    %2225 = vmatpush1.msra.mxu0 0.0
    %2226 = vmatprep.mubr.f32.mxu0 0.0
    %2227 = vmatmul.mubr.f32.gmra.mrb[0].mxu0 %v2157
    %v2228 = vpop.f32.mrb[0].mxu0
    %v2229 = vadd.f32 0.0, %v2228
    %v2230 = vpop.f32.mrb[0].mxu0
    %2231 = vmatprep.mubr.f32.mxu0 0.0
    %2232 = vmatmul.mubr.f32.gmra.mrb[0].mxu0 %v2160
    %v2233 = vpop.f32.mrb[0].mxu0
    %v2234 = vadd.f32 0.0, %v2233
    %v2235 = vpop.f32.mrb[0].mxu0
    %2236 = vdwg.mxu0
    %v2238 = vsel %vm278, %v1741, 0
    %v2241 = vsel %vm278, %v1817, 0
    %2243 = vmatprep.subr.mxu0 0.0
    %2244 = vmatpush1.msra.mxu0 %v1820
    %2245 = vmatprep.subr.mxu0 0.0
    %2246 = vmatpush1.msra.mxu0 %v1821
    %2247 = vmatprep.subr.mxu0 0.0
    %2248 = vmatpush1.msra.mxu0 0.0
    %2249 = vmatprep.subr.mxu0 0.0
    %2250 = vmatpush1.msra.mxu0 0.0
    %2251 = vmatprep.subr.mxu0 0.0
    %2252 = vmatpush1.msra.mxu0 0.0
    %2253 = vmatprep.subr.mxu0 0.0
    %2254 = vmatpush1.msra.mxu0 0.0
    %2255 = vmatprep.subr.mxu0 0.0
    %2256 = vmatpush1.msra.mxu0 0.0
    %2257 = vmatprep.subr.mxu0 0.0
    %2258 = vmatpush1.msra.mxu0 0.0
    %2259 = vmatprep.subr.mxu0 0.0
    %2260 = vmatpush1.msra.mxu0 0.0
    %2261 = vmatprep.subr.mxu0 0.0
    %2262 = vmatpush1.msra.mxu0 0.0
    %2263 = vmatprep.subr.mxu0 0.0
    %2264 = vmatpush1.msra.mxu0 0.0
    %2265 = vmatprep.subr.mxu0 0.0
    %2266 = vmatpush1.msra.mxu0 0.0
    %2267 = vmatprep.subr.mxu0 0.0
    %2268 = vmatpush1.msra.mxu0 0.0
    %2269 = vmatprep.subr.mxu0 0.0
    %2270 = vmatpush1.msra.mxu0 0.0
    %2271 = vmatprep.subr.mxu0 0.0
    %2272 = vmatpush1.msra.mxu0 0.0
    %2273 = vmatprep.subr.mxu0 0.0
    %2274 = vmatpush1.msra.mxu0 0.0
    %2275 = vmatprep.subr.mxu0 0.0
    %2276 = vmatpush1.msra.mxu0 0.0
    %2277 = vmatprep.subr.mxu0 0.0
    %2278 = vmatpush1.msra.mxu0 0.0
    %2279 = vmatprep.subr.mxu0 0.0
    %2280 = vmatpush1.msra.mxu0 0.0
    %2281 = vmatprep.subr.mxu0 0.0
    %2282 = vmatpush1.msra.mxu0 0.0
    %2283 = vmatprep.subr.mxu0 0.0
    %2284 = vmatpush1.msra.mxu0 0.0
    %2285 = vmatprep.subr.mxu0 0.0
    %2286 = vmatpush1.msra.mxu0 0.0
    %2287 = vmatprep.subr.mxu0 0.0
    %2288 = vmatpush1.msra.mxu0 0.0
    %2289 = vmatprep.subr.mxu0 0.0
    %2290 = vmatpush1.msra.mxu0 0.0
    %2291 = vmatprep.subr.mxu0 0.0
    %2292 = vmatpush1.msra.mxu0 0.0
    %2293 = vmatprep.subr.mxu0 0.0
    %2294 = vmatpush1.msra.mxu0 0.0
    %2295 = vmatprep.subr.mxu0 0.0
    %2296 = vmatpush1.msra.mxu0 0.0
    %2297 = vmatprep.subr.mxu0 0.0
    %2298 = vmatpush1.msra.mxu0 0.0
    %2299 = vmatprep.subr.mxu0 0.0
    %2300 = vmatpush1.msra.mxu0 0.0
    %2301 = vmatprep.subr.mxu0 0.0
    %2302 = vmatpush1.msra.mxu0 0.0
    %2303 = vmatprep.subr.mxu0 0.0
    %2304 = vmatpush1.msra.mxu0 0.0
    %2305 = vmatprep.subr.mxu0 0.0
    %2306 = vmatpush1.msra.mxu0 0.0
    %2307 = vmatprep.mubr.f32.mxu0 0.0
    %2308 = vmatmul.mubr.f32.gmra.mrb[0].mxu0 %v2238
    %v2309 = vpop.f32.mrb[0].mxu0
    %v2310 = vadd.f32 %v2229, %v2309
    %v2311 = vpop.f32.mrb[0].mxu0
    %2312 = vmatprep.mubr.f32.mxu0 0.0
    %2313 = vmatmul.mubr.f32.gmra.mrb[0].mxu0 %v2241
    %v2314 = vpop.f32.mrb[0].mxu0
    %v2315 = vadd.f32 %v2234, %v2314
    %v2316 = vpop.f32.mrb[0].mxu0
    %2317 = vdwg.mxu0
    %v2318 = vld [vmem:[%s1403 + $0x1] sm:$0x1]
    %v2319 = vlaneseq
    %v2320 = vshrl.u32 %v2319, 7
    %v2321 = vsub.s32 0, %v2320
    %v2322 = vrot.slane %v2318, %v2321
    %v2323 = vadd.f32 %v2310, %v2322
    %v2324 = vadd.f32 %v2315, %v2322
    %v2325 = vadd.f32 %v1396, %v2323
    %v2326 = vadd.f32 %v1397, %v2324
    %v2327 = vld [vmem:[%s1403 + $0x2] sm:$0x1]
    %v2328 = vld [vmem:[%s1403 + $0x3] sm:$0x1]
    %v2329 = vsel %vm145, %v2325, 0.0
    %2330 = vadd.xlane.f32.xlu0 %v2329
    %v2331 = vpop.xlane.xlu0 %2330
    %v2332 = vsel %vm145, %v2326, 0.0
    %2333 = vadd.xlane.f32.xlu0 %v2332
    %v2334 = vpop.xlane.xlu0 %2333
    %v2335 = vmul.f32 %v2331, %v152
    %v2336 = vmul.f32 %v2334, %v152
    %v2337 = vsub.f32 %v2325, %v2335
    %v2338 = vsub.f32 %v2326, %v2336
    %v2339 = vmul.f32 %v2337, %v2337
    %v2340 = vmul.f32 %v2338, %v2338
    %v2341 = vsel %vm145, %v2339, 0.0
    %2342 = vadd.xlane.f32.xlu0 %v2341
    %v2343 = vpop.xlane.xlu0 %2342
    %v2344 = vsel %vm145, %v2340, 0.0
    %2345 = vadd.xlane.f32.xlu0 %v2344
    %v2346 = vpop.xlane.xlu0 %2345
    %v2347 = vmul.f32 %v2343, %v152
    %v2348 = vmul.f32 %v2346, %v152
    %v2349 = vadd.f32 %v2347, 1e-12
    %v2350 = vadd.f32 %v2348, 1e-12
    %v2351 = vrsqrt.pop %v2349
    %v2352 = vrsqrt.pop %v2350
    %v2353 = vmul.f32 %v2337, %v2351
    %v2354 = vmul.f32 %v2338, %v2352
    %v2355 = vlaneseq
    %v2356 = vshrl.u32 %v2355, 7
    %v2357 = vsub.s32 0, %v2356
    %v2358 = vrot.slane %v2327, %v2357
    %v2359 = vmul.f32 %v2353, %v2358
    %v2360 = vmul.f32 %v2354, %v2358
    %v2361 = vlaneseq
    %v2362 = vshrl.u32 %v2361, 7
    %v2363 = vsub.s32 0, %v2362
    %v2364 = vrot.slane %v2328, %v2363
    %v2365 = vadd.f32 %v2359, %v2364
    %v2366 = vadd.f32 %v2360, %v2364
    %v2367 = vld [vmem:[%s1398 + $0x40] sm:$0xff]
    %v2368 = vld [vmem:[%s1398 + $0x48] sm:$0xff]
    %v2369 = vld [vmem:[%s1398 + $0x50] sm:$0xff]
    %v2370 = vld [vmem:[%s1398 + $0x58] sm:$0xff]
    %v2371 = vld [vmem:[%s1403 + $0x4] sm:$0x1]
    %v2372 = vlaneseq
    %v2373 = vshrl.u32 %v2372, 7
    %v2374 = vsub.s32 0, %v2373
    %v2375 = vrot.slane %v2371, %v2374
    %v2377 = vsel %vm145, %v2365, 0
    %v2380 = vsel %vm145, %v2366, 0
    %2382 = vmatprep.subr.mxu0 0.0
    %2383 = vmatpush1.msra.mxu0 %v2367
    %2384 = vmatprep.subr.mxu0 0.0
    %2385 = vmatpush1.msra.mxu0 %v2368
    %2386 = vmatprep.subr.mxu0 0.0
    %2387 = vmatpush1.msra.mxu0 %v2369
    %2388 = vmatprep.subr.mxu0 0.0
    %2389 = vmatpush1.msra.mxu0 %v2370
    %2390 = vmatprep.subr.mxu0 0.0
    %2391 = vmatpush1.msra.mxu0 0.0
    %2392 = vmatprep.subr.mxu0 0.0
    %2393 = vmatpush1.msra.mxu0 0.0
    %2394 = vmatprep.subr.mxu0 0.0
    %2395 = vmatpush1.msra.mxu0 0.0
    %2396 = vmatprep.subr.mxu0 0.0
    %2397 = vmatpush1.msra.mxu0 0.0
    %2398 = vmatprep.subr.mxu0 0.0
    %2399 = vmatpush1.msra.mxu0 0.0
    %2400 = vmatprep.subr.mxu0 0.0
    %2401 = vmatpush1.msra.mxu0 0.0
    %2402 = vmatprep.subr.mxu0 0.0
    %2403 = vmatpush1.msra.mxu0 0.0
    %2404 = vmatprep.subr.mxu0 0.0
    %2405 = vmatpush1.msra.mxu0 0.0
    %2406 = vmatprep.subr.mxu0 0.0
    %2407 = vmatpush1.msra.mxu0 0.0
    %2408 = vmatprep.subr.mxu0 0.0
    %2409 = vmatpush1.msra.mxu0 0.0
    %2410 = vmatprep.subr.mxu0 0.0
    %2411 = vmatpush1.msra.mxu0 0.0
    %2412 = vmatprep.subr.mxu0 0.0
    %2413 = vmatpush1.msra.mxu0 0.0
    %2414 = vmatprep.subr.mxu0 0.0
    %2415 = vmatpush1.msra.mxu0 0.0
    %2416 = vmatprep.subr.mxu0 0.0
    %2417 = vmatpush1.msra.mxu0 0.0
    %2418 = vmatprep.subr.mxu0 0.0
    %2419 = vmatpush1.msra.mxu0 0.0
    %2420 = vmatprep.subr.mxu0 0.0
    %2421 = vmatpush1.msra.mxu0 0.0
    %2422 = vmatprep.subr.mxu0 0.0
    %2423 = vmatpush1.msra.mxu0 0.0
    %2424 = vmatprep.subr.mxu0 0.0
    %2425 = vmatpush1.msra.mxu0 0.0
    %2426 = vmatprep.subr.mxu0 0.0
    %2427 = vmatpush1.msra.mxu0 0.0
    %2428 = vmatprep.subr.mxu0 0.0
    %2429 = vmatpush1.msra.mxu0 0.0
    %2430 = vmatprep.subr.mxu0 0.0
    %2431 = vmatpush1.msra.mxu0 0.0
    %2432 = vmatprep.subr.mxu0 0.0
    %2433 = vmatpush1.msra.mxu0 0.0
    %2434 = vmatprep.subr.mxu0 0.0
    %2435 = vmatpush1.msra.mxu0 0.0
    %2436 = vmatprep.subr.mxu0 0.0
    %2437 = vmatpush1.msra.mxu0 0.0
    %2438 = vmatprep.subr.mxu0 0.0
    %2439 = vmatpush1.msra.mxu0 0.0
    %2440 = vmatprep.subr.mxu0 0.0
    %2441 = vmatpush1.msra.mxu0 0.0
    %2442 = vmatprep.subr.mxu0 0.0
    %2443 = vmatpush1.msra.mxu0 0.0
    %2444 = vmatprep.subr.mxu0 0.0
    %2445 = vmatpush1.msra.mxu0 0.0
    %2446 = vmatprep.mubr.f32.mxu0 0.0
    %2447 = vmatmul.mubr.f32.gmra.mrb[0].mxu0 %v2377
    %v2448 = vpop.f32.mrb[0].mxu0
    %v2449 = vadd.f32 %v2375, %v2448
    %v2450 = vpop.f32.mrb[0].mxu0
    %2451 = vmatprep.mubr.f32.mxu0 0.0
    %2452 = vmatmul.mubr.f32.gmra.mrb[0].mxu0 %v2380
    %v2453 = vpop.f32.mrb[0].mxu0
    %v2454 = vadd.f32 %v2375, %v2453
    %v2455 = vpop.f32.mrb[0].mxu0
    %2456 = vdwg.mxu0
    %v2457 = vmul.f32 %v2449, 0.5
    %v2458 = vmul.f32 %v2454, 0.5
    %v2459 = vmul.f32 %v2449, 0.044715
    %v2460 = vmul.f32 %v2454, 0.044715
    %v2461 = vmul.f32 %v2459, %v2449
    %v2462 = vmul.f32 %v2460, %v2454
    %v2463 = vmul.f32 %v2461, %v2449
    %v2464 = vmul.f32 %v2462, %v2454
    %v2465 = vadd.f32 %v2449, %v2463
    %v2466 = vadd.f32 %v2454, %v2464
    %v2467 = vmul.f32 %v2465, 0.7978846
    %v2468 = vmul.f32 %v2466, 0.7978846
    %v2469 = vtanh.pop %v2467
    %v2470 = vtanh.pop %v2468
    %v2471 = vadd.f32 %v2469, 1.0
    %v2472 = vadd.f32 %v2470, 1.0
    %v2473 = vmul.f32 %v2457, %v2471
    %v2474 = vmul.f32 %v2458, %v2472
    %v2475 = vld [vmem:[%s1398 + $0x60] sm:$0xff]
    %v2476 = vld [vmem:[%s1398 + $0x68] sm:$0xff]
    %v2477 = vld [vmem:[%s1398 + $0x70] sm:$0xff]
    %v2478 = vld [vmem:[%s1398 + $0x78] sm:$0xff]
    %v2479 = vld [vmem:[%s1398 + $0x80] sm:$0xff]
    %v2480 = vld [vmem:[%s1398 + $0x88] sm:$0xff]
    %v2481 = vld [vmem:[%s1398 + $0x90] sm:$0xff]
    %v2482 = vld [vmem:[%s1398 + $0x98] sm:$0xff]
    %v2483 = vld [vmem:[%s1403 + $0x5] sm:$0x1]
    %v2484 = vlaneseq
    %v2485 = vshrl.u32 %v2484, 7
    %v2486 = vsub.s32 0, %v2485
    %v2487 = vrot.slane %v2483, %v2486
    %v2489 = vsel %vm61, %v2473, 0
    %v2492 = vsel %vm61, %v2474, 0
    %2494 = vmatprep.subr.mxu0 0.0
    %2495 = vmatpush1.msra.mxu0 %v2475
    %2496 = vmatprep.subr.mxu0 0.0
    %2497 = vmatpush1.msra.mxu0 %v2476
    %2498 = vmatprep.subr.mxu0 0.0
    %2499 = vmatpush1.msra.mxu0 %v2477
    %2500 = vmatprep.subr.mxu0 0.0
    %2501 = vmatpush1.msra.mxu0 %v2478
    %2502 = vmatprep.subr.mxu0 0.0
    %2503 = vmatpush1.msra.mxu0 %v2479
    %2504 = vmatprep.subr.mxu0 0.0
    %2505 = vmatpush1.msra.mxu0 %v2480
    %2506 = vmatprep.subr.mxu0 0.0
    %2507 = vmatpush1.msra.mxu0 %v2481
    %2508 = vmatprep.subr.mxu0 0.0
    %2509 = vmatpush1.msra.mxu0 %v2482
    %2510 = vmatprep.subr.mxu0 0.0
    %2511 = vmatpush1.msra.mxu0 0.0
    %2512 = vmatprep.subr.mxu0 0.0
    %2513 = vmatpush1.msra.mxu0 0.0
    %2514 = vmatprep.subr.mxu0 0.0
    %2515 = vmatpush1.msra.mxu0 0.0
    %2516 = vmatprep.subr.mxu0 0.0
    %2517 = vmatpush1.msra.mxu0 0.0
    %2518 = vmatprep.subr.mxu0 0.0
    %2519 = vmatpush1.msra.mxu0 0.0
    %2520 = vmatprep.subr.mxu0 0.0
    %2521 = vmatpush1.msra.mxu0 0.0
    %2522 = vmatprep.subr.mxu0 0.0
    %2523 = vmatpush1.msra.mxu0 0.0
    %2524 = vmatprep.subr.mxu0 0.0
    %2525 = vmatpush1.msra.mxu0 0.0
    %2526 = vmatprep.subr.mxu0 0.0
    %2527 = vmatpush1.msra.mxu0 0.0
    %2528 = vmatprep.subr.mxu0 0.0
    %2529 = vmatpush1.msra.mxu0 0.0
    %2530 = vmatprep.subr.mxu0 0.0
    %2531 = vmatpush1.msra.mxu0 0.0
    %2532 = vmatprep.subr.mxu0 0.0
    %2533 = vmatpush1.msra.mxu0 0.0
    %2534 = vmatprep.subr.mxu0 0.0
    %2535 = vmatpush1.msra.mxu0 0.0
    %2536 = vmatprep.subr.mxu0 0.0
    %2537 = vmatpush1.msra.mxu0 0.0
    %2538 = vmatprep.subr.mxu0 0.0
    %2539 = vmatpush1.msra.mxu0 0.0
    %2540 = vmatprep.subr.mxu0 0.0
    %2541 = vmatpush1.msra.mxu0 0.0
    %2542 = vmatprep.subr.mxu0 0.0
    %2543 = vmatpush1.msra.mxu0 0.0
    %2544 = vmatprep.subr.mxu0 0.0
    %2545 = vmatpush1.msra.mxu0 0.0
    %2546 = vmatprep.subr.mxu0 0.0
    %2547 = vmatpush1.msra.mxu0 0.0
    %2548 = vmatprep.subr.mxu0 0.0
    %2549 = vmatpush1.msra.mxu0 0.0
    %2550 = vmatprep.subr.mxu0 0.0
    %2551 = vmatpush1.msra.mxu0 0.0
    %2552 = vmatprep.subr.mxu0 0.0
    %2553 = vmatpush1.msra.mxu0 0.0
    %2554 = vmatprep.subr.mxu0 0.0
    %2555 = vmatpush1.msra.mxu0 0.0
    %2556 = vmatprep.subr.mxu0 0.0
    %2557 = vmatpush1.msra.mxu0 0.0
    %2558 = vmatprep.mubr.f32.mxu0 0.0
    %2559 = vmatmul.mubr.f32.gmra.mrb[0].mxu0 %v2489
    %v2560 = vpop.f32.mrb[0].mxu0
    %v2561 = vadd.f32 %v2487, %v2560
    %v2562 = vpop.f32.mrb[0].mxu0
    %2563 = vmatprep.mubr.f32.mxu0 0.0
    %2564 = vmatmul.mubr.f32.gmra.mrb[0].mxu0 %v2492
    %v2565 = vpop.f32.mrb[0].mxu0
    %v2566 = vadd.f32 %v2487, %v2565
    %v2567 = vpop.f32.mrb[0].mxu0
    %2568 = vdwg.mxu0
    %v2569 = vadd.f32 %v2365, %v2561
    %v2570 = vadd.f32 %v2366, %v2566
    %v2571 = vld [vmem:[%s1403 + $0x6] sm:$0x1]
    %v2572 = vld [vmem:[%s1403 + $0x7] sm:$0x1]
    %v2573 = vsel %vm145, %v2569, 0.0
    %2574 = vadd.xlane.f32.xlu0 %v2573
    %v2575 = vpop.xlane.xlu0 %2574
    %v2576 = vsel %vm145, %v2570, 0.0
    %2577 = vadd.xlane.f32.xlu0 %v2576
    %v2578 = vpop.xlane.xlu0 %2577
    %v2579 = vmul.f32 %v2575, %v152
    %v2580 = vmul.f32 %v2578, %v152
    %v2581 = vsub.f32 %v2569, %v2579
    %v2582 = vsub.f32 %v2570, %v2580
    %v2583 = vmul.f32 %v2581, %v2581
    %v2584 = vmul.f32 %v2582, %v2582
    %v2585 = vsel %vm145, %v2583, 0.0
    %2586 = vadd.xlane.f32.xlu0 %v2585
    %v2587 = vpop.xlane.xlu0 %2586
    %v2588 = vsel %vm145, %v2584, 0.0
    %2589 = vadd.xlane.f32.xlu0 %v2588
    %v2590 = vpop.xlane.xlu0 %2589
    %v2591 = vmul.f32 %v2587, %v152
    %v2592 = vmul.f32 %v2590, %v152
    %v2593 = vadd.f32 %v2591, 1e-12
    %v2594 = vadd.f32 %v2592, 1e-12
    %v2595 = vrsqrt.pop %v2593
    %v2596 = vrsqrt.pop %v2594
    %v2597 = vmul.f32 %v2581, %v2595
    %v2598 = vmul.f32 %v2582, %v2596
    %v2599 = vlaneseq
    %v2600 = vshrl.u32 %v2599, 7
    %v2601 = vsub.s32 0, %v2600
    %v2602 = vrot.slane %v2571, %v2601
    %v2603 = vmul.f32 %v2597, %v2602
    %v2604 = vmul.f32 %v2598, %v2602
    %v2605 = vlaneseq
    %v2606 = vshrl.u32 %v2605, 7
    %v2607 = vsub.s32 0, %v2606
    %v2608 = vrot.slane %v2572, %v2607
    %v2609 = vadd.f32 %v2603, %v2608
    %v2610 = vadd.f32 %v2604, %v2608
    %v2611 = vld [vmem:[%s4] sm:$0xff]
    %v2612 = vld [vmem:[%s4 + $0x8] sm:$0xff]
    %v2613 = vld [vmem:[%s4 + $0x10] sm:$0xff]
    %v2614 = vld [vmem:[%s4 + $0x18] sm:$0xff]
    %v2615 = vld [vmem:[%s4 + $0x40] sm:$0x1]
    %v2616 = vlaneseq
    %v2617 = vshrl.u32 %v2616, 7
    %v2618 = vsub.s32 0, %v2617
    %v2619 = vrot.slane %v2615, %v2618
    %v2622 = vrot.slane %v2610, 7
    %vm2623 = vcmask 1041409
    %v2624 = vsel %vm2623, %v2622, %v2609
    %v2625 = vsel %vm145, %v2624, 0
    %2627 = vmatprep.subr.mxu0 0.0
    %2628 = vmatpush1.msra.mxu0 %v2611
    %2629 = vmatprep.subr.mxu0 0.0
    %2630 = vmatpush1.msra.mxu0 %v2612
    %2631 = vmatprep.subr.mxu0 0.0
    %2632 = vmatpush1.msra.mxu0 %v2613
    %2633 = vmatprep.subr.mxu0 0.0
    %2634 = vmatpush1.msra.mxu0 %v2614
    %2635 = vmatprep.subr.mxu0 0.0
    %2636 = vmatpush1.msra.mxu0 0.0
    %2637 = vmatprep.subr.mxu0 0.0
    %2638 = vmatpush1.msra.mxu0 0.0
    %2639 = vmatprep.subr.mxu0 0.0
    %2640 = vmatpush1.msra.mxu0 0.0
    %2641 = vmatprep.subr.mxu0 0.0
    %2642 = vmatpush1.msra.mxu0 0.0
    %2643 = vmatprep.subr.mxu0 0.0
    %2644 = vmatpush1.msra.mxu0 0.0
    %2645 = vmatprep.subr.mxu0 0.0
    %2646 = vmatpush1.msra.mxu0 0.0
    %2647 = vmatprep.subr.mxu0 0.0
    %2648 = vmatpush1.msra.mxu0 0.0
    %2649 = vmatprep.subr.mxu0 0.0
    %2650 = vmatpush1.msra.mxu0 0.0
    %2651 = vmatprep.subr.mxu0 0.0
    %2652 = vmatpush1.msra.mxu0 0.0
    %2653 = vmatprep.subr.mxu0 0.0
    %2654 = vmatpush1.msra.mxu0 0.0
    %2655 = vmatprep.subr.mxu0 0.0
    %2656 = vmatpush1.msra.mxu0 0.0
    %2657 = vmatprep.subr.mxu0 0.0
    %2658 = vmatpush1.msra.mxu0 0.0
    %2659 = vmatprep.subr.mxu0 0.0
    %2660 = vmatpush1.msra.mxu0 0.0
    %2661 = vmatprep.subr.mxu0 0.0
    %2662 = vmatpush1.msra.mxu0 0.0
    %2663 = vmatprep.subr.mxu0 0.0
    %2664 = vmatpush1.msra.mxu0 0.0
    %2665 = vmatprep.subr.mxu0 0.0
    %2666 = vmatpush1.msra.mxu0 0.0
    %2667 = vmatprep.subr.mxu0 0.0
    %2668 = vmatpush1.msra.mxu0 0.0
    %2669 = vmatprep.subr.mxu0 0.0
    %2670 = vmatpush1.msra.mxu0 0.0
    %2671 = vmatprep.subr.mxu0 0.0
    %2672 = vmatpush1.msra.mxu0 0.0
    %2673 = vmatprep.subr.mxu0 0.0
    %2674 = vmatpush1.msra.mxu0 0.0
    %2675 = vmatprep.subr.mxu0 0.0
    %2676 = vmatpush1.msra.mxu0 0.0
    %2677 = vmatprep.subr.mxu0 0.0
    %2678 = vmatpush1.msra.mxu0 0.0
    %2679 = vmatprep.subr.mxu0 0.0
    %2680 = vmatpush1.msra.mxu0 0.0
    %2681 = vmatprep.subr.mxu0 0.0
    %2682 = vmatpush1.msra.mxu0 0.0
    %2683 = vmatprep.subr.mxu0 0.0
    %2684 = vmatpush1.msra.mxu0 0.0
    %2685 = vmatprep.subr.mxu0 0.0
    %2686 = vmatpush1.msra.mxu0 0.0
    %2687 = vmatprep.subr.mxu0 0.0
    %2688 = vmatpush1.msra.mxu0 0.0
    %2689 = vmatprep.subr.mxu0 0.0
    %2690 = vmatpush1.msra.mxu0 0.0
    %2691 = vmatprep.mubr.f32.mxu0 0.0
    %2692 = vmatmul.mubr.f32.gmra.mrb[0].mxu0 %v2625
    %v2693 = vpop.f32.mrb[0].mxu0
    %v2694 = vadd.f32 %v2619, %v2693
    %v2695 = vpop.f32.mrb[0].mxu0
    %2696 = vdwg.mxu0
    %v2697 = vtanh.pop %v2694
    %v2698 = vld [vmem:[%s4 + $0x20] sm:$0xff]
    %v2699 = vld [vmem:[%s4 + $0x28] sm:$0xff]
    %v2700 = vld [vmem:[%s4 + $0x30] sm:$0xff]
    %v2701 = vld [vmem:[%s4 + $0x38] sm:$0xff]
    %v2702 = vld [vmem:[%s4 + $0x48] sm:$0x1]
    %v2703 = vlaneseq
    %v2704 = vshrl.u32 %v2703, 7
    %v2705 = vsub.s32 0, %v2704
    %v2706 = vrot.slane %v2702, %v2705
    %v2708 = vsel %vm145, %v2697, 0
    %2710 = vmatprep.subr.mxu0 0.0
    %2711 = vmatpush1.msra.mxu0 %v2698
    %2712 = vmatprep.subr.mxu0 0.0
    %2713 = vmatpush1.msra.mxu0 %v2699
    %2714 = vmatprep.subr.mxu0 0.0
    %2715 = vmatpush1.msra.mxu0 %v2700
    %2716 = vmatprep.subr.mxu0 0.0
    %2717 = vmatpush1.msra.mxu0 %v2701
    %2718 = vmatprep.subr.mxu0 0.0
    %2719 = vmatpush1.msra.mxu0 0.0
    %2720 = vmatprep.subr.mxu0 0.0
    %2721 = vmatpush1.msra.mxu0 0.0
    %2722 = vmatprep.subr.mxu0 0.0
    %2723 = vmatpush1.msra.mxu0 0.0
    %2724 = vmatprep.subr.mxu0 0.0
    %2725 = vmatpush1.msra.mxu0 0.0
    %2726 = vmatprep.subr.mxu0 0.0
    %2727 = vmatpush1.msra.mxu0 0.0
    %2728 = vmatprep.subr.mxu0 0.0
    %2729 = vmatpush1.msra.mxu0 0.0
    %2730 = vmatprep.subr.mxu0 0.0
    %2731 = vmatpush1.msra.mxu0 0.0
    %2732 = vmatprep.subr.mxu0 0.0
    %2733 = vmatpush1.msra.mxu0 0.0
    %2734 = vmatprep.subr.mxu0 0.0
    %2735 = vmatpush1.msra.mxu0 0.0
    %2736 = vmatprep.subr.mxu0 0.0
    %2737 = vmatpush1.msra.mxu0 0.0
    %2738 = vmatprep.subr.mxu0 0.0
    %2739 = vmatpush1.msra.mxu0 0.0
    %2740 = vmatprep.subr.mxu0 0.0
    %2741 = vmatpush1.msra.mxu0 0.0
    %2742 = vmatprep.subr.mxu0 0.0
    %2743 = vmatpush1.msra.mxu0 0.0
    %2744 = vmatprep.subr.mxu0 0.0
    %2745 = vmatpush1.msra.mxu0 0.0
    %2746 = vmatprep.subr.mxu0 0.0
    %2747 = vmatpush1.msra.mxu0 0.0
    %2748 = vmatprep.subr.mxu0 0.0
    %2749 = vmatpush1.msra.mxu0 0.0
    %2750 = vmatprep.subr.mxu0 0.0
    %2751 = vmatpush1.msra.mxu0 0.0
    %2752 = vmatprep.subr.mxu0 0.0
    %2753 = vmatpush1.msra.mxu0 0.0
    %2754 = vmatprep.subr.mxu0 0.0
    %2755 = vmatpush1.msra.mxu0 0.0
    %2756 = vmatprep.subr.mxu0 0.0
    %2757 = vmatpush1.msra.mxu0 0.0
    %2758 = vmatprep.subr.mxu0 0.0
    %2759 = vmatpush1.msra.mxu0 0.0
    %2760 = vmatprep.subr.mxu0 0.0
    %2761 = vmatpush1.msra.mxu0 0.0
    %2762 = vmatprep.subr.mxu0 0.0
    %2763 = vmatpush1.msra.mxu0 0.0
    %2764 = vmatprep.subr.mxu0 0.0
    %2765 = vmatpush1.msra.mxu0 0.0
    %2766 = vmatprep.subr.mxu0 0.0
    %2767 = vmatpush1.msra.mxu0 0.0
    %2768 = vmatprep.subr.mxu0 0.0
    %2769 = vmatpush1.msra.mxu0 0.0
    %2770 = vmatprep.subr.mxu0 0.0
    %2771 = vmatpush1.msra.mxu0 0.0
    %2772 = vmatprep.subr.mxu0 0.0
    %2773 = vmatpush1.msra.mxu0 0.0
    %2774 = vmatprep.mubr.f32.mxu0 0.0
    %2775 = vmatmul.mubr.f32.gmra.mrb[0].mxu0 %v2708
    %v2776 = vpop.f32.mrb[0].mxu0
    %v2777 = vadd.f32 %v2706, %v2776
    %v2778 = vpop.f32.mrb[0].mxu0
    %2779 = vdwg.mxu0
    %vm2780 = vcmask 9216
    %2781 = vst.msk [vmem:[#allocation5] sm:$0x3] %vm2780, %v2777
    // Predicated region
    $region26: #{wrapped_model_forward.1} parent=1 // pred_check
      _
    $region27: #{wrapped_model_forward.1} parent=1 // pred_check_branch
      %2783 = sbr.rel (0) target = $region29
    $region28: #{wrapped_model_forward.1} parent=1 // pred_region
      %s2785 = ssub.s32 32, 32
      %2786 = vsyncadd [#allocation4], %s2785
      %s2788 = sshll.u32 [#allocation5], 4
      %s2789 = int_to_ptr.vmem [resolvable:$true] %s2788
      %2791 = dma.vmem_to_hbm [thread:$0]  %s2789, 32, %s5, [#allocation4]
    $region29: #{wrapped_model_forward.1} parent=1 // pred_fallthru
      _
    // Predicated region
    $region30: #{wrapped_model_forward.1} parent=1 // pred_check
      _
    $region31: #{wrapped_model_forward.1} parent=1 // pred_check_branch
      %2793 = sbr.rel (0) target = $region33
    $region32: #{wrapped_model_forward.1} parent=1 // pred_region
      %2794 = dma.done [#allocation4], 32
    $region33: #{wrapped_model_forward.1} parent=1 // pred_fallthru
      _
    %2795 = vsyncpa [#allocation3], 1
    %2796 = vsyncpa [#allocation4], 1

</llo_original>
